<compile_context>
chip_gen: v7x
topology: tpu7x:2x2x1
jax: 0.10.0
libtpu: 0.0.40
codegen_flags: <defaults>
</compile_context>

<pallas_src>
import functools
import math

import jax
import jax.numpy as jnp
from jax.experimental import pallas as pl
from jax.experimental.pallas import tpu as pltpu


# ---------------------------------------------------------------------------
# In-kernel helpers
# ---------------------------------------------------------------------------
def _matmul_t(a, w):
    """a: (M, K) f32, w: (N, K) (bf16/f32) -> a @ w.T with f32 accumulation."""
    return jax.lax.dot_general(
        a.astype(w.dtype), w, (((1,), (1,)), ((), ())),
        preferred_element_type=jnp.float32)


def _layer_norm(x, gamma, beta, eps=1e-5):
    mean = jnp.mean(x, axis=-1, keepdims=True)
    var = jnp.mean((x - mean) ** 2, axis=-1, keepdims=True)
    return (x - mean) * jax.lax.rsqrt(var + eps) * gamma + beta


# ---------------------------------------------------------------------------
# Pallas kernel: embedding + transformer stack + bottleneck + softplus(var)
# ---------------------------------------------------------------------------
def _photometric_enc_kernel(
    feat_ref,     # (TB, T, NF) f32  packed token features for this batch block
    kb_ref,       # (1, 1, M)   f32  flattened per-key padding bias (0 / -1e9)
    bmask_ref,    # (M, M)      f32  block-diag batch mask (0 / -1e9), resident
    hmask_ref,    # (H, 1, D)   f32  per-head lane selection masks, resident
    w_emb_ref,    # (NF, D)     f32  fused [emb_w.T; band_emb; latent_toks; emb_b]
    in_w_ref,     # (L, 3D, D)  bf16 fused qkv in_proj weights
    in_b_ref,     # (L, 1, 3D)  f32
    out_w_ref,    # (L, D, D)   bf16 attention out_proj
    out_b_ref,    # (L, 1, D)   f32
    l1_w_ref,     # (L, F, D)   bf16
    l1_b_ref,     # (L, 1, F)   f32
    l2_w_ref,     # (L, D, F)   bf16
    l2_b_ref,     # (L, 1, D)   f32
    n1_g_ref,     # (L, 1, D)   f32
    n1_b_ref,     # (L, 1, D)   f32
    n2_g_ref,     # (L, 1, D)   f32
    n2_b_ref,     # (L, 1, D)   f32
    proj_w_ref,   # (latent_dim, D)  bf16
    proj_b_ref,   # (1, latent_dim)  f32
    out_ref,      # (TB, 2*latent_len, latent_dim) f32  (mu | softplus(var))
    *,
    num_layers,
    num_heads,
    model_dim,
    latent_len,
    tokens,
    batch_block,
    num_feat,
):
    TB, T, D, H = batch_block, tokens, model_dim, num_heads
    hd = D // H
    M = TB * T
    LL = latent_len
    scale = 1.0 / math.sqrt(hd)

    # ---- fused embedding: one (M, NF) @ (NF, D) matmul builds all tokens ----
    # (latent-token prepend, flux/time linear, band embedding and emb bias are
    #  all encoded in the feature columns / weight rows; see _build_features).
    feat = feat_ref[...].reshape(M, num_feat)
    x = jnp.dot(feat, w_emb_ref[...], preferred_element_type=jnp.float32)

    # Additive attention bias for the folded batch block: block-diagonal batch
    # mask + key-padding bias, broadcast over heads.  The 2*latent_len latent
    # query tokens are never padded, so no softmax row is ever fully masked.
    bias = (bmask_ref[...] + kb_ref[0])[None]                   # (1, M, M)
    hmask = hmask_ref[...]                                      # (H, 1, D)

    # TODO(synk): switch to lax.fori_loop with dynamic ref indexing if
    # num_layers grows beyond ~4 (bounds live ranges / vreg pressure).
    for l in range(num_layers):
        # ---- self-attention: fused QKV projection (one MXU call, N = 3D) ----
        qkv = _matmul_t(x, in_w_ref[l]) + in_b_ref[l]           # (M, 3D) f32
        q = jnp.broadcast_to(qkv[:, :D][None], (H, M, D))       # unmasked
        k = qkv[:, D:2 * D][None] * hmask                       # (H, M, D)
        v = qkv[:, 2 * D:][None] * hmask                        # (H, M, D)

        # Per-head scores via masked full-D contraction; single batch dim (H).
        s = jnp.einsum("hmd,hnd->hmn", q, k,
                       preferred_element_type=jnp.float32) * scale + bias
        s = s - jnp.max(s, axis=-1, keepdims=True)              # stable softmax
        p = jnp.exp(s)
        p = p * pl.reciprocal(jnp.sum(p, axis=-1, keepdims=True), approx=True)
        o = jnp.einsum("hmn,hnd->hmd", p, v,
                       preferred_element_type=jnp.float32)      # (H, M, D)
        # Head merge: each head only populates its own lanes -> sum over H.
        attn = o[0]
        for h in range(1, H):
            attn = attn + o[h]                                  # (M, D)
        attn = _matmul_t(attn, out_w_ref[l]) + out_b_ref[l]

        # ---- post-norm residual blocks (PyTorch norm_first=False default) ----
        x = _layer_norm(x + attn, n1_g_ref[l], n1_b_ref[l])
        h1 = jnp.maximum(_matmul_t(x, l1_w_ref[l]) + l1_b_ref[l], 0.0)  # ReLU
        h2 = _matmul_t(h1, l2_w_ref[l]) + l2_b_ref[l]
        x = _layer_norm(x + h2, n2_g_ref[l], n2_b_ref[l])

    # ---- bottleneck: project ALL tokens (one big matmul), slice afterwards ----
    bott = _matmul_t(x, proj_w_ref[...]) + proj_b_ref[...]      # (M, latent_dim)
    bott = bott.reshape(TB, T, -1)[:, :2 * LL, :]               # (TB, 2LL, LD)
    tok = jax.lax.broadcasted_iota(jnp.int32, bott.shape, 1)
    out_ref[...] = jnp.where(tok < LL, bott, jax.nn.softplus(bott))


# ---------------------------------------------------------------------------
# Parameters (deterministic synthetic init)
# ---------------------------------------------------------------------------
def init_params(key, num_bands, latent_len, latent_dim, model_dim, ff_dim,
                num_layers):
    D, F, L = model_dim, ff_dim, num_layers
    ks = jax.random.split(key, 10 + 6 * L)
    s = 0.05

    def rn(k, shape):
        return (s * jax.random.normal(k, shape)).astype(jnp.float32)

    p = {
        "emb_w": rn(ks[0], (D, 2)),
        "emb_b": rn(ks[1], (D,)),
        "band_emb": rn(ks[2], (num_bands, D)),
        "latent_tokens": rn(ks[3], (2 * latent_len, D)),
        "proj_w": rn(ks[4], (latent_dim, D)),
        "proj_b": rn(ks[5], (1, latent_dim)),
    }
    kidx = 6
    p["in_w"] = jnp.stack([rn(ks[kidx + i], (3 * D, D)) for i in range(L)])
    kidx += L
    p["in_b"] = jnp.stack([rn(ks[kidx + i], (1, 3 * D)) for i in range(L)])
    kidx += L
    p["out_w"] = jnp.stack([rn(ks[kidx + i], (D, D)) for i in range(L)])
    kidx += L
    p["out_b"] = jnp.stack([rn(ks[kidx + i], (1, D)) for i in range(L)])
    kidx += L
    p["l1_w"] = jnp.stack([rn(ks[kidx + i], (F, D)) for i in range(L)])
    kidx += L
    p["l1_b"] = jnp.zeros((L, 1, F), jnp.float32)
    p["l2_w"] = jnp.stack([rn(ks[kidx + i], (D, F)) for i in range(L)])
    p["l2_b"] = jnp.zeros((L, 1, D), jnp.float32)
    p["n1_g"] = jnp.ones((L, 1, D), jnp.float32)
    p["n1_b"] = jnp.zeros((L, 1, D), jnp.float32)
    p["n2_g"] = jnp.ones((L, 1, D), jnp.float32)
    p["n2_b"] = jnp.zeros((L, 1, D), jnp.float32)
    return p


_TRANSFORMER_WEIGHTS = ("in_w", "in_b", "out_w", "out_b", "l1_w", "l1_b",
                        "l2_w", "l2_b", "n1_g", "n1_b", "n2_g", "n2_b",
                        "proj_w", "proj_b")
_BF16_WEIGHTS = frozenset({"in_w", "out_w", "l1_w", "l2_w", "proj_w"})


def _cast_weight(name, a):
    """bf16 for matmul weights (MXU), f32 for biases / norm params."""
    return a.astype(jnp.bfloat16 if name in _BF16_WEIGHTS else jnp.float32)


# ---------------------------------------------------------------------------
# Host-side glue: packed feature/weight construction (fused-embedding trick)
# ---------------------------------------------------------------------------
def _build_features(flux, time, band, num_bands, latent_len):
    """Pack [flux, time, onehot(band), onehot(latent token), bias-flag] per
    token so that feat @ W_emb reproduces embed+band-embed+latent-prepend."""
    B, S = flux.shape
    ll2 = 2 * latent_len
    nb = num_bands
    oneh = jax.nn.one_hot(band, nb, dtype=jnp.float32)                  # (B,S,NB)
    seq_feat = jnp.concatenate(
        [flux[..., None].astype(jnp.float32),
         time[..., None].astype(jnp.float32),
         oneh,
         jnp.zeros((B, S, ll2), jnp.float32),
         jnp.ones((B, S, 1), jnp.float32)], axis=-1)                    # (B,S,NFr)
    lat_feat = jnp.concatenate(
        [jnp.zeros((ll2, 2 + nb), jnp.float32),
         jnp.eye(ll2, dtype=jnp.float32),
         jnp.zeros((ll2, 1), jnp.float32)], axis=-1)                    # (2LL,NFr)
    lat_feat = jnp.broadcast_to(lat_feat[None], (B,) + lat_feat.shape)
    feat = jnp.concatenate([lat_feat, seq_feat], axis=1)                # (B,T,NFr)
    nf_raw = 2 + nb + ll2 + 1
    nf = ((nf_raw + 7) // 8) * 8
    if nf != nf_raw:
        feat = jnp.pad(feat, ((0, 0), (0, 0), (0, nf - nf_raw)))
    return feat, nf


def _build_embed_weight(params, num_bands, latent_len, nf):
    """(NF, D) fused embedding weight: [emb_w.T; band_emb; latent_tokens; emb_b]."""
    w = jnp.concatenate(
        [params["emb_w"].T.astype(jnp.float32),
         params["band_emb"].astype(jnp.float32),
         params["latent_tokens"].astype(jnp.float32),
         params["emb_b"][None, :].astype(jnp.float32)], axis=0)
    if w.shape[0] != nf:
        w = jnp.pad(w, ((0, nf - w.shape[0]), (0, 0)))
    return w


def _key_padding_bias(mask, batch, seq, latent_len):
    """(B, T) additive key bias; PyTorch src_key_padding_mask: True = ignore."""
    T = 2 * latent_len + seq
    if mask is None:
        return jnp.zeros((batch, T), jnp.float32)
    kb_seq = jnp.where(mask, -1e9, 0.0).astype(jnp.float32)             # (B, S)
    return jnp.concatenate(
        [jnp.zeros((batch, 2 * latent_len), jnp.float32), kb_seq], axis=1)


def _prepare_weights(params, num_bands, latent_len, nf):
    w_emb = _build_embed_weight(params, num_bands, latent_len, nf)
    return [w_emb] + [_cast_weight(n, params[n]) for n in _TRANSFORMER_WEIGHTS]


# ---------------------------------------------------------------------------
# Generation-aware tiling / VMEM policy
# ---------------------------------------------------------------------------
def _vmem_capacity_bytes():
    try:
        info = pltpu.get_tpu_info()
        for name in ("vmem_capacity_bytes", "vmem_size_bytes", "vmem_bytes"):
            cap = getattr(info, name, None)
            if cap:
                return int(cap)
    except Exception:
        pass
    return 128 * 1024 * 1024


def _pick_batch_block(batch, tokens, *, target_m, require_two_steps):
    """Fold batch rows so the MXU M tile is ~target_m; on 2-TC chips keep >=2
    grid steps for parallel sharding; always divide the batch."""
    tb = min(batch, max(1, -(-target_m // tokens)))     # ceil(target_m / tokens)
    if require_two_steps:
        while tb > 1 and batch // tb < 2:
            tb -= 1
    while batch % tb != 0:
        tb -= 1
    return tb


def _vmem_limit_bytes(resident, tb, tokens, nf, d, f, heads, latent_len,
                      latent_dim, cap):
    """Compute vmem_limit_bytes from actual buffer sizes + headroom, capped at
    75% of physical VMEM (v7x only has 64 MiB)."""
    resident_bytes = sum(int(a.size) * a.dtype.itemsize for a in resident)
    m = tb * tokens
    blk = (tb * tokens * nf + m + tb * 2 * latent_len * latent_dim) * 4
    inter = 4 * (m * 3 * d            # fused qkv
                 + 3 * heads * m * d  # broadcast/masked q, k, v
                 + 2 * heads * m * m  # scores + probabilities
                 + m * f              # FFN hidden
                 + 6 * m * d)         # residual-stream temporaries
    total = resident_bytes + 2 * blk + inter
    limit = max(32 << 20, int(1.5 * total) + (8 << 20))
    return min(limit, int(0.75 * cap))


# ---------------------------------------------------------------------------
# Wrapper: feature packing + pallas_call
# ---------------------------------------------------------------------------
def photometric_enc_forward(flux, time, band, params, *, num_bands, latent_len,
                            latent_dim, model_dim, num_heads, num_layers,
                            mask=None, batch_block=None):
    B, S = flux.shape
    D = model_dim
    T = 2 * latent_len + S
    F = params["l1_w"].shape[1]

    feat, nf = _build_features(flux, time, band, num_bands, latent_len)
    kb = _key_padding_bias(mask, B, S, latent_len)
    weights = _prepare_weights(params, num_bands, latent_len, nf)

    vmem_cap = _vmem_capacity_bytes()
    is_v7x = vmem_cap <= 64 * 1024 * 1024
    if batch_block is not None:
        TB = batch_block
    else:
        TB = _pick_batch_block(B, T,
                               target_m=128 if is_v7x else 256,
                               require_two_steps=is_v7x)
    assert B % TB == 0, "batch block must divide the batch"
    M = TB * T

    # Per-block key bias flattened to (1, M) rows so the kernel never has to
    # do a lane-merging reshape; block-diagonal batch mask & per-head lane
    # masks are built once here and kept VMEM-resident.
    kb_blocks = kb.reshape(B // TB, 1, M)
    tok_batch = jnp.repeat(jnp.arange(TB, dtype=jnp.int32), T)
    block_mask = jnp.where(tok_batch[:, None] == tok_batch[None, :],
                           0.0, -1e9).astype(jnp.float32)              # (M, M)
    head_mask = (jnp.arange(D, dtype=jnp.int32)[None, :] // (D // num_heads)
                 == jnp.arange(num_heads, dtype=jnp.int32)[:, None])
    head_mask = head_mask.astype(jnp.float32)[:, None, :]              # (H,1,D)

    resident = [block_mask, head_mask] + weights
    vmem_limit = _vmem_limit_bytes(resident, TB, T, nf, D, F, num_heads,
                                   latent_len, latent_dim, vmem_cap)

    # Weights / masks: whole arrays resident in VMEM, no per-step windowing,
    # no double-buffering (their blocks never change across the grid).
    # TODO(synk): for production-sized (D, F, L) on v7x, stream per-layer
    # weight blocks (layer index_map + pl.Buffered(2)) instead.
    vmem_spec = pl.BlockSpec(memory_space=pltpu.MemorySpace.VMEM)

    kernel = functools.partial(
        _photometric_enc_kernel,
        num_layers=num_layers,
        num_heads=num_heads,
        model_dim=D,
        latent_len=latent_len,
        tokens=T,
        batch_block=TB,
        num_feat=nf,
    )

    bott = pl.pallas_call(
        kernel,
        grid=(B // TB,),
        in_specs=[
            pl.BlockSpec((TB, T, nf), lambda b: (b, 0, 0)),
            pl.BlockSpec((1, 1, M), lambda b: (b, 0, 0)),
            vmem_spec,                      # block-diag batch mask
            vmem_spec,                      # head masks
        ] + [vmem_spec] * len(weights),
        out_specs=pl.BlockSpec((TB, 2 * latent_len, latent_dim),
                               lambda b: (b, 0, 0)),
        out_shape=jax.ShapeDtypeStruct((B, 2 * latent_len, latent_dim),
                                       jnp.float32),
        compiler_params=pltpu.CompilerParams(
            dimension_semantics=("parallel",),
            vmem_limit_bytes=vmem_limit,
        ),
    )(feat, kb_blocks, block_mask, head_mask, *weights)

    mu = bott[:, :latent_len, :]
    var = bott[:, latent_len:, :]
    return mu, var


# ---------------------------------------------------------------------------
# Pure-JAX reference (same bf16-weight / f32-accumulate recipe) for checking
# ---------------------------------------------------------------------------
def photometric_enc_reference(flux, time, band, params, *, num_bands,
                              latent_len, model_dim, num_heads, num_layers,
                              mask=None):
    B, S = flux.shape
    D, H = model_dim, num_heads
    hd = D // H
    scale = 1.0 / math.sqrt(hd)
    T = 2 * latent_len + S

    feat, nf = _build_features(flux, time, band, num_bands, latent_len)
    w_emb = _build_embed_weight(params, num_bands, latent_len, nf)
    x = jnp.einsum("btf,fd->btd", feat, w_emb)                          # (B,T,D)
    kb = _key_padding_bias(mask, B, S, latent_len)                      # (B, T)

    cw = {n: _cast_weight(n, params[n]) for n in _TRANSFORMER_WEIGHTS}

    def mm(a, wt):
        return jnp.einsum("...k,nk->...n", a.astype(wt.dtype), wt,
                          preferred_element_type=jnp.float32)

    def ln(a, g, b, eps=1e-5):
        m = jnp.mean(a, -1, keepdims=True)
        v = jnp.mean((a - m) ** 2, -1, keepdims=True)
        return (a - m) * jax.lax.rsqrt(v + eps) * g + b

    for l in range(num_layers):
        qkv = mm(x, cw["in_w"][l]) + cw["in_b"][l]                      # (B,T,3D)
        q, k, v = jnp.split(qkv, 3, axis=-1)
        q = q.reshape(B, T, H, hd)
        k = k.reshape(B, T, H, hd)
        v = v.reshape(B, T, H, hd)
        s = jnp.einsum("bqhd,bkhd->bhqk", q, k) * scale + kb[:, None, None, :]
        a = jax.nn.softmax(s, axis=-1)
        o = jnp.einsum("bhqk,bkhd->bqhd", a, v).reshape(B, T, D)
        attn = mm(o, cw["out_w"][l]) + cw["out_b"][l]
        x = ln(x + attn, cw["n1_g"][l], cw["n1_b"][l])
        h1 = jnp.maximum(mm(x, cw["l1_w"][l]) + cw["l1_b"][l], 0.0)
        h2 = mm(h1, cw["l2_w"][l]) + cw["l2_b"][l]
        x = ln(x + h2, cw["n2_g"][l], cw["n2_b"][l])

    bott = mm(x[:, :2 * latent_len, :], cw["proj_w"]) + cw["proj_b"]
    mu = bott[:, :latent_len, :]
    var = jax.nn.softplus(bott[:, latent_len:, :])
    return mu, var


# ---------------------------------------------------------------------------
if __name__ == "__main__":
    # Small config consistent with the module's __init__ signature.
    B, S = 2, 8
    num_bands = 4
    latent_len = 4
    latent_dim = 8
    model_dim = 32
    num_heads = 4
    ff_dim = 64
    num_layers = 2

    key = jax.random.PRNGKey(0)
    k_flux, k_time, k_band, k_par = jax.random.split(key, 4)
    flux = jax.random.normal(k_flux, (B, S), jnp.float32)
    time = jax.random.uniform(k_time, (B, S), jnp.float32)
    band = jax.random.randint(k_band, (B, S), 0, num_bands)

    params = init_params(k_par, num_bands, latent_len, latent_dim,
                         model_dim, ff_dim, num_layers)

    def run_and_check(mask):
        mu, var = photometric_enc_forward(
            flux, time, band, params,
            num_bands=num_bands, latent_len=latent_len, latent_dim=latent_dim,
            model_dim=model_dim, num_heads=num_heads, num_layers=num_layers,
            mask=mask)
        jax.block_until_ready((mu, var))

        assert mu.shape == (B, latent_len, latent_dim)
        assert var.shape == (B, latent_len, latent_dim)
        assert bool(jnp.all(var > 0.0))          # softplus output is positive
        assert bool(jnp.all(jnp.isfinite(mu)))

        mu_r, var_r = photometric_enc_reference(
            flux, time, band, params,
            num_bands=num_bands, latent_len=latent_len, model_dim=model_dim,
            num_heads=num_heads, num_layers=num_layers, mask=mask)
        assert bool(jnp.allclose(mu, mu_r, rtol=3e-2, atol=3e-2))
        assert bool(jnp.allclose(var, var_r, rtol=3e-2, atol=3e-2))

    # No-mask path.
    run_and_check(None)
    # Key-padding path (last two observations of batch 1 are padding).  Latent
    # tokens are never masked, so no softmax row is ever fully masked.
    pad_mask = jnp.zeros((B, S), dtype=bool).at[1, S - 2:].set(True)
    run_and_check(pad_mask)

    print("KERNEL_OK")
</pallas_src>

<mosaic_0001>
module attributes {stable_mosaic.version = 11 : i64} {
  func.func @_photometric_enc_kernel(%arg0: i32, %arg1: memref<2x16x16xf32, #tpu.memory_space<vmem>>, %arg2: memref<1x1x32xf32, #tpu.memory_space<vmem>>, %arg3: memref<32x32xf32, #tpu.memory_space<vmem>>, %arg4: memref<4x1x32xf32, #tpu.memory_space<vmem>>, %arg5: memref<16x32xf32, #tpu.memory_space<vmem>>, %arg6: memref<2x96x32xbf16, #tpu.memory_space<vmem>>, %arg7: memref<2x1x96xf32, #tpu.memory_space<vmem>>, %arg8: memref<2x32x32xbf16, #tpu.memory_space<vmem>>, %arg9: memref<2x1x32xf32, #tpu.memory_space<vmem>>, %arg10: memref<2x64x32xbf16, #tpu.memory_space<vmem>>, %arg11: memref<2x1x64xf32, #tpu.memory_space<vmem>>, %arg12: memref<2x32x64xbf16, #tpu.memory_space<vmem>>, %arg13: memref<2x1x32xf32, #tpu.memory_space<vmem>>, %arg14: memref<2x1x32xf32, #tpu.memory_space<vmem>>, %arg15: memref<2x1x32xf32, #tpu.memory_space<vmem>>, %arg16: memref<2x1x32xf32, #tpu.memory_space<vmem>>, %arg17: memref<2x1x32xf32, #tpu.memory_space<vmem>>, %arg18: memref<8x32xbf16, #tpu.memory_space<vmem>>, %arg19: memref<1x8xf32, #tpu.memory_space<vmem>>, %arg20: memref<2x8x8xf32, #tpu.memory_space<vmem>>) attributes {dimension_semantics = [#tpu.dimension_semantics<parallel>], iteration_bounds = array<i64: 1>, scalar_prefetch = 0 : i64, scratch_operands = 0 : i64, tpu.core_type = #tpu.core_type<tc>, window_params = [{transform_indices = @transform_0, window_bounds = array<i64: 2, 16, 16>}, {transform_indices = @transform_1, window_bounds = array<i64: 1, 1, 32>}, {pipeline_mode = #tpu.pipeline_mode<synchronous>, transform_indices = @transform_2, window_bounds = array<i64: 32, 32>}, {pipeline_mode = #tpu.pipeline_mode<synchronous>, transform_indices = @transform_3, window_bounds = array<i64: 4, 1, 32>}, {pipeline_mode = #tpu.pipeline_mode<synchronous>, transform_indices = @transform_4, window_bounds = array<i64: 16, 32>}, {pipeline_mode = #tpu.pipeline_mode<synchronous>, transform_indices = @transform_5, window_bounds = array<i64: 2, 96, 32>}, {pipeline_mode = #tpu.pipeline_mode<synchronous>, transform_indices = @transform_6, window_bounds = array<i64: 2, 1, 96>}, {pipeline_mode = #tpu.pipeline_mode<synchronous>, transform_indices = @transform_7, window_bounds = array<i64: 2, 32, 32>}, {pipeline_mode = #tpu.pipeline_mode<synchronous>, transform_indices = @transform_8, window_bounds = array<i64: 2, 1, 32>}, {pipeline_mode = #tpu.pipeline_mode<synchronous>, transform_indices = @transform_9, window_bounds = array<i64: 2, 64, 32>}, {pipeline_mode = #tpu.pipeline_mode<synchronous>, transform_indices = @transform_10, window_bounds = array<i64: 2, 1, 64>}, {pipeline_mode = #tpu.pipeline_mode<synchronous>, transform_indices = @transform_11, window_bounds = array<i64: 2, 32, 64>}, {pipeline_mode = #tpu.pipeline_mode<synchronous>, transform_indices = @transform_12, window_bounds = array<i64: 2, 1, 32>}, {pipeline_mode = #tpu.pipeline_mode<synchronous>, transform_indices = @transform_13, window_bounds = array<i64: 2, 1, 32>}, {pipeline_mode = #tpu.pipeline_mode<synchronous>, transform_indices = @transform_14, window_bounds = array<i64: 2, 1, 32>}, {pipeline_mode = #tpu.pipeline_mode<synchronous>, transform_indices = @transform_15, window_bounds = array<i64: 2, 1, 32>}, {pipeline_mode = #tpu.pipeline_mode<synchronous>, transform_indices = @transform_16, window_bounds = array<i64: 2, 1, 32>}, {pipeline_mode = #tpu.pipeline_mode<synchronous>, transform_indices = @transform_17, window_bounds = array<i64: 8, 32>}, {pipeline_mode = #tpu.pipeline_mode<synchronous>, transform_indices = @transform_18, window_bounds = array<i64: 1, 8>}, {transform_indices = @transform_19, window_bounds = array<i64: 2, 8, 8>}]} {
    %c0 = arith.constant 0 : index
    %c0_0 = arith.constant 0 : index
    %c0_1 = arith.constant 0 : index
    %0 = vector.load %arg1[%c0, %c0_0, %c0_1] : memref<2x16x16xf32, #tpu.memory_space<vmem>>, vector<2x16x16xf32>
    %1 = vector.shape_cast %0 : vector<2x16x16xf32> to vector<32x16xf32>
    %c0_2 = arith.constant 0 : index
    %c0_3 = arith.constant 0 : index
    %2 = vector.load %arg5[%c0_2, %c0_3] : memref<16x32xf32, #tpu.memory_space<vmem>>, vector<16x32xf32>
    %cst = arith.constant dense<0.000000e+00> : vector<32x32xf32>
    %3 = tpu.matmul %1, %2, %cst {dimension_numbers = #tpu.dot_dimension_numbers<[1], [0], [0], [1], [0, 0, 1, 1], [], []>} : vector<32x16xf32>, vector<16x32xf32>, vector<32x32xf32> -> vector<32x32xf32>
    %c0_4 = arith.constant 0 : index
    %c0_5 = arith.constant 0 : index
    %4 = vector.load %arg3[%c0_4, %c0_5] : memref<32x32xf32, #tpu.memory_space<vmem>>, vector<32x32xf32>
    %c0_6 = arith.constant 0 : index
    %c0_7 = arith.constant 0 : index
    %c0_8 = arith.constant 0 : index
    %5 = vector.load %arg2[%c0_6, %c0_7, %c0_8] : memref<1x1x32xf32, #tpu.memory_space<vmem>>, vector<1x1x32xf32>
    %6 = vector.shape_cast %5 : vector<1x1x32xf32> to vector<1x32xf32>
    %7 = vector.broadcast %6 : vector<1x32xf32> to vector<32x32xf32>
    %8 = arith.addf %4, %7 : vector<32x32xf32>
    %9 = vector.shape_cast %8 : vector<32x32xf32> to vector<1x32x32xf32>
    %c0_9 = arith.constant 0 : index
    %c0_10 = arith.constant 0 : index
    %c0_11 = arith.constant 0 : index
    %10 = vector.load %arg4[%c0_9, %c0_10, %c0_11] : memref<4x1x32xf32, #tpu.memory_space<vmem>>, vector<4x1x32xf32>
    %c0_12 = arith.constant 0 : index
    %c0_13 = arith.constant 0 : index
    %c0_14 = arith.constant 0 : index
    %11 = vector.load %arg6[%c0_12, %c0_13, %c0_14] : memref<2x96x32xbf16, #tpu.memory_space<vmem>>, vector<1x96x32xbf16>
    %12 = vector.shape_cast %11 : vector<1x96x32xbf16> to vector<96x32xbf16>
    %13 = arith.truncf %3 : vector<32x32xf32> to vector<32x32xbf16>
    %cst_15 = arith.constant dense<0.000000e+00> : vector<32x96xf32>
    %14 = tpu.matmul %13, %12, %cst_15 {dimension_numbers = #tpu.dot_dimension_numbers<[1], [1], [0], [0], [0, 0, 1, 0], [], []>} : vector<32x32xbf16>, vector<96x32xbf16>, vector<32x96xf32> -> vector<32x96xf32>
    %c0_16 = arith.constant 0 : index
    %c0_17 = arith.constant 0 : index
    %c0_18 = arith.constant 0 : index
    %15 = vector.load %arg7[%c0_16, %c0_17, %c0_18] : memref<2x1x96xf32, #tpu.memory_space<vmem>>, vector<1x1x96xf32>
    %16 = vector.shape_cast %15 : vector<1x1x96xf32> to vector<1x96xf32>
    %17 = vector.broadcast %16 : vector<1x96xf32> to vector<32x96xf32>
    %18 = arith.addf %14, %17 : vector<32x96xf32>
    %19 = vector.extract_strided_slice %18 {offsets = [0, 0], sizes = [32, 32], strides = [1, 1]} : vector<32x96xf32> to vector<32x32xf32>
    %20 = vector.shape_cast %19 : vector<32x32xf32> to vector<1x32x32xf32>
    %21 = vector.shape_cast %20 : vector<1x32x32xf32> to vector<1x32x32xf32>
    %22 = vector.broadcast %21 : vector<1x32x32xf32> to vector<4x32x32xf32>
    %23 = vector.extract_strided_slice %18 {offsets = [0, 32], sizes = [32, 32], strides = [1, 1]} : vector<32x96xf32> to vector<32x32xf32>
    %24 = vector.shape_cast %23 : vector<32x32xf32> to vector<1x32x32xf32>
    %25 = vector.broadcast %24 : vector<1x32x32xf32> to vector<4x32x32xf32>
    %26 = vector.broadcast %10 : vector<4x1x32xf32> to vector<4x32x32xf32>
    %27 = arith.mulf %25, %26 : vector<4x32x32xf32>
    %28 = vector.extract_strided_slice %18 {offsets = [0, 64], sizes = [32, 32], strides = [1, 1]} : vector<32x96xf32> to vector<32x32xf32>
    %29 = vector.shape_cast %28 : vector<32x32xf32> to vector<1x32x32xf32>
    %30 = vector.broadcast %29 : vector<1x32x32xf32> to vector<4x32x32xf32>
    %31 = vector.broadcast %10 : vector<4x1x32xf32> to vector<4x32x32xf32>
    %32 = arith.mulf %30, %31 : vector<4x32x32xf32>
    "tpu.trace_start"() <{level = 10 : i32, message = "hmd,hnd->hmn"}> : () -> ()
    %cst_19 = arith.constant dense<0.000000e+00> : vector<4x32x32xf32>
    %33 = tpu.matmul %22, %27, %cst_19 {dimension_numbers = #tpu.dot_dimension_numbers<[2], [2], [1], [1], [0, 0, 0, 1, 1, 1], [0], [0]>} : vector<4x32x32xf32>, vector<4x32x32xf32>, vector<4x32x32xf32> -> vector<4x32x32xf32>
    "tpu.trace_stop"() : () -> ()
    %cst_20 = arith.constant 0.353553385 : f32
    %34 = vector.broadcast %cst_20 : f32 to vector<4x32x32xf32>
    %35 = arith.mulf %33, %34 : vector<4x32x32xf32>
    %36 = vector.broadcast %9 : vector<1x32x32xf32> to vector<4x32x32xf32>
    %37 = arith.addf %35, %36 : vector<4x32x32xf32>
    %cst_21 = arith.constant dense<0xFF800000> : vector<4x32xf32>
    %38 = vector.multi_reduction <maximumf>, %37, %cst_21 [2] : vector<4x32x32xf32> to vector<4x32xf32>
    %39 = vector.shape_cast %38 : vector<4x32xf32> to vector<4x32x1xf32>
    %40 = vector.broadcast %39 : vector<4x32x1xf32> to vector<4x32x32xf32>
    %41 = arith.subf %37, %40 : vector<4x32x32xf32>
    %42 = math.exp %41 : vector<4x32x32xf32>
    %cst_22 = arith.constant dense<0.000000e+00> : vector<4x32xf32>
    %43 = vector.multi_reduction <add>, %42, %cst_22 [2] : vector<4x32x32xf32> to vector<4x32xf32>
    %44 = vector.shape_cast %43 : vector<4x32xf32> to vector<4x32x1xf32>
    %45 = tpu.reciprocal %44 {approx = true} : vector<4x32x1xf32> -> vector<4x32x1xf32>
    %46 = vector.broadcast %45 : vector<4x32x1xf32> to vector<4x32x32xf32>
    %47 = arith.mulf %42, %46 : vector<4x32x32xf32>
    "tpu.trace_start"() <{level = 10 : i32, message = "hmn,hnd->hmd"}> : () -> ()
    %cst_23 = arith.constant dense<0.000000e+00> : vector<4x32x32xf32>
    %48 = tpu.matmul %47, %32, %cst_23 {dimension_numbers = #tpu.dot_dimension_numbers<[2], [1], [1], [2], [0, 0, 0, 1, 1, 2], [0], [0]>} : vector<4x32x32xf32>, vector<4x32x32xf32>, vector<4x32x32xf32> -> vector<4x32x32xf32>
    "tpu.trace_stop"() : () -> ()
    %49 = vector.extract_strided_slice %48 {offsets = [0, 0, 0], sizes = [1, 32, 32], strides = [1, 1, 1]} : vector<4x32x32xf32> to vector<1x32x32xf32>
    %50 = vector.shape_cast %49 : vector<1x32x32xf32> to vector<32x32xf32>
    %51 = vector.extract_strided_slice %48 {offsets = [1, 0, 0], sizes = [1, 32, 32], strides = [1, 1, 1]} : vector<4x32x32xf32> to vector<1x32x32xf32>
    %52 = vector.shape_cast %51 : vector<1x32x32xf32> to vector<32x32xf32>
    %53 = arith.addf %50, %52 : vector<32x32xf32>
    %54 = vector.extract_strided_slice %48 {offsets = [2, 0, 0], sizes = [1, 32, 32], strides = [1, 1, 1]} : vector<4x32x32xf32> to vector<1x32x32xf32>
    %55 = vector.shape_cast %54 : vector<1x32x32xf32> to vector<32x32xf32>
    %56 = arith.addf %53, %55 : vector<32x32xf32>
    %57 = vector.extract_strided_slice %48 {offsets = [3, 0, 0], sizes = [1, 32, 32], strides = [1, 1, 1]} : vector<4x32x32xf32> to vector<1x32x32xf32>
    %58 = vector.shape_cast %57 : vector<1x32x32xf32> to vector<32x32xf32>
    %59 = arith.addf %56, %58 : vector<32x32xf32>
    %c0_24 = arith.constant 0 : index
    %c0_25 = arith.constant 0 : index
    %c0_26 = arith.constant 0 : index
    %60 = vector.load %arg8[%c0_24, %c0_25, %c0_26] : memref<2x32x32xbf16, #tpu.memory_space<vmem>>, vector<1x32x32xbf16>
    %61 = vector.shape_cast %60 : vector<1x32x32xbf16> to vector<32x32xbf16>
    %62 = arith.truncf %59 : vector<32x32xf32> to vector<32x32xbf16>
    %cst_27 = arith.constant dense<0.000000e+00> : vector<32x32xf32>
    %63 = tpu.matmul %62, %61, %cst_27 {dimension_numbers = #tpu.dot_dimension_numbers<[1], [1], [0], [0], [0, 0, 1, 0], [], []>} : vector<32x32xbf16>, vector<32x32xbf16>, vector<32x32xf32> -> vector<32x32xf32>
    %c0_28 = arith.constant 0 : index
    %c0_29 = arith.constant 0 : index
    %c0_30 = arith.constant 0 : index
    %64 = vector.load %arg9[%c0_28, %c0_29, %c0_30] : memref<2x1x32xf32, #tpu.memory_space<vmem>>, vector<1x1x32xf32>
    %65 = vector.shape_cast %64 : vector<1x1x32xf32> to vector<1x32xf32>
    %66 = vector.broadcast %65 : vector<1x32xf32> to vector<32x32xf32>
    %67 = arith.addf %63, %66 : vector<32x32xf32>
    %68 = arith.addf %3, %67 : vector<32x32xf32>
    %c0_31 = arith.constant 0 : index
    %c0_32 = arith.constant 0 : index
    %c0_33 = arith.constant 0 : index
    %69 = vector.load %arg14[%c0_31, %c0_32, %c0_33] : memref<2x1x32xf32, #tpu.memory_space<vmem>>, vector<1x1x32xf32>
    %70 = vector.shape_cast %69 : vector<1x1x32xf32> to vector<1x32xf32>
    %c0_34 = arith.constant 0 : index
    %c0_35 = arith.constant 0 : index
    %c0_36 = arith.constant 0 : index
    %71 = vector.load %arg15[%c0_34, %c0_35, %c0_36] : memref<2x1x32xf32, #tpu.memory_space<vmem>>, vector<1x1x32xf32>
    %72 = vector.shape_cast %71 : vector<1x1x32xf32> to vector<1x32xf32>
    %cst_37 = arith.constant dense<0.000000e+00> : vector<32xf32>
    %73 = vector.multi_reduction <add>, %68, %cst_37 [1] : vector<32x32xf32> to vector<32xf32>
    %74 = vector.shape_cast %73 : vector<32xf32> to vector<32x1xf32>
    %cst_38 = arith.constant 3.200000e+01 : f32
    %75 = vector.broadcast %cst_38 : f32 to vector<32x1xf32>
    %76 = arith.divf %74, %75 : vector<32x1xf32>
    %77 = vector.broadcast %76 : vector<32x1xf32> to vector<32x32xf32>
    %78 = arith.subf %68, %77 : vector<32x32xf32>
    %79 = arith.mulf %78, %78 : vector<32x32xf32>
    %cst_39 = arith.constant dense<0.000000e+00> : vector<32xf32>
    %80 = vector.multi_reduction <add>, %79, %cst_39 [1] : vector<32x32xf32> to vector<32xf32>
    %81 = vector.shape_cast %80 : vector<32xf32> to vector<32x1xf32>
    %cst_40 = arith.constant 3.200000e+01 : f32
    %82 = vector.broadcast %cst_40 : f32 to vector<32x1xf32>
    %83 = arith.divf %81, %82 : vector<32x1xf32>
    %84 = vector.broadcast %76 : vector<32x1xf32> to vector<32x32xf32>
    %85 = arith.subf %68, %84 : vector<32x32xf32>
    %cst_41 = arith.constant 9.99999974E-6 : f32
    %86 = vector.broadcast %cst_41 : f32 to vector<32x1xf32>
    %87 = arith.addf %83, %86 : vector<32x1xf32>
    %88 = math.rsqrt %87 : vector<32x1xf32>
    %89 = vector.broadcast %88 : vector<32x1xf32> to vector<32x32xf32>
    %90 = arith.mulf %85, %89 : vector<32x32xf32>
    %91 = vector.broadcast %70 : vector<1x32xf32> to vector<32x32xf32>
    %92 = arith.mulf %90, %91 : vector<32x32xf32>
    %93 = vector.broadcast %72 : vector<1x32xf32> to vector<32x32xf32>
    %94 = arith.addf %92, %93 : vector<32x32xf32>
    %c0_42 = arith.constant 0 : index
    %c0_43 = arith.constant 0 : index
    %c0_44 = arith.constant 0 : index
    %95 = vector.load %arg10[%c0_42, %c0_43, %c0_44] : memref<2x64x32xbf16, #tpu.memory_space<vmem>>, vector<1x64x32xbf16>
    %96 = vector.shape_cast %95 : vector<1x64x32xbf16> to vector<64x32xbf16>
    %97 = arith.truncf %94 : vector<32x32xf32> to vector<32x32xbf16>
    %cst_45 = arith.constant dense<0.000000e+00> : vector<32x64xf32>
    %98 = tpu.matmul %97, %96, %cst_45 {dimension_numbers = #tpu.dot_dimension_numbers<[1], [1], [0], [0], [0, 0, 1, 0], [], []>} : vector<32x32xbf16>, vector<64x32xbf16>, vector<32x64xf32> -> vector<32x64xf32>
    %c0_46 = arith.constant 0 : index
    %c0_47 = arith.constant 0 : index
    %c0_48 = arith.constant 0 : index
    %99 = vector.load %arg11[%c0_46, %c0_47, %c0_48] : memref<2x1x64xf32, #tpu.memory_space<vmem>>, vector<1x1x64xf32>
    %100 = vector.shape_cast %99 : vector<1x1x64xf32> to vector<1x64xf32>
    %101 = vector.broadcast %100 : vector<1x64xf32> to vector<32x64xf32>
    %102 = arith.addf %98, %101 : vector<32x64xf32>
    %cst_49 = arith.constant 0.000000e+00 : f32
    %103 = vector.broadcast %cst_49 : f32 to vector<32x64xf32>
    %104 = arith.maximumf %102, %103 : vector<32x64xf32>
    %c0_50 = arith.constant 0 : index
    %c0_51 = arith.constant 0 : index
    %c0_52 = arith.constant 0 : index
    %105 = vector.load %arg12[%c0_50, %c0_51, %c0_52] : memref<2x32x64xbf16, #tpu.memory_space<vmem>>, vector<1x32x64xbf16>
    %106 = vector.shape_cast %105 : vector<1x32x64xbf16> to vector<32x64xbf16>
    %107 = arith.truncf %104 : vector<32x64xf32> to vector<32x64xbf16>
    %cst_53 = arith.constant dense<0.000000e+00> : vector<32x32xf32>
    %108 = tpu.matmul %107, %106, %cst_53 {dimension_numbers = #tpu.dot_dimension_numbers<[1], [1], [0], [0], [0, 0, 1, 0], [], []>} : vector<32x64xbf16>, vector<32x64xbf16>, vector<32x32xf32> -> vector<32x32xf32>
    %c0_54 = arith.constant 0 : index
    %c0_55 = arith.constant 0 : index
    %c0_56 = arith.constant 0 : index
    %109 = vector.load %arg13[%c0_54, %c0_55, %c0_56] : memref<2x1x32xf32, #tpu.memory_space<vmem>>, vector<1x1x32xf32>
    %110 = vector.shape_cast %109 : vector<1x1x32xf32> to vector<1x32xf32>
    %111 = vector.broadcast %110 : vector<1x32xf32> to vector<32x32xf32>
    %112 = arith.addf %108, %111 : vector<32x32xf32>
    %113 = arith.addf %94, %112 : vector<32x32xf32>
    %c0_57 = arith.constant 0 : index
    %c0_58 = arith.constant 0 : index
    %c0_59 = arith.constant 0 : index
    %114 = vector.load %arg16[%c0_57, %c0_58, %c0_59] : memref<2x1x32xf32, #tpu.memory_space<vmem>>, vector<1x1x32xf32>
    %115 = vector.shape_cast %114 : vector<1x1x32xf32> to vector<1x32xf32>
    %c0_60 = arith.constant 0 : index
    %c0_61 = arith.constant 0 : index
    %c0_62 = arith.constant 0 : index
    %116 = vector.load %arg17[%c0_60, %c0_61, %c0_62] : memref<2x1x32xf32, #tpu.memory_space<vmem>>, vector<1x1x32xf32>
    %117 = vector.shape_cast %116 : vector<1x1x32xf32> to vector<1x32xf32>
    %cst_63 = arith.constant dense<0.000000e+00> : vector<32xf32>
    %118 = vector.multi_reduction <add>, %113, %cst_63 [1] : vector<32x32xf32> to vector<32xf32>
    %119 = vector.shape_cast %118 : vector<32xf32> to vector<32x1xf32>
    %cst_64 = arith.constant 3.200000e+01 : f32
    %120 = vector.broadcast %cst_64 : f32 to vector<32x1xf32>
    %121 = arith.divf %119, %120 : vector<32x1xf32>
    %122 = vector.broadcast %121 : vector<32x1xf32> to vector<32x32xf32>
    %123 = arith.subf %113, %122 : vector<32x32xf32>
    %124 = arith.mulf %123, %123 : vector<32x32xf32>
    %cst_65 = arith.constant dense<0.000000e+00> : vector<32xf32>
    %125 = vector.multi_reduction <add>, %124, %cst_65 [1] : vector<32x32xf32> to vector<32xf32>
    %126 = vector.shape_cast %125 : vector<32xf32> to vector<32x1xf32>
    %cst_66 = arith.constant 3.200000e+01 : f32
    %127 = vector.broadcast %cst_66 : f32 to vector<32x1xf32>
    %128 = arith.divf %126, %127 : vector<32x1xf32>
    %129 = vector.broadcast %121 : vector<32x1xf32> to vector<32x32xf32>
    %130 = arith.subf %113, %129 : vector<32x32xf32>
    %cst_67 = arith.constant 9.99999974E-6 : f32
    %131 = vector.broadcast %cst_67 : f32 to vector<32x1xf32>
    %132 = arith.addf %128, %131 : vector<32x1xf32>
    %133 = math.rsqrt %132 : vector<32x1xf32>
    %134 = vector.broadcast %133 : vector<32x1xf32> to vector<32x32xf32>
    %135 = arith.mulf %130, %134 : vector<32x32xf32>
    %136 = vector.broadcast %115 : vector<1x32xf32> to vector<32x32xf32>
    %137 = arith.mulf %135, %136 : vector<32x32xf32>
    %138 = vector.broadcast %117 : vector<1x32xf32> to vector<32x32xf32>
    %139 = arith.addf %137, %138 : vector<32x32xf32>
    %c1 = arith.constant 1 : index
    %c0_68 = arith.constant 0 : index
    %c0_69 = arith.constant 0 : index
    %140 = vector.load %arg6[%c1, %c0_68, %c0_69] : memref<2x96x32xbf16, #tpu.memory_space<vmem>>, vector<1x96x32xbf16>
    %141 = vector.shape_cast %140 : vector<1x96x32xbf16> to vector<96x32xbf16>
    %142 = arith.truncf %139 : vector<32x32xf32> to vector<32x32xbf16>
    %cst_70 = arith.constant dense<0.000000e+00> : vector<32x96xf32>
    %143 = tpu.matmul %142, %141, %cst_70 {dimension_numbers = #tpu.dot_dimension_numbers<[1], [1], [0], [0], [0, 0, 1, 0], [], []>} : vector<32x32xbf16>, vector<96x32xbf16>, vector<32x96xf32> -> vector<32x96xf32>
    %c1_71 = arith.constant 1 : index
    %c0_72 = arith.constant 0 : index
    %c0_73 = arith.constant 0 : index
    %144 = vector.load %arg7[%c1_71, %c0_72, %c0_73] : memref<2x1x96xf32, #tpu.memory_space<vmem>>, vector<1x1x96xf32>
    %145 = vector.shape_cast %144 : vector<1x1x96xf32> to vector<1x96xf32>
    %146 = vector.broadcast %145 : vector<1x96xf32> to vector<32x96xf32>
    %147 = arith.addf %143, %146 : vector<32x96xf32>
    %148 = vector.extract_strided_slice %147 {offsets = [0, 0], sizes = [32, 32], strides = [1, 1]} : vector<32x96xf32> to vector<32x32xf32>
    %149 = vector.shape_cast %148 : vector<32x32xf32> to vector<1x32x32xf32>
    %150 = vector.shape_cast %149 : vector<1x32x32xf32> to vector<1x32x32xf32>
    %151 = vector.broadcast %150 : vector<1x32x32xf32> to vector<4x32x32xf32>
    %152 = vector.extract_strided_slice %147 {offsets = [0, 32], sizes = [32, 32], strides = [1, 1]} : vector<32x96xf32> to vector<32x32xf32>
    %153 = vector.shape_cast %152 : vector<32x32xf32> to vector<1x32x32xf32>
    %154 = vector.broadcast %153 : vector<1x32x32xf32> to vector<4x32x32xf32>
    %155 = vector.broadcast %10 : vector<4x1x32xf32> to vector<4x32x32xf32>
    %156 = arith.mulf %154, %155 : vector<4x32x32xf32>
    %157 = vector.extract_strided_slice %147 {offsets = [0, 64], sizes = [32, 32], strides = [1, 1]} : vector<32x96xf32> to vector<32x32xf32>
    %158 = vector.shape_cast %157 : vector<32x32xf32> to vector<1x32x32xf32>
    %159 = vector.broadcast %158 : vector<1x32x32xf32> to vector<4x32x32xf32>
    %160 = vector.broadcast %10 : vector<4x1x32xf32> to vector<4x32x32xf32>
    %161 = arith.mulf %159, %160 : vector<4x32x32xf32>
    "tpu.trace_start"() <{level = 10 : i32, message = "hmd,hnd->hmn"}> : () -> ()
    %cst_74 = arith.constant dense<0.000000e+00> : vector<4x32x32xf32>
    %162 = tpu.matmul %151, %156, %cst_74 {dimension_numbers = #tpu.dot_dimension_numbers<[2], [2], [1], [1], [0, 0, 0, 1, 1, 1], [0], [0]>} : vector<4x32x32xf32>, vector<4x32x32xf32>, vector<4x32x32xf32> -> vector<4x32x32xf32>
    "tpu.trace_stop"() : () -> ()
    %cst_75 = arith.constant 0.353553385 : f32
    %163 = vector.broadcast %cst_75 : f32 to vector<4x32x32xf32>
    %164 = arith.mulf %162, %163 : vector<4x32x32xf32>
    %165 = vector.broadcast %9 : vector<1x32x32xf32> to vector<4x32x32xf32>
    %166 = arith.addf %164, %165 : vector<4x32x32xf32>
    %cst_76 = arith.constant dense<0xFF800000> : vector<4x32xf32>
    %167 = vector.multi_reduction <maximumf>, %166, %cst_76 [2] : vector<4x32x32xf32> to vector<4x32xf32>
    %168 = vector.shape_cast %167 : vector<4x32xf32> to vector<4x32x1xf32>
    %169 = vector.broadcast %168 : vector<4x32x1xf32> to vector<4x32x32xf32>
    %170 = arith.subf %166, %169 : vector<4x32x32xf32>
    %171 = math.exp %170 : vector<4x32x32xf32>
    %cst_77 = arith.constant dense<0.000000e+00> : vector<4x32xf32>
    %172 = vector.multi_reduction <add>, %171, %cst_77 [2] : vector<4x32x32xf32> to vector<4x32xf32>
    %173 = vector.shape_cast %172 : vector<4x32xf32> to vector<4x32x1xf32>
    %174 = tpu.reciprocal %173 {approx = true} : vector<4x32x1xf32> -> vector<4x32x1xf32>
    %175 = vector.broadcast %174 : vector<4x32x1xf32> to vector<4x32x32xf32>
    %176 = arith.mulf %171, %175 : vector<4x32x32xf32>
    "tpu.trace_start"() <{level = 10 : i32, message = "hmn,hnd->hmd"}> : () -> ()
    %cst_78 = arith.constant dense<0.000000e+00> : vector<4x32x32xf32>
    %177 = tpu.matmul %176, %161, %cst_78 {dimension_numbers = #tpu.dot_dimension_numbers<[2], [1], [1], [2], [0, 0, 0, 1, 1, 2], [0], [0]>} : vector<4x32x32xf32>, vector<4x32x32xf32>, vector<4x32x32xf32> -> vector<4x32x32xf32>
    "tpu.trace_stop"() : () -> ()
    %178 = vector.extract_strided_slice %177 {offsets = [0, 0, 0], sizes = [1, 32, 32], strides = [1, 1, 1]} : vector<4x32x32xf32> to vector<1x32x32xf32>
    %179 = vector.shape_cast %178 : vector<1x32x32xf32> to vector<32x32xf32>
    %180 = vector.extract_strided_slice %177 {offsets = [1, 0, 0], sizes = [1, 32, 32], strides = [1, 1, 1]} : vector<4x32x32xf32> to vector<1x32x32xf32>
    %181 = vector.shape_cast %180 : vector<1x32x32xf32> to vector<32x32xf32>
    %182 = arith.addf %179, %181 : vector<32x32xf32>
    %183 = vector.extract_strided_slice %177 {offsets = [2, 0, 0], sizes = [1, 32, 32], strides = [1, 1, 1]} : vector<4x32x32xf32> to vector<1x32x32xf32>
    %184 = vector.shape_cast %183 : vector<1x32x32xf32> to vector<32x32xf32>
    %185 = arith.addf %182, %184 : vector<32x32xf32>
    %186 = vector.extract_strided_slice %177 {offsets = [3, 0, 0], sizes = [1, 32, 32], strides = [1, 1, 1]} : vector<4x32x32xf32> to vector<1x32x32xf32>
    %187 = vector.shape_cast %186 : vector<1x32x32xf32> to vector<32x32xf32>
    %188 = arith.addf %185, %187 : vector<32x32xf32>
    %c1_79 = arith.constant 1 : index
    %c0_80 = arith.constant 0 : index
    %c0_81 = arith.constant 0 : index
    %189 = vector.load %arg8[%c1_79, %c0_80, %c0_81] : memref<2x32x32xbf16, #tpu.memory_space<vmem>>, vector<1x32x32xbf16>
    %190 = vector.shape_cast %189 : vector<1x32x32xbf16> to vector<32x32xbf16>
    %191 = arith.truncf %188 : vector<32x32xf32> to vector<32x32xbf16>
    %cst_82 = arith.constant dense<0.000000e+00> : vector<32x32xf32>
    %192 = tpu.matmul %191, %190, %cst_82 {dimension_numbers = #tpu.dot_dimension_numbers<[1], [1], [0], [0], [0, 0, 1, 0], [], []>} : vector<32x32xbf16>, vector<32x32xbf16>, vector<32x32xf32> -> vector<32x32xf32>
    %c1_83 = arith.constant 1 : index
    %c0_84 = arith.constant 0 : index
    %c0_85 = arith.constant 0 : index
    %193 = vector.load %arg9[%c1_83, %c0_84, %c0_85] : memref<2x1x32xf32, #tpu.memory_space<vmem>>, vector<1x1x32xf32>
    %194 = vector.shape_cast %193 : vector<1x1x32xf32> to vector<1x32xf32>
    %195 = vector.broadcast %194 : vector<1x32xf32> to vector<32x32xf32>
    %196 = arith.addf %192, %195 : vector<32x32xf32>
    %197 = arith.addf %139, %196 : vector<32x32xf32>
    %c1_86 = arith.constant 1 : index
    %c0_87 = arith.constant 0 : index
    %c0_88 = arith.constant 0 : index
    %198 = vector.load %arg14[%c1_86, %c0_87, %c0_88] : memref<2x1x32xf32, #tpu.memory_space<vmem>>, vector<1x1x32xf32>
    %199 = vector.shape_cast %198 : vector<1x1x32xf32> to vector<1x32xf32>
    %c1_89 = arith.constant 1 : index
    %c0_90 = arith.constant 0 : index
    %c0_91 = arith.constant 0 : index
    %200 = vector.load %arg15[%c1_89, %c0_90, %c0_91] : memref<2x1x32xf32, #tpu.memory_space<vmem>>, vector<1x1x32xf32>
    %201 = vector.shape_cast %200 : vector<1x1x32xf32> to vector<1x32xf32>
    %cst_92 = arith.constant dense<0.000000e+00> : vector<32xf32>
    %202 = vector.multi_reduction <add>, %197, %cst_92 [1] : vector<32x32xf32> to vector<32xf32>
    %203 = vector.shape_cast %202 : vector<32xf32> to vector<32x1xf32>
    %cst_93 = arith.constant 3.200000e+01 : f32
    %204 = vector.broadcast %cst_93 : f32 to vector<32x1xf32>
    %205 = arith.divf %203, %204 : vector<32x1xf32>
    %206 = vector.broadcast %205 : vector<32x1xf32> to vector<32x32xf32>
    %207 = arith.subf %197, %206 : vector<32x32xf32>
    %208 = arith.mulf %207, %207 : vector<32x32xf32>
    %cst_94 = arith.constant dense<0.000000e+00> : vector<32xf32>
    %209 = vector.multi_reduction <add>, %208, %cst_94 [1] : vector<32x32xf32> to vector<32xf32>
    %210 = vector.shape_cast %209 : vector<32xf32> to vector<32x1xf32>
    %cst_95 = arith.constant 3.200000e+01 : f32
    %211 = vector.broadcast %cst_95 : f32 to vector<32x1xf32>
    %212 = arith.divf %210, %211 : vector<32x1xf32>
    %213 = vector.broadcast %205 : vector<32x1xf32> to vector<32x32xf32>
    %214 = arith.subf %197, %213 : vector<32x32xf32>
    %cst_96 = arith.constant 9.99999974E-6 : f32
    %215 = vector.broadcast %cst_96 : f32 to vector<32x1xf32>
    %216 = arith.addf %212, %215 : vector<32x1xf32>
    %217 = math.rsqrt %216 : vector<32x1xf32>
    %218 = vector.broadcast %217 : vector<32x1xf32> to vector<32x32xf32>
    %219 = arith.mulf %214, %218 : vector<32x32xf32>
    %220 = vector.broadcast %199 : vector<1x32xf32> to vector<32x32xf32>
    %221 = arith.mulf %219, %220 : vector<32x32xf32>
    %222 = vector.broadcast %201 : vector<1x32xf32> to vector<32x32xf32>
    %223 = arith.addf %221, %222 : vector<32x32xf32>
    %c1_97 = arith.constant 1 : index
    %c0_98 = arith.constant 0 : index
    %c0_99 = arith.constant 0 : index
    %224 = vector.load %arg10[%c1_97, %c0_98, %c0_99] : memref<2x64x32xbf16, #tpu.memory_space<vmem>>, vector<1x64x32xbf16>
    %225 = vector.shape_cast %224 : vector<1x64x32xbf16> to vector<64x32xbf16>
    %226 = arith.truncf %223 : vector<32x32xf32> to vector<32x32xbf16>
    %cst_100 = arith.constant dense<0.000000e+00> : vector<32x64xf32>
    %227 = tpu.matmul %226, %225, %cst_100 {dimension_numbers = #tpu.dot_dimension_numbers<[1], [1], [0], [0], [0, 0, 1, 0], [], []>} : vector<32x32xbf16>, vector<64x32xbf16>, vector<32x64xf32> -> vector<32x64xf32>
    %c1_101 = arith.constant 1 : index
    %c0_102 = arith.constant 0 : index
    %c0_103 = arith.constant 0 : index
    %228 = vector.load %arg11[%c1_101, %c0_102, %c0_103] : memref<2x1x64xf32, #tpu.memory_space<vmem>>, vector<1x1x64xf32>
    %229 = vector.shape_cast %228 : vector<1x1x64xf32> to vector<1x64xf32>
    %230 = vector.broadcast %229 : vector<1x64xf32> to vector<32x64xf32>
    %231 = arith.addf %227, %230 : vector<32x64xf32>
    %cst_104 = arith.constant 0.000000e+00 : f32
    %232 = vector.broadcast %cst_104 : f32 to vector<32x64xf32>
    %233 = arith.maximumf %231, %232 : vector<32x64xf32>
    %c1_105 = arith.constant 1 : index
    %c0_106 = arith.constant 0 : index
    %c0_107 = arith.constant 0 : index
    %234 = vector.load %arg12[%c1_105, %c0_106, %c0_107] : memref<2x32x64xbf16, #tpu.memory_space<vmem>>, vector<1x32x64xbf16>
    %235 = vector.shape_cast %234 : vector<1x32x64xbf16> to vector<32x64xbf16>
    %236 = arith.truncf %233 : vector<32x64xf32> to vector<32x64xbf16>
    %cst_108 = arith.constant dense<0.000000e+00> : vector<32x32xf32>
    %237 = tpu.matmul %236, %235, %cst_108 {dimension_numbers = #tpu.dot_dimension_numbers<[1], [1], [0], [0], [0, 0, 1, 0], [], []>} : vector<32x64xbf16>, vector<32x64xbf16>, vector<32x32xf32> -> vector<32x32xf32>
    %c1_109 = arith.constant 1 : index
    %c0_110 = arith.constant 0 : index
    %c0_111 = arith.constant 0 : index
    %238 = vector.load %arg13[%c1_109, %c0_110, %c0_111] : memref<2x1x32xf32, #tpu.memory_space<vmem>>, vector<1x1x32xf32>
    %239 = vector.shape_cast %238 : vector<1x1x32xf32> to vector<1x32xf32>
    %240 = vector.broadcast %239 : vector<1x32xf32> to vector<32x32xf32>
    %241 = arith.addf %237, %240 : vector<32x32xf32>
    %242 = arith.addf %223, %241 : vector<32x32xf32>
    %c1_112 = arith.constant 1 : index
    %c0_113 = arith.constant 0 : index
    %c0_114 = arith.constant 0 : index
    %243 = vector.load %arg16[%c1_112, %c0_113, %c0_114] : memref<2x1x32xf32, #tpu.memory_space<vmem>>, vector<1x1x32xf32>
    %244 = vector.shape_cast %243 : vector<1x1x32xf32> to vector<1x32xf32>
    %c1_115 = arith.constant 1 : index
    %c0_116 = arith.constant 0 : index
    %c0_117 = arith.constant 0 : index
    %245 = vector.load %arg17[%c1_115, %c0_116, %c0_117] : memref<2x1x32xf32, #tpu.memory_space<vmem>>, vector<1x1x32xf32>
    %246 = vector.shape_cast %245 : vector<1x1x32xf32> to vector<1x32xf32>
    %cst_118 = arith.constant dense<0.000000e+00> : vector<32xf32>
    %247 = vector.multi_reduction <add>, %242, %cst_118 [1] : vector<32x32xf32> to vector<32xf32>
    %248 = vector.shape_cast %247 : vector<32xf32> to vector<32x1xf32>
    %cst_119 = arith.constant 3.200000e+01 : f32
    %249 = vector.broadcast %cst_119 : f32 to vector<32x1xf32>
    %250 = arith.divf %248, %249 : vector<32x1xf32>
    %251 = vector.broadcast %250 : vector<32x1xf32> to vector<32x32xf32>
    %252 = arith.subf %242, %251 : vector<32x32xf32>
    %253 = arith.mulf %252, %252 : vector<32x32xf32>
    %cst_120 = arith.constant dense<0.000000e+00> : vector<32xf32>
    %254 = vector.multi_reduction <add>, %253, %cst_120 [1] : vector<32x32xf32> to vector<32xf32>
    %255 = vector.shape_cast %254 : vector<32xf32> to vector<32x1xf32>
    %cst_121 = arith.constant 3.200000e+01 : f32
    %256 = vector.broadcast %cst_121 : f32 to vector<32x1xf32>
    %257 = arith.divf %255, %256 : vector<32x1xf32>
    %258 = vector.broadcast %250 : vector<32x1xf32> to vector<32x32xf32>
    %259 = arith.subf %242, %258 : vector<32x32xf32>
    %cst_122 = arith.constant 9.99999974E-6 : f32
    %260 = vector.broadcast %cst_122 : f32 to vector<32x1xf32>
    %261 = arith.addf %257, %260 : vector<32x1xf32>
    %262 = math.rsqrt %261 : vector<32x1xf32>
    %263 = vector.broadcast %262 : vector<32x1xf32> to vector<32x32xf32>
    %264 = arith.mulf %259, %263 : vector<32x32xf32>
    %265 = vector.broadcast %244 : vector<1x32xf32> to vector<32x32xf32>
    %266 = arith.mulf %264, %265 : vector<32x32xf32>
    %267 = vector.broadcast %246 : vector<1x32xf32> to vector<32x32xf32>
    %268 = arith.addf %266, %267 : vector<32x32xf32>
    %c0_123 = arith.constant 0 : index
    %c0_124 = arith.constant 0 : index
    %269 = vector.load %arg18[%c0_123, %c0_124] : memref<8x32xbf16, #tpu.memory_space<vmem>>, vector<8x32xbf16>
    %270 = arith.truncf %268 : vector<32x32xf32> to vector<32x32xbf16>
    %cst_125 = arith.constant dense<0.000000e+00> : vector<32x8xf32>
    %271 = tpu.matmul %270, %269, %cst_125 {dimension_numbers = #tpu.dot_dimension_numbers<[1], [1], [0], [0], [0, 0, 1, 0], [], []>} : vector<32x32xbf16>, vector<8x32xbf16>, vector<32x8xf32> -> vector<32x8xf32>
    %c0_126 = arith.constant 0 : index
    %c0_127 = arith.constant 0 : index
    %272 = vector.load %arg19[%c0_126, %c0_127] : memref<1x8xf32, #tpu.memory_space<vmem>>, vector<1x8xf32>
    %273 = vector.broadcast %272 : vector<1x8xf32> to vector<32x8xf32>
    %274 = arith.addf %271, %273 : vector<32x8xf32>
    %275 = vector.shape_cast %274 : vector<32x8xf32> to vector<2x16x8xf32>
    %276 = vector.extract_strided_slice %275 {offsets = [0, 0, 0], sizes = [2, 8, 8], strides = [1, 1, 1]} : vector<2x16x8xf32> to vector<2x8x8xf32>
    %277 = tpu.iota {dimensions = array<i32: 1>} : vector<2x8x8xi32>
    %c4_i32 = arith.constant 4 : i32
    %278 = vector.broadcast %c4_i32 : i32 to vector<2x8x8xi32>
    %279 = arith.cmpi slt, %277, %278 : vector<2x8x8xi32>
    %cst_128 = arith.constant 0.000000e+00 : f32
    %280 = vector.broadcast %cst_128 : f32 to vector<2x8x8xf32>
    %281 = arith.maximumf %276, %280 : vector<2x8x8xf32>
    %282 = vector.broadcast %cst_128 : f32 to vector<2x8x8xf32>
    %283 = arith.subf %276, %282 : vector<2x8x8xf32>
    %284 = arith.cmpf one, %283, %283 : vector<2x8x8xf32>
    %285 = vector.broadcast %cst_128 : f32 to vector<2x8x8xf32>
    %286 = arith.addf %276, %285 : vector<2x8x8xf32>
    %287 = math.absf %283 : vector<2x8x8xf32>
    %cst_129 = arith.constant 0.000000e+00 : f32
    %288 = vector.broadcast %cst_129 : f32 to vector<2x8x8xf32>
    %289 = arith.subf %288, %287 : vector<2x8x8xf32>
    %290 = math.exp %289 : vector<2x8x8xf32>
    %291 = math.log1p %290 : vector<2x8x8xf32>
    %292 = arith.addf %281, %291 : vector<2x8x8xf32>
    %293 = arith.select %284, %286, %292 : vector<2x8x8xi1>, vector<2x8x8xf32>
    %294 = arith.select %279, %276, %293 : vector<2x8x8xi1>, vector<2x8x8xf32>
    %c0_130 = arith.constant 0 : index
    %c0_131 = arith.constant 0 : index
    %c0_132 = arith.constant 0 : index
    %295 = vector.load %arg20[%c0_130, %c0_131, %c0_132] : memref<2x8x8xf32, #tpu.memory_space<vmem>>, vector<2x8x8xf32>
    tpu.vector_store %arg20[%c0_130, %c0_131, %c0_132], %294 {strides = array<i32>} : memref<2x8x8xf32, #tpu.memory_space<vmem>>, vector<2x8x8xf32>,
    return
  }
  func.func @transform_0(%arg0: i32) -> (i32, i32, i32) {
    %c0_i32 = arith.constant 0 : i32
    %c0_i32_0 = arith.constant 0 : i32
    %c0_i32_1 = arith.constant 0 : i32
    return %arg0, %c0_i32, %c0_i32_0 : i32, i32, i32
  }
  func.func @transform_1(%arg0: i32) -> (i32, i32, i32) {
    %c0_i32 = arith.constant 0 : i32
    %c0_i32_0 = arith.constant 0 : i32
    %c0_i32_1 = arith.constant 0 : i32
    return %arg0, %c0_i32, %c0_i32_0 : i32, i32, i32
  }
  func.func @transform_2(%arg0: i32) -> (i32, i32) {
    %c0_i32 = arith.constant 0 : i32
    %c0_i32_0 = arith.constant 0 : i32
    %c0_i32_1 = arith.constant 0 : i32
    return %c0_i32, %c0_i32_0 : i32, i32
  }
  func.func @transform_3(%arg0: i32) -> (i32, i32, i32) {
    %c0_i32 = arith.constant 0 : i32
    %c0_i32_0 = arith.constant 0 : i32
    %c0_i32_1 = arith.constant 0 : i32
    %c0_i32_2 = arith.constant 0 : i32
    return %c0_i32, %c0_i32_0, %c0_i32_1 : i32, i32, i32
  }
  func.func @transform_4(%arg0: i32) -> (i32, i32) {
    %c0_i32 = arith.constant 0 : i32
    %c0_i32_0 = arith.constant 0 : i32
    %c0_i32_1 = arith.constant 0 : i32
    return %c0_i32, %c0_i32_0 : i32, i32
  }
  func.func @transform_5(%arg0: i32) -> (i32, i32, i32) {
    %c0_i32 = arith.constant 0 : i32
    %c0_i32_0 = arith.constant 0 : i32
    %c0_i32_1 = arith.constant 0 : i32
    %c0_i32_2 = arith.constant 0 : i32
    return %c0_i32, %c0_i32_0, %c0_i32_1 : i32, i32, i32
  }
  func.func @transform_6(%arg0: i32) -> (i32, i32, i32) {
    %c0_i32 = arith.constant 0 : i32
    %c0_i32_0 = arith.constant 0 : i32
    %c0_i32_1 = arith.constant 0 : i32
    %c0_i32_2 = arith.constant 0 : i32
    return %c0_i32, %c0_i32_0, %c0_i32_1 : i32, i32, i32
  }
  func.func @transform_7(%arg0: i32) -> (i32, i32, i32) {
    %c0_i32 = arith.constant 0 : i32
    %c0_i32_0 = arith.constant 0 : i32
    %c0_i32_1 = arith.constant 0 : i32
    %c0_i32_2 = arith.constant 0 : i32
    return %c0_i32, %c0_i32_0, %c0_i32_1 : i32, i32, i32
  }
  func.func @transform_8(%arg0: i32) -> (i32, i32, i32) {
    %c0_i32 = arith.constant 0 : i32
    %c0_i32_0 = arith.constant 0 : i32
    %c0_i32_1 = arith.constant 0 : i32
    %c0_i32_2 = arith.constant 0 : i32
    return %c0_i32, %c0_i32_0, %c0_i32_1 : i32, i32, i32
  }
  func.func @transform_9(%arg0: i32) -> (i32, i32, i32) {
    %c0_i32 = arith.constant 0 : i32
    %c0_i32_0 = arith.constant 0 : i32
    %c0_i32_1 = arith.constant 0 : i32
    %c0_i32_2 = arith.constant 0 : i32
    return %c0_i32, %c0_i32_0, %c0_i32_1 : i32, i32, i32
  }
  func.func @transform_10(%arg0: i32) -> (i32, i32, i32) {
    %c0_i32 = arith.constant 0 : i32
    %c0_i32_0 = arith.constant 0 : i32
    %c0_i32_1 = arith.constant 0 : i32
    %c0_i32_2 = arith.constant 0 : i32
    return %c0_i32, %c0_i32_0, %c0_i32_1 : i32, i32, i32
  }
  func.func @transform_11(%arg0: i32) -> (i32, i32, i32) {
    %c0_i32 = arith.constant 0 : i32
    %c0_i32_0 = arith.constant 0 : i32
    %c0_i32_1 = arith.constant 0 : i32
    %c0_i32_2 = arith.constant 0 : i32
    return %c0_i32, %c0_i32_0, %c0_i32_1 : i32, i32, i32
  }
  func.func @transform_12(%arg0: i32) -> (i32, i32, i32) {
    %c0_i32 = arith.constant 0 : i32
    %c0_i32_0 = arith.constant 0 : i32
    %c0_i32_1 = arith.constant 0 : i32
    %c0_i32_2 = arith.constant 0 : i32
    return %c0_i32, %c0_i32_0, %c0_i32_1 : i32, i32, i32
  }
  func.func @transform_13(%arg0: i32) -> (i32, i32, i32) {
    %c0_i32 = arith.constant 0 : i32
    %c0_i32_0 = arith.constant 0 : i32
    %c0_i32_1 = arith.constant 0 : i32
    %c0_i32_2 = arith.constant 0 : i32
    return %c0_i32, %c0_i32_0, %c0_i32_1 : i32, i32, i32
  }
  func.func @transform_14(%arg0: i32) -> (i32, i32, i32) {
    %c0_i32 = arith.constant 0 : i32
    %c0_i32_0 = arith.constant 0 : i32
    %c0_i32_1 = arith.constant 0 : i32
    %c0_i32_2 = arith.constant 0 : i32
    return %c0_i32, %c0_i32_0, %c0_i32_1 : i32, i32, i32
  }
  func.func @transform_15(%arg0: i32) -> (i32, i32, i32) {
    %c0_i32 = arith.constant 0 : i32
    %c0_i32_0 = arith.constant 0 : i32
    %c0_i32_1 = arith.constant 0 : i32
    %c0_i32_2 = arith.constant 0 : i32
    return %c0_i32, %c0_i32_0, %c0_i32_1 : i32, i32, i32
  }
  func.func @transform_16(%arg0: i32) -> (i32, i32, i32) {
    %c0_i32 = arith.constant 0 : i32
    %c0_i32_0 = arith.constant 0 : i32
    %c0_i32_1 = arith.constant 0 : i32
    %c0_i32_2 = arith.constant 0 : i32
    return %c0_i32, %c0_i32_0, %c0_i32_1 : i32, i32, i32
  }
  func.func @transform_17(%arg0: i32) -> (i32, i32) {
    %c0_i32 = arith.constant 0 : i32
    %c0_i32_0 = arith.constant 0 : i32
    %c0_i32_1 = arith.constant 0 : i32
    return %c0_i32, %c0_i32_0 : i32, i32
  }
  func.func @transform_18(%arg0: i32) -> (i32, i32) {
    %c0_i32 = arith.constant 0 : i32
    %c0_i32_0 = arith.constant 0 : i32
    %c0_i32_1 = arith.constant 0 : i32
    return %c0_i32, %c0_i32_0 : i32, i32
  }
  func.func @transform_19(%arg0: i32) -> (i32, i32, i32) {
    %c0_i32 = arith.constant 0 : i32
    %c0_i32_0 = arith.constant 0 : i32
    %c0_i32_1 = arith.constant 0 : i32
    return %arg0, %c0_i32, %c0_i32_0 : i32, i32, i32
  }
}

</mosaic_0001>

<llo_original>
// kernel: tpu_custom_call.1
$region0: #{tpu_custom_call.1}
  #allocation0 [shape = 'u32[]', space=smem, size = 0x4, offset = 0x4, fixed_abs, tag = 'smem constant byte address 0x4 - core index']
  #allocation1 [shape = 'u32[144,128]{1,0:T(1,128)}', space=vmem, size = 0x12000, scoped, tag = 'internal scratch']
  %s0 = inlined_call_operand.vmem [shape: f32[2,16,16], index: 0, kind: input, shape index: {}]
  %s1 = inlined_call_operand.vmem [shape: f32[1,1,32], index: 1, kind: input, shape index: {}]
  %s2 = inlined_call_operand.vmem [shape: f32[32,32], index: 2, kind: input, shape index: {}]
  %s3 = inlined_call_operand.vmem [shape: f32[4,1,32], index: 3, kind: input, shape index: {}]
  %s4 = inlined_call_operand.vmem [shape: f32[16,32], index: 4, kind: input, shape index: {}]
  %s5 = inlined_call_operand.vmem [shape: bf16[2,96,32], index: 5, kind: input, shape index: {}]
  %s6 = inlined_call_operand.vmem [shape: f32[2,1,96], index: 6, kind: input, shape index: {}]
  %s7 = inlined_call_operand.vmem [shape: bf16[2,32,32], index: 7, kind: input, shape index: {}]
  %s8 = inlined_call_operand.vmem [shape: f32[2,1,32], index: 8, kind: input, shape index: {}]
  %s9 = inlined_call_operand.vmem [shape: bf16[2,64,32], index: 9, kind: input, shape index: {}]
  %s10 = inlined_call_operand.vmem [shape: f32[2,1,64], index: 10, kind: input, shape index: {}]
  %s11 = inlined_call_operand.vmem [shape: bf16[2,32,64], index: 11, kind: input, shape index: {}]
  %s12 = inlined_call_operand.vmem [shape: f32[2,1,32], index: 12, kind: input, shape index: {}]
  %s13 = inlined_call_operand.vmem [shape: f32[2,1,32], index: 13, kind: input, shape index: {}]
  %s14 = inlined_call_operand.vmem [shape: f32[2,1,32], index: 14, kind: input, shape index: {}]
  %s15 = inlined_call_operand.vmem [shape: f32[2,1,32], index: 15, kind: input, shape index: {}]
  %s16 = inlined_call_operand.vmem [shape: f32[2,1,32], index: 16, kind: input, shape index: {}]
  %s17 = inlined_call_operand.vmem [shape: bf16[8,32], index: 17, kind: input, shape index: {}]
  %s18 = inlined_call_operand.vmem [shape: f32[1,8], index: 18, kind: input, shape index: {}]
  %s19 = inlined_call_operand.hbm [shape: f32[2,8,8], index: 19, kind: output, shape index: {}]
  %s20 = sld [smem:[#allocation0]]
  $region86: #{tpu_custom_call.1} parent=0
    _
  %s22 = ssub.s32 1, %s20
  %s23 = scalar_select 0, %s22, %s20
  $region1: #{tpu_custom_call.1} parent=0
    #allocation2 [shape = 'u8[8192]{0}', space=vmem, size = 0x2000, scoped, tag = 'output window, operand 0, single buffered']
    #allocation3 [shape = 's32[1]{0}', space=sflag, size = 0x4, scoped, tag = 'scoped memory for tpu_custom_call.1']
    %24 = vsyncpa [#allocation3], 0
    // Predicated region
    $region2: #{tpu_custom_call.1} parent=1 // pred_check
      _
    $region3: #{tpu_custom_call.1} parent=1 // pred_check_branch
      %26 = sbr.rel (0) target = $region5
    $region4: #{tpu_custom_call.1} parent=1 // pred_region
      _
    $region5: #{tpu_custom_call.1} parent=1 // pred_fallthru
      _
    // Predicated region
    $region6: #{tpu_custom_call.1} parent=1 // pred_check
      _
    $region7: #{tpu_custom_call.1} parent=1 // pred_check_branch
      %28 = sbr.rel (0) target = $region9
    $region8: #{tpu_custom_call.1} parent=1 // pred_region
      _
    $region9: #{tpu_custom_call.1} parent=1 // pred_fallthru
      _
    // Predicated region
    $region10: #{tpu_custom_call.1} parent=1 // pred_check
      _
    $region11: #{tpu_custom_call.1} parent=1 // pred_check_branch
      %30 = sbr.rel (0) target = $region13
    $region12: #{tpu_custom_call.1} parent=1 // pred_region
      _
    $region13: #{tpu_custom_call.1} parent=1 // pred_fallthru
      _
    // Predicated region
    $region14: #{tpu_custom_call.1} parent=1 // pred_check
      _
    $region15: #{tpu_custom_call.1} parent=1 // pred_check_branch
      %32 = sbr.rel (0) target = $region17
    $region16: #{tpu_custom_call.1} parent=1 // pred_region
      _
    $region17: #{tpu_custom_call.1} parent=1 // pred_fallthru
      _
    // Predicated region
    $region18: #{tpu_custom_call.1} parent=1 // pred_check
      _
    $region19: #{tpu_custom_call.1} parent=1 // pred_check_branch
      %34 = sbr.rel (0) target = $region21
    $region20: #{tpu_custom_call.1} parent=1 // pred_region
      _
    $region21: #{tpu_custom_call.1} parent=1 // pred_fallthru
      _
    // Predicated region
    $region22: #{tpu_custom_call.1} parent=1 // pred_check
      _
    $region23: #{tpu_custom_call.1} parent=1 // pred_check_branch
      %36 = sbr.rel (0) target = $region25
    $region24: #{tpu_custom_call.1} parent=1 // pred_region
      _
    $region25: #{tpu_custom_call.1} parent=1 // pred_fallthru
      _
    // Predicated region
    $region26: #{tpu_custom_call.1} parent=1 // pred_check
      _
    $region27: #{tpu_custom_call.1} parent=1 // pred_check_branch
      %38 = sbr.rel (0) target = $region29
    $region28: #{tpu_custom_call.1} parent=1 // pred_region
      _
    $region29: #{tpu_custom_call.1} parent=1 // pred_fallthru
      _
    // Predicated region
    $region30: #{tpu_custom_call.1} parent=1 // pred_check
      _
    $region31: #{tpu_custom_call.1} parent=1 // pred_check_branch
      %40 = sbr.rel (0) target = $region33
    $region32: #{tpu_custom_call.1} parent=1 // pred_region
      _
    $region33: #{tpu_custom_call.1} parent=1 // pred_fallthru
      _
    // Predicated region
    $region34: #{tpu_custom_call.1} parent=1 // pred_check
      _
    $region35: #{tpu_custom_call.1} parent=1 // pred_check_branch
      %42 = sbr.rel (0) target = $region37
    $region36: #{tpu_custom_call.1} parent=1 // pred_region
      _
    $region37: #{tpu_custom_call.1} parent=1 // pred_fallthru
      _
    // Predicated region
    $region38: #{tpu_custom_call.1} parent=1 // pred_check
      _
    $region39: #{tpu_custom_call.1} parent=1 // pred_check_branch
      %44 = sbr.rel (0) target = $region41
    $region40: #{tpu_custom_call.1} parent=1 // pred_region
      _
    $region41: #{tpu_custom_call.1} parent=1 // pred_fallthru
      _
    // Predicated region
    $region42: #{tpu_custom_call.1} parent=1 // pred_check
      _
    $region43: #{tpu_custom_call.1} parent=1 // pred_check_branch
      %46 = sbr.rel (0) target = $region45
    $region44: #{tpu_custom_call.1} parent=1 // pred_region
      _
    $region45: #{tpu_custom_call.1} parent=1 // pred_fallthru
      _
    // Predicated region
    $region46: #{tpu_custom_call.1} parent=1 // pred_check
      _
    $region47: #{tpu_custom_call.1} parent=1 // pred_check_branch
      %48 = sbr.rel (0) target = $region49
    $region48: #{tpu_custom_call.1} parent=1 // pred_region
      _
    $region49: #{tpu_custom_call.1} parent=1 // pred_fallthru
      _
    // Predicated region
    $region50: #{tpu_custom_call.1} parent=1 // pred_check
      _
    $region51: #{tpu_custom_call.1} parent=1 // pred_check_branch
      %50 = sbr.rel (0) target = $region53
    $region52: #{tpu_custom_call.1} parent=1 // pred_region
      _
    $region53: #{tpu_custom_call.1} parent=1 // pred_fallthru
      _
    // Predicated region
    $region54: #{tpu_custom_call.1} parent=1 // pred_check
      _
    $region55: #{tpu_custom_call.1} parent=1 // pred_check_branch
      %52 = sbr.rel (0) target = $region57
    $region56: #{tpu_custom_call.1} parent=1 // pred_region
      _
    $region57: #{tpu_custom_call.1} parent=1 // pred_fallthru
      _
    // Predicated region
    $region58: #{tpu_custom_call.1} parent=1 // pred_check
      _
    $region59: #{tpu_custom_call.1} parent=1 // pred_check_branch
      %54 = sbr.rel (0) target = $region61
    $region60: #{tpu_custom_call.1} parent=1 // pred_region
      _
    $region61: #{tpu_custom_call.1} parent=1 // pred_fallthru
      _
    // Predicated region
    $region62: #{tpu_custom_call.1} parent=1 // pred_check
      _
    $region63: #{tpu_custom_call.1} parent=1 // pred_check_branch
      %56 = sbr.rel (0) target = $region65
    $region64: #{tpu_custom_call.1} parent=1 // pred_region
      _
    $region65: #{tpu_custom_call.1} parent=1 // pred_fallthru
      _
    // Predicated region
    $region66: #{tpu_custom_call.1} parent=1 // pred_check
      _
    $region67: #{tpu_custom_call.1} parent=1 // pred_check_branch
      %58 = sbr.rel (0) target = $region69
    $region68: #{tpu_custom_call.1} parent=1 // pred_region
      _
    $region69: #{tpu_custom_call.1} parent=1 // pred_fallthru
      _
    // Predicated region
    $region70: #{tpu_custom_call.1} parent=1 // pred_check
      _
    $region71: #{tpu_custom_call.1} parent=1 // pred_check_branch
      %60 = sbr.rel (0) target = $region73
    $region72: #{tpu_custom_call.1} parent=1 // pred_region
      _
    $region73: #{tpu_custom_call.1} parent=1 // pred_fallthru
      _
    // Predicated region
    $region74: #{tpu_custom_call.1} parent=1 // pred_check
      _
    $region75: #{tpu_custom_call.1} parent=1 // pred_check_branch
      %62 = sbr.rel (0) target = $region77
    $region76: #{tpu_custom_call.1} parent=1 // pred_region
      _
    $region77: #{tpu_custom_call.1} parent=1 // pred_fallthru
      _
    %v64 = vld [vmem:[%s0] sm:$0xff]
    %v65 = vld [vmem:[%s0 + $0x8] sm:$0xff]
    %v66 = vld [vmem:[%s0 + $0x10] sm:$0xff]
    %v67 = vld [vmem:[%s0 + $0x18] sm:$0xff]
    %v68 = vld [vmem:[%s4] sm:$0xff]
    %v69 = vld [vmem:[%s4 + $0x8] sm:$0xff]
    %vm70 = vcmask 130048
    %v72 = vsel %vm70, %v64, 0
    %v75 = vsel %vm70, %v65, 0
    %v78 = vsel %vm70, %v66, 0
    %v81 = vsel %vm70, %v67, 0
    %83 = vmatprep.subr.mxu0 0.0
    %84 = vmatpush1.msra.mxu0 %v68
    %85 = vmatprep.subr.mxu0 0.0
    %86 = vmatpush1.msra.mxu0 %v69
    %87 = vmatprep.subr.mxu0 0.0
    %88 = vmatpush1.msra.mxu0 0.0
    %89 = vmatprep.subr.mxu0 0.0
    %90 = vmatpush1.msra.mxu0 0.0
    %91 = vmatprep.subr.mxu0 0.0
    %92 = vmatpush1.msra.mxu0 0.0
    %93 = vmatprep.subr.mxu0 0.0
    %94 = vmatpush1.msra.mxu0 0.0
    %95 = vmatprep.subr.mxu0 0.0
    %96 = vmatpush1.msra.mxu0 0.0
    %97 = vmatprep.subr.mxu0 0.0
    %98 = vmatpush1.msra.mxu0 0.0
    %99 = vmatprep.subr.mxu0 0.0
    %100 = vmatpush1.msra.mxu0 0.0
    %101 = vmatprep.subr.mxu0 0.0
    %102 = vmatpush1.msra.mxu0 0.0
    %103 = vmatprep.subr.mxu0 0.0
    %104 = vmatpush1.msra.mxu0 0.0
    %105 = vmatprep.subr.mxu0 0.0
    %106 = vmatpush1.msra.mxu0 0.0
    %107 = vmatprep.subr.mxu0 0.0
    %108 = vmatpush1.msra.mxu0 0.0
    %109 = vmatprep.subr.mxu0 0.0
    %110 = vmatpush1.msra.mxu0 0.0
    %111 = vmatprep.subr.mxu0 0.0
    %112 = vmatpush1.msra.mxu0 0.0
    %113 = vmatprep.subr.mxu0 0.0
    %114 = vmatpush1.msra.mxu0 0.0
    %115 = vmatprep.subr.mxu0 0.0
    %116 = vmatpush1.msra.mxu0 0.0
    %117 = vmatprep.subr.mxu0 0.0
    %118 = vmatpush1.msra.mxu0 0.0
    %119 = vmatprep.subr.mxu0 0.0
    %120 = vmatpush1.msra.mxu0 0.0
    %121 = vmatprep.subr.mxu0 0.0
    %122 = vmatpush1.msra.mxu0 0.0
    %123 = vmatprep.subr.mxu0 0.0
    %124 = vmatpush1.msra.mxu0 0.0
    %125 = vmatprep.subr.mxu0 0.0
    %126 = vmatpush1.msra.mxu0 0.0
    %127 = vmatprep.subr.mxu0 0.0
    %128 = vmatpush1.msra.mxu0 0.0
    %129 = vmatprep.subr.mxu0 0.0
    %130 = vmatpush1.msra.mxu0 0.0
    %131 = vmatprep.subr.mxu0 0.0
    %132 = vmatpush1.msra.mxu0 0.0
    %133 = vmatprep.subr.mxu0 0.0
    %134 = vmatpush1.msra.mxu0 0.0
    %135 = vmatprep.subr.mxu0 0.0
    %136 = vmatpush1.msra.mxu0 0.0
    %137 = vmatprep.subr.mxu0 0.0
    %138 = vmatpush1.msra.mxu0 0.0
    %139 = vmatprep.subr.mxu0 0.0
    %140 = vmatpush1.msra.mxu0 0.0
    %141 = vmatprep.subr.mxu0 0.0
    %142 = vmatpush1.msra.mxu0 0.0
    %143 = vmatprep.subr.mxu0 0.0
    %144 = vmatpush1.msra.mxu0 0.0
    %145 = vmatprep.subr.mxu0 0.0
    %146 = vmatpush1.msra.mxu0 0.0
    %147 = vmatprep.mubr.f32.mxu0 0.0
    %148 = vmatmul.mubr.f32.gmra.mrb[0].mxu0 %v72
    %v149 = vpop.f32.mrb[0].mxu0
    %v150 = vadd.f32 0.0, %v149
    %v151 = vpop.f32.mrb[0].mxu0
    %152 = vmatprep.mubr.f32.mxu0 0.0
    %153 = vmatmul.mubr.f32.gmra.mrb[0].mxu0 %v75
    %v154 = vpop.f32.mrb[0].mxu0
    %v155 = vadd.f32 0.0, %v154
    %v156 = vpop.f32.mrb[0].mxu0
    %157 = vmatprep.mubr.f32.mxu0 0.0
    %158 = vmatmul.mubr.f32.gmra.mrb[0].mxu0 %v78
    %v159 = vpop.f32.mrb[0].mxu0
    %v160 = vadd.f32 0.0, %v159
    %v161 = vpop.f32.mrb[0].mxu0
    %162 = vmatprep.mubr.f32.mxu0 0.0
    %163 = vmatmul.mubr.f32.gmra.mrb[0].mxu0 %v81
    %v164 = vpop.f32.mrb[0].mxu0
    %v165 = vadd.f32 0.0, %v164
    %v166 = vpop.f32.mrb[0].mxu0
    %167 = vdwg.mxu0
    %v168 = vld [vmem:[%s2] sm:$0xff]
    %v169 = vld [vmem:[%s2 + $0x8] sm:$0xff]
    %v170 = vld [vmem:[%s2 + $0x10] sm:$0xff]
    %v171 = vld [vmem:[%s2 + $0x18] sm:$0xff]
    %v172 = vld [vmem:[%s1] sm:$0x1]
    %v174 = vlaneseq
    %v175 = vshrl.u32 %v174, 7
    %v176 = vsub.s32 0, %v175
    %v177 = vrot.slane %v172, %v176
    %v179 = vadd.f32 %v168, %v177
    %v180 = vadd.f32 %v169, %v177
    %v181 = vadd.f32 %v170, %v177
    %v182 = vadd.f32 %v171, %v177
    %v183 = vld [vmem:[%s3] sm:$0x1]
    %v184 = vld [vmem:[%s3 + $0x1] sm:$0x1]
    %v185 = vld [vmem:[%s3 + $0x2] sm:$0x1]
    %v186 = vld [vmem:[%s3 + $0x3] sm:$0x1]
    %v187 = vld [vmem:[%s5] sm:$0xf]
    %v188 = vld [vmem:[%s5 + $0x4] sm:$0xf]
    %v189 = vld [vmem:[%s5 + $0x8] sm:$0xf]
    %v190 = vld [vmem:[%s5 + $0xc] sm:$0xf]
    %v191 = vld [vmem:[%s5 + $0x10] sm:$0xf]
    %v192 = vld [vmem:[%s5 + $0x14] sm:$0xf]
    %v193 = vld [vmem:[%s5 + $0x18] sm:$0xf]
    %v194 = vld [vmem:[%s5 + $0x1c] sm:$0xf]
    %v195 = vld [vmem:[%s5 + $0x20] sm:$0xf]
    %v196 = vld [vmem:[%s5 + $0x24] sm:$0xf]
    %v197 = vld [vmem:[%s5 + $0x28] sm:$0xf]
    %v198 = vld [vmem:[%s5 + $0x2c] sm:$0xf]
    %v199 = vpack.c.bf16 %v155, %v150
    %v200 = vpack.c.bf16 %v165, %v160
    %v201 = vld [vmem:[%s6] sm:$0x1]
    %v203 = vlaneseq
    %v204 = vshrl.u32 %v203, 7
    %v205 = vsub.s32 0, %v204
    %v206 = vrot.slane %v201, %v205
    %v220 = vunpack.c.l.b16 %v187
    %v221 = vunpack.c.l.b16 %v188
    %v222 = vunpack.c.l.b16 %v189
    %v223 = vunpack.c.l.b16 %v190
    %v224 = vunpack.c.l.b16 %v191
    %v225 = vunpack.c.l.b16 %v192
    %v226 = vunpack.c.l.b16 %v193
    %v227 = vunpack.c.l.b16 %v194
    %v228 = vunpack.c.l.b16 %v195
    %v229 = vunpack.c.l.b16 %v196
    %v230 = vunpack.c.l.b16 %v197
    %v231 = vunpack.c.l.b16 %v198
    %v232 = vpack.c.b16 %v221, %v220
    %v233 = vpack.c.b16 %v223, %v222
    %v234 = vpack.c.b16 %v225, %v224
    %v235 = vpack.c.b16 %v227, %v226
    %v236 = vpack.c.b16 %v229, %v228
    %v237 = vpack.c.b16 %v231, %v230
    %vm238 = vcmask 261120
    %v240 = vsel %vm238, %v199, 0
    %v243 = vsel %vm238, %v200, 0
    %v246 = vsel %vm238, %v232, 0
    %v249 = vsel %vm238, %v233, 0
    %v252 = vsel %vm238, %v234, 0
    %v255 = vsel %vm238, %v235, 0
    %v258 = vsel %vm238, %v236, 0
    %v261 = vsel %vm238, %v237, 0
    %263 = vmatprep.subr.bf16.mxu0 0
    %264 = vmatpush1.bf16.xpose.msra.mxu0 %v246
    %265 = vmatprep.subr.bf16.mxu0 0
    %266 = vmatpush1.bf16.xpose.msra.mxu0 %v249
    %267 = vmatprep.subr.bf16.mxu0 0
    %268 = vmatpush1.bf16.xpose.msra.mxu0 %v252
    %269 = vmatprep.subr.bf16.mxu0 0
    %270 = vmatpush1.bf16.xpose.msra.mxu0 %v255
    %271 = vmatprep.subr.bf16.mxu0 0
    %272 = vmatpush1.bf16.xpose.msra.mxu0 %v258
    %273 = vmatprep.subr.bf16.mxu0 0
    %274 = vmatpush1.bf16.xpose.msra.mxu0 %v261
    %275 = vmatprep.subr.bf16.mxu0 0
    %276 = vmatpush1.bf16.xpose.msra.mxu0 0
    %277 = vmatprep.subr.bf16.mxu0 0
    %278 = vmatpush1.bf16.xpose.msra.mxu0 0
    %279 = vmatprep.subr.bf16.mxu0 0
    %280 = vmatpush1.bf16.xpose.msra.mxu0 0
    %281 = vmatprep.subr.bf16.mxu0 0
    %282 = vmatpush1.bf16.xpose.msra.mxu0 0
    %283 = vmatprep.subr.bf16.mxu0 0
    %284 = vmatpush1.bf16.xpose.msra.mxu0 0
    %285 = vmatprep.subr.bf16.mxu0 0
    %286 = vmatpush1.bf16.xpose.msra.mxu0 0
    %287 = vmatprep.subr.bf16.mxu0 0
    %288 = vmatpush1.bf16.xpose.msra.mxu0 0
    %289 = vmatprep.subr.bf16.mxu0 0
    %290 = vmatpush1.bf16.xpose.msra.mxu0 0
    %291 = vmatprep.subr.bf16.mxu0 0
    %292 = vmatpush1.bf16.xpose.msra.mxu0 0
    %293 = vmatprep.subr.bf16.mxu0 0
    %294 = vmatpush1.bf16.xpose.msra.mxu0 0
    %295 = vmatprep.mubr.bf16.mxu0 0
    %296 = vmatmul.mubr.bf16.gmra.mrb[0].mxu0 %v240
    %v297 = vpop.f32.mrb[0].mxu0
    %v298 = vadd.f32 %v206, %v297
    %v299 = vpop.f32.mrb[0].mxu0
    %v300 = vpop.f32.mrb[0].mxu0
    %v301 = vadd.f32 %v206, %v300
    %v302 = vpop.f32.mrb[0].mxu0
    %303 = vmatprep.mubr.bf16.mxu0 0
    %304 = vmatmul.mubr.bf16.gmra.mrb[0].mxu0 %v243
    %v305 = vpop.f32.mrb[0].mxu0
    %v306 = vadd.f32 %v206, %v305
    %v307 = vpop.f32.mrb[0].mxu0
    %v308 = vpop.f32.mrb[0].mxu0
    %v309 = vadd.f32 %v206, %v308
    %v310 = vpop.f32.mrb[0].mxu0
    %311 = vdwg.mxu0
    %v316 = vlaneseq
    %v317 = vshrl.u32 %v316, 7
    %v318 = vsub.s32 0, %v317
    %v319 = vrot.slane %v183, %v318
    %v320 = vlaneseq
    %v321 = vshrl.u32 %v320, 7
    %v322 = vsub.s32 0, %v321
    %v323 = vrot.slane %v184, %v322
    %v324 = vlaneseq
    %v325 = vshrl.u32 %v324, 7
    %v326 = vsub.s32 0, %v325
    %v327 = vrot.slane %v185, %v326
    %v328 = vlaneseq
    %v329 = vshrl.u32 %v328, 7
    %v330 = vsub.s32 0, %v329
    %v331 = vrot.slane %v186, %v330
    %332 = vrot.lane.b32.xlu0 %v319, 32
    %v333 = vpop.permute.xlu0 %332
    %334 = vrot.lane.b32.xlu0 %v323, 32
    %v335 = vpop.permute.xlu0 %334
    %336 = vrot.lane.b32.xlu0 %v327, 32
    %v337 = vpop.permute.xlu0 %336
    %338 = vrot.lane.b32.xlu0 %v331, 32
    %v339 = vpop.permute.xlu0 %338
    %v344 = vmul.f32 %v298, %v333
    %v345 = vmul.f32 %v301, %v333
    %v346 = vmul.f32 %v306, %v333
    %v347 = vmul.f32 %v309, %v333
    %v348 = vmul.f32 %v298, %v335
    %v349 = vmul.f32 %v301, %v335
    %v350 = vmul.f32 %v306, %v335
    %v351 = vmul.f32 %v309, %v335
    %v352 = vmul.f32 %v298, %v337
    %v353 = vmul.f32 %v301, %v337
    %v354 = vmul.f32 %v306, %v337
    %v355 = vmul.f32 %v309, %v337
    %v356 = vmul.f32 %v298, %v339
    %v357 = vmul.f32 %v301, %v339
    %v358 = vmul.f32 %v306, %v339
    %v359 = vmul.f32 %v309, %v339
    %360 = vrot.lane.b32.xlu0 %v319, 64
    %v361 = vpop.permute.xlu0 %360
    %362 = vrot.lane.b32.xlu0 %v323, 64
    %v363 = vpop.permute.xlu0 %362
    %364 = vrot.lane.b32.xlu0 %v327, 64
    %v365 = vpop.permute.xlu0 %364
    %366 = vrot.lane.b32.xlu0 %v331, 64
    %v367 = vpop.permute.xlu0 %366
    %v372 = vmul.f32 %v298, %v361
    %v373 = vmul.f32 %v301, %v361
    %v374 = vmul.f32 %v306, %v361
    %v375 = vmul.f32 %v309, %v361
    %v376 = vmul.f32 %v298, %v363
    %v377 = vmul.f32 %v301, %v363
    %v378 = vmul.f32 %v306, %v363
    %v379 = vmul.f32 %v309, %v363
    %v380 = vmul.f32 %v298, %v365
    %v381 = vmul.f32 %v301, %v365
    %v382 = vmul.f32 %v306, %v365
    %v383 = vmul.f32 %v309, %v365
    %v384 = vmul.f32 %v298, %v367
    %v385 = vmul.f32 %v301, %v367
    %v386 = vmul.f32 %v306, %v367
    %v387 = vmul.f32 %v309, %v367
    %392 = vrot.lane.b32.xlu0 %v344, 96
    %v393 = vpop.permute.xlu0 %392
    %394 = vrot.lane.b32.xlu0 %v345, 96
    %v395 = vpop.permute.xlu0 %394
    %396 = vrot.lane.b32.xlu0 %v346, 96
    %v397 = vpop.permute.xlu0 %396
    %398 = vrot.lane.b32.xlu0 %v347, 96
    %v399 = vpop.permute.xlu0 %398
    %v401 = vsel %vm238, %v298, 0
    %v404 = vsel %vm238, %v301, 0
    %v407 = vsel %vm238, %v306, 0
    %v410 = vsel %vm238, %v309, 0
    %v412 = vsel %vm238, %v393, 0
    %v414 = vsel %vm238, %v395, 0
    %v416 = vsel %vm238, %v397, 0
    %v418 = vsel %vm238, %v399, 0
    %420 = vmatprep.subr.mxu0 0.0
    %421 = vmatpush1.xpose.msra.mxu0 %v412
    %422 = vmatprep.subr.mxu0 0.0
    %423 = vmatpush1.xpose.msra.mxu0 %v414
    %424 = vmatprep.subr.mxu0 0.0
    %425 = vmatpush1.xpose.msra.mxu0 %v416
    %426 = vmatprep.subr.mxu0 0.0
    %427 = vmatpush1.xpose.msra.mxu0 %v418
    %428 = vmatprep.subr.mxu0 0.0
    %429 = vmatpush1.xpose.msra.mxu0 0.0
    %430 = vmatprep.subr.mxu0 0.0
    %431 = vmatpush1.xpose.msra.mxu0 0.0
    %432 = vmatprep.subr.mxu0 0.0
    %433 = vmatpush1.xpose.msra.mxu0 0.0
    %434 = vmatprep.subr.mxu0 0.0
    %435 = vmatpush1.xpose.msra.mxu0 0.0
    %436 = vmatprep.subr.mxu0 0.0
    %437 = vmatpush1.xpose.msra.mxu0 0.0
    %438 = vmatprep.subr.mxu0 0.0
    %439 = vmatpush1.xpose.msra.mxu0 0.0
    %440 = vmatprep.subr.mxu0 0.0
    %441 = vmatpush1.xpose.msra.mxu0 0.0
    %442 = vmatprep.subr.mxu0 0.0
    %443 = vmatpush1.xpose.msra.mxu0 0.0
    %444 = vmatprep.subr.mxu0 0.0
    %445 = vmatpush1.xpose.msra.mxu0 0.0
    %446 = vmatprep.subr.mxu0 0.0
    %447 = vmatpush1.xpose.msra.mxu0 0.0
    %448 = vmatprep.subr.mxu0 0.0
    %449 = vmatpush1.xpose.msra.mxu0 0.0
    %450 = vmatprep.subr.mxu0 0.0
    %451 = vmatpush1.xpose.msra.mxu0 0.0
    %452 = vmatprep.subr.mxu0 0.0
    %453 = vmatpush1.xpose.msra.mxu0 0.0
    %454 = vmatprep.subr.mxu0 0.0
    %455 = vmatpush1.xpose.msra.mxu0 0.0
    %456 = vmatprep.subr.mxu0 0.0
    %457 = vmatpush1.xpose.msra.mxu0 0.0
    %458 = vmatprep.subr.mxu0 0.0
    %459 = vmatpush1.xpose.msra.mxu0 0.0
    %460 = vmatprep.subr.mxu0 0.0
    %461 = vmatpush1.xpose.msra.mxu0 0.0
    %462 = vmatprep.subr.mxu0 0.0
    %463 = vmatpush1.xpose.msra.mxu0 0.0
    %464 = vmatprep.subr.mxu0 0.0
    %465 = vmatpush1.xpose.msra.mxu0 0.0
    %466 = vmatprep.subr.mxu0 0.0
    %467 = vmatpush1.xpose.msra.mxu0 0.0
    %468 = vmatprep.subr.mxu0 0.0
    %469 = vmatpush1.xpose.msra.mxu0 0.0
    %470 = vmatprep.subr.mxu0 0.0
    %471 = vmatpush1.xpose.msra.mxu0 0.0
    %472 = vmatprep.subr.mxu0 0.0
    %473 = vmatpush1.xpose.msra.mxu0 0.0
    %474 = vmatprep.subr.mxu0 0.0
    %475 = vmatpush1.xpose.msra.mxu0 0.0
    %476 = vmatprep.subr.mxu0 0.0
    %477 = vmatpush1.xpose.msra.mxu0 0.0
    %478 = vmatprep.subr.mxu0 0.0
    %479 = vmatpush1.xpose.msra.mxu0 0.0
    %480 = vmatprep.subr.mxu0 0.0
    %481 = vmatpush1.xpose.msra.mxu0 0.0
    %482 = vmatprep.subr.mxu0 0.0
    %483 = vmatpush1.xpose.msra.mxu0 0.0
    %484 = vmatprep.mubr.f32.mxu0 0.0
    %485 = vmatmul.mubr.f32.gmra.mrb[0].mxu0 %v401
    %v486 = vpop.f32.mrb[0].mxu0
    %v487 = vadd.f32 0.0, %v486
    %v488 = vpop.f32.mrb[0].mxu0
    %489 = vmatprep.mubr.f32.mxu0 0.0
    %490 = vmatmul.mubr.f32.gmra.mrb[0].mxu0 %v404
    %v491 = vpop.f32.mrb[0].mxu0
    %v492 = vadd.f32 0.0, %v491
    %v493 = vpop.f32.mrb[0].mxu0
    %494 = vmatprep.mubr.f32.mxu0 0.0
    %495 = vmatmul.mubr.f32.gmra.mrb[0].mxu0 %v407
    %v496 = vpop.f32.mrb[0].mxu0
    %v497 = vadd.f32 0.0, %v496
    %v498 = vpop.f32.mrb[0].mxu0
    %499 = vmatprep.mubr.f32.mxu0 0.0
    %500 = vmatmul.mubr.f32.gmra.mrb[0].mxu0 %v410
    %v501 = vpop.f32.mrb[0].mxu0
    %v502 = vadd.f32 0.0, %v501
    %v503 = vpop.f32.mrb[0].mxu0
    %504 = vdwg.mxu0
    %509 = vrot.lane.b32.xlu0 %v348, 96
    %v510 = vpop.permute.xlu0 %509
    %511 = vrot.lane.b32.xlu0 %v349, 96
    %v512 = vpop.permute.xlu0 %511
    %513 = vrot.lane.b32.xlu0 %v350, 96
    %v514 = vpop.permute.xlu0 %513
    %515 = vrot.lane.b32.xlu0 %v351, 96
    %v516 = vpop.permute.xlu0 %515
    %v517 = vsel %vm238, %v510, 0
    %v519 = vsel %vm238, %v512, 0
    %v521 = vsel %vm238, %v514, 0
    %v523 = vsel %vm238, %v516, 0
    %525 = vmatprep.subr.mxu0 0.0
    %526 = vmatpush1.xpose.msra.mxu0 %v517
    %527 = vmatprep.subr.mxu0 0.0
    %528 = vmatpush1.xpose.msra.mxu0 %v519
    %529 = vmatprep.subr.mxu0 0.0
    %530 = vmatpush1.xpose.msra.mxu0 %v521
    %531 = vmatprep.subr.mxu0 0.0
    %532 = vmatpush1.xpose.msra.mxu0 %v523
    %533 = vmatprep.subr.mxu0 0.0
    %534 = vmatpush1.xpose.msra.mxu0 0.0
    %535 = vmatprep.subr.mxu0 0.0
    %536 = vmatpush1.xpose.msra.mxu0 0.0
    %537 = vmatprep.subr.mxu0 0.0
    %538 = vmatpush1.xpose.msra.mxu0 0.0
    %539 = vmatprep.subr.mxu0 0.0
    %540 = vmatpush1.xpose.msra.mxu0 0.0
    %541 = vmatprep.subr.mxu0 0.0
    %542 = vmatpush1.xpose.msra.mxu0 0.0
    %543 = vmatprep.subr.mxu0 0.0
    %544 = vmatpush1.xpose.msra.mxu0 0.0
    %545 = vmatprep.subr.mxu0 0.0
    %546 = vmatpush1.xpose.msra.mxu0 0.0
    %547 = vmatprep.subr.mxu0 0.0
    %548 = vmatpush1.xpose.msra.mxu0 0.0
    %549 = vmatprep.subr.mxu0 0.0
    %550 = vmatpush1.xpose.msra.mxu0 0.0
    %551 = vmatprep.subr.mxu0 0.0
    %552 = vmatpush1.xpose.msra.mxu0 0.0
    %553 = vmatprep.subr.mxu0 0.0
    %554 = vmatpush1.xpose.msra.mxu0 0.0
    %555 = vmatprep.subr.mxu0 0.0
    %556 = vmatpush1.xpose.msra.mxu0 0.0
    %557 = vmatprep.subr.mxu0 0.0
    %558 = vmatpush1.xpose.msra.mxu0 0.0
    %559 = vmatprep.subr.mxu0 0.0
    %560 = vmatpush1.xpose.msra.mxu0 0.0
    %561 = vmatprep.subr.mxu0 0.0
    %562 = vmatpush1.xpose.msra.mxu0 0.0
    %563 = vmatprep.subr.mxu0 0.0
    %564 = vmatpush1.xpose.msra.mxu0 0.0
    %565 = vmatprep.subr.mxu0 0.0
    %566 = vmatpush1.xpose.msra.mxu0 0.0
    %567 = vmatprep.subr.mxu0 0.0
    %568 = vmatpush1.xpose.msra.mxu0 0.0
    %569 = vmatprep.subr.mxu0 0.0
    %570 = vmatpush1.xpose.msra.mxu0 0.0
    %571 = vmatprep.subr.mxu0 0.0
    %572 = vmatpush1.xpose.msra.mxu0 0.0
    %573 = vmatprep.subr.mxu0 0.0
    %574 = vmatpush1.xpose.msra.mxu0 0.0
    %575 = vmatprep.subr.mxu0 0.0
    %576 = vmatpush1.xpose.msra.mxu0 0.0
    %577 = vmatprep.subr.mxu0 0.0
    %578 = vmatpush1.xpose.msra.mxu0 0.0
    %579 = vmatprep.subr.mxu0 0.0
    %580 = vmatpush1.xpose.msra.mxu0 0.0
    %581 = vmatprep.subr.mxu0 0.0
    %582 = vmatpush1.xpose.msra.mxu0 0.0
    %583 = vmatprep.subr.mxu0 0.0
    %584 = vmatpush1.xpose.msra.mxu0 0.0
    %585 = vmatprep.subr.mxu0 0.0
    %586 = vmatpush1.xpose.msra.mxu0 0.0
    %587 = vmatprep.subr.mxu0 0.0
    %588 = vmatpush1.xpose.msra.mxu0 0.0
    %589 = vmatprep.mubr.f32.mxu0 0.0
    %590 = vmatmul.mubr.f32.gmra.mrb[0].mxu0 %v401
    %v591 = vpop.f32.mrb[0].mxu0
    %v592 = vadd.f32 0.0, %v591
    %v593 = vpop.f32.mrb[0].mxu0
    %594 = vmatprep.mubr.f32.mxu0 0.0
    %595 = vmatmul.mubr.f32.gmra.mrb[0].mxu0 %v404
    %v596 = vpop.f32.mrb[0].mxu0
    %v597 = vadd.f32 0.0, %v596
    %v598 = vpop.f32.mrb[0].mxu0
    %599 = vmatprep.mubr.f32.mxu0 0.0
    %600 = vmatmul.mubr.f32.gmra.mrb[0].mxu0 %v407
    %v601 = vpop.f32.mrb[0].mxu0
    %v602 = vadd.f32 0.0, %v601
    %v603 = vpop.f32.mrb[0].mxu0
    %604 = vmatprep.mubr.f32.mxu0 0.0
    %605 = vmatmul.mubr.f32.gmra.mrb[0].mxu0 %v410
    %v606 = vpop.f32.mrb[0].mxu0
    %v607 = vadd.f32 0.0, %v606
    %v608 = vpop.f32.mrb[0].mxu0
    %609 = vdwg.mxu0
    %614 = vrot.lane.b32.xlu0 %v352, 96
    %v615 = vpop.permute.xlu0 %614
    %616 = vrot.lane.b32.xlu0 %v353, 96
    %v617 = vpop.permute.xlu0 %616
    %618 = vrot.lane.b32.xlu0 %v354, 96
    %v619 = vpop.permute.xlu0 %618
    %620 = vrot.lane.b32.xlu0 %v355, 96
    %v621 = vpop.permute.xlu0 %620
    %v622 = vsel %vm238, %v615, 0
    %v624 = vsel %vm238, %v617, 0
    %v626 = vsel %vm238, %v619, 0
    %v628 = vsel %vm238, %v621, 0
    %630 = vmatprep.subr.mxu0 0.0
    %631 = vmatpush1.xpose.msra.mxu0 %v622
    %632 = vmatprep.subr.mxu0 0.0
    %633 = vmatpush1.xpose.msra.mxu0 %v624
    %634 = vmatprep.subr.mxu0 0.0
    %635 = vmatpush1.xpose.msra.mxu0 %v626
    %636 = vmatprep.subr.mxu0 0.0
    %637 = vmatpush1.xpose.msra.mxu0 %v628
    %638 = vmatprep.subr.mxu0 0.0
    %639 = vmatpush1.xpose.msra.mxu0 0.0
    %640 = vmatprep.subr.mxu0 0.0
    %641 = vmatpush1.xpose.msra.mxu0 0.0
    %642 = vmatprep.subr.mxu0 0.0
    %643 = vmatpush1.xpose.msra.mxu0 0.0
    %644 = vmatprep.subr.mxu0 0.0
    %645 = vmatpush1.xpose.msra.mxu0 0.0
    %646 = vmatprep.subr.mxu0 0.0
    %647 = vmatpush1.xpose.msra.mxu0 0.0
    %648 = vmatprep.subr.mxu0 0.0
    %649 = vmatpush1.xpose.msra.mxu0 0.0
    %650 = vmatprep.subr.mxu0 0.0
    %651 = vmatpush1.xpose.msra.mxu0 0.0
    %652 = vmatprep.subr.mxu0 0.0
    %653 = vmatpush1.xpose.msra.mxu0 0.0
    %654 = vmatprep.subr.mxu0 0.0
    %655 = vmatpush1.xpose.msra.mxu0 0.0
    %656 = vmatprep.subr.mxu0 0.0
    %657 = vmatpush1.xpose.msra.mxu0 0.0
    %658 = vmatprep.subr.mxu0 0.0
    %659 = vmatpush1.xpose.msra.mxu0 0.0
    %660 = vmatprep.subr.mxu0 0.0
    %661 = vmatpush1.xpose.msra.mxu0 0.0
    %662 = vmatprep.subr.mxu0 0.0
    %663 = vmatpush1.xpose.msra.mxu0 0.0
    %664 = vmatprep.subr.mxu0 0.0
    %665 = vmatpush1.xpose.msra.mxu0 0.0
    %666 = vmatprep.subr.mxu0 0.0
    %667 = vmatpush1.xpose.msra.mxu0 0.0
    %668 = vmatprep.subr.mxu0 0.0
    %669 = vmatpush1.xpose.msra.mxu0 0.0
    %670 = vmatprep.subr.mxu0 0.0
    %671 = vmatpush1.xpose.msra.mxu0 0.0
    %672 = vmatprep.subr.mxu0 0.0
    %673 = vmatpush1.xpose.msra.mxu0 0.0
    %674 = vmatprep.subr.mxu0 0.0
    %675 = vmatpush1.xpose.msra.mxu0 0.0
    %676 = vmatprep.subr.mxu0 0.0
    %677 = vmatpush1.xpose.msra.mxu0 0.0
    %678 = vmatprep.subr.mxu0 0.0
    %679 = vmatpush1.xpose.msra.mxu0 0.0
    %680 = vmatprep.subr.mxu0 0.0
    %681 = vmatpush1.xpose.msra.mxu0 0.0
    %682 = vmatprep.subr.mxu0 0.0
    %683 = vmatpush1.xpose.msra.mxu0 0.0
    %684 = vmatprep.subr.mxu0 0.0
    %685 = vmatpush1.xpose.msra.mxu0 0.0
    %686 = vmatprep.subr.mxu0 0.0
    %687 = vmatpush1.xpose.msra.mxu0 0.0
    %688 = vmatprep.subr.mxu0 0.0
    %689 = vmatpush1.xpose.msra.mxu0 0.0
    %690 = vmatprep.subr.mxu0 0.0
    %691 = vmatpush1.xpose.msra.mxu0 0.0
    %692 = vmatprep.subr.mxu0 0.0
    %693 = vmatpush1.xpose.msra.mxu0 0.0
    %694 = vmatprep.mubr.f32.mxu0 0.0
    %695 = vmatmul.mubr.f32.gmra.mrb[0].mxu0 %v401
    %v696 = vpop.f32.mrb[0].mxu0
    %v697 = vadd.f32 0.0, %v696
    %v698 = vpop.f32.mrb[0].mxu0
    %699 = vmatprep.mubr.f32.mxu0 0.0
    %700 = vmatmul.mubr.f32.gmra.mrb[0].mxu0 %v404
    %v701 = vpop.f32.mrb[0].mxu0
    %v702 = vadd.f32 0.0, %v701
    %v703 = vpop.f32.mrb[0].mxu0
    %704 = vmatprep.mubr.f32.mxu0 0.0
    %705 = vmatmul.mubr.f32.gmra.mrb[0].mxu0 %v407
    %v706 = vpop.f32.mrb[0].mxu0
    %v707 = vadd.f32 0.0, %v706
    %v708 = vpop.f32.mrb[0].mxu0
    %709 = vmatprep.mubr.f32.mxu0 0.0
    %710 = vmatmul.mubr.f32.gmra.mrb[0].mxu0 %v410
    %v711 = vpop.f32.mrb[0].mxu0
    %v712 = vadd.f32 0.0, %v711
    %v713 = vpop.f32.mrb[0].mxu0
    %714 = vdwg.mxu0
    %719 = vrot.lane.b32.xlu0 %v356, 96
    %v720 = vpop.permute.xlu0 %719
    %721 = vrot.lane.b32.xlu0 %v357, 96
    %v722 = vpop.permute.xlu0 %721
    %723 = vrot.lane.b32.xlu0 %v358, 96
    %v724 = vpop.permute.xlu0 %723
    %725 = vrot.lane.b32.xlu0 %v359, 96
    %v726 = vpop.permute.xlu0 %725
    %v727 = vsel %vm238, %v720, 0
    %v729 = vsel %vm238, %v722, 0
    %v731 = vsel %vm238, %v724, 0
    %v733 = vsel %vm238, %v726, 0
    %735 = vmatprep.subr.mxu0 0.0
    %736 = vmatpush1.xpose.msra.mxu0 %v727
    %737 = vmatprep.subr.mxu0 0.0
    %738 = vmatpush1.xpose.msra.mxu0 %v729
    %739 = vmatprep.subr.mxu0 0.0
    %740 = vmatpush1.xpose.msra.mxu0 %v731
    %741 = vmatprep.subr.mxu0 0.0
    %742 = vmatpush1.xpose.msra.mxu0 %v733
    %743 = vmatprep.subr.mxu0 0.0
    %744 = vmatpush1.xpose.msra.mxu0 0.0
    %745 = vmatprep.subr.mxu0 0.0
    %746 = vmatpush1.xpose.msra.mxu0 0.0
    %747 = vmatprep.subr.mxu0 0.0
    %748 = vmatpush1.xpose.msra.mxu0 0.0
    %749 = vmatprep.subr.mxu0 0.0
    %750 = vmatpush1.xpose.msra.mxu0 0.0
    %751 = vmatprep.subr.mxu0 0.0
    %752 = vmatpush1.xpose.msra.mxu0 0.0
    %753 = vmatprep.subr.mxu0 0.0
    %754 = vmatpush1.xpose.msra.mxu0 0.0
    %755 = vmatprep.subr.mxu0 0.0
    %756 = vmatpush1.xpose.msra.mxu0 0.0
    %757 = vmatprep.subr.mxu0 0.0
    %758 = vmatpush1.xpose.msra.mxu0 0.0
    %759 = vmatprep.subr.mxu0 0.0
    %760 = vmatpush1.xpose.msra.mxu0 0.0
    %761 = vmatprep.subr.mxu0 0.0
    %762 = vmatpush1.xpose.msra.mxu0 0.0
    %763 = vmatprep.subr.mxu0 0.0
    %764 = vmatpush1.xpose.msra.mxu0 0.0
    %765 = vmatprep.subr.mxu0 0.0
    %766 = vmatpush1.xpose.msra.mxu0 0.0
    %767 = vmatprep.subr.mxu0 0.0
    %768 = vmatpush1.xpose.msra.mxu0 0.0
    %769 = vmatprep.subr.mxu0 0.0
    %770 = vmatpush1.xpose.msra.mxu0 0.0
    %771 = vmatprep.subr.mxu0 0.0
    %772 = vmatpush1.xpose.msra.mxu0 0.0
    %773 = vmatprep.subr.mxu0 0.0
    %774 = vmatpush1.xpose.msra.mxu0 0.0
    %775 = vmatprep.subr.mxu0 0.0
    %776 = vmatpush1.xpose.msra.mxu0 0.0
    %777 = vmatprep.subr.mxu0 0.0
    %778 = vmatpush1.xpose.msra.mxu0 0.0
    %779 = vmatprep.subr.mxu0 0.0
    %780 = vmatpush1.xpose.msra.mxu0 0.0
    %781 = vmatprep.subr.mxu0 0.0
    %782 = vmatpush1.xpose.msra.mxu0 0.0
    %783 = vmatprep.subr.mxu0 0.0
    %784 = vmatpush1.xpose.msra.mxu0 0.0
    %785 = vmatprep.subr.mxu0 0.0
    %786 = vmatpush1.xpose.msra.mxu0 0.0
    %787 = vmatprep.subr.mxu0 0.0
    %788 = vmatpush1.xpose.msra.mxu0 0.0
    %789 = vmatprep.subr.mxu0 0.0
    %790 = vmatpush1.xpose.msra.mxu0 0.0
    %791 = vmatprep.subr.mxu0 0.0
    %792 = vmatpush1.xpose.msra.mxu0 0.0
    %793 = vmatprep.subr.mxu0 0.0
    %794 = vmatpush1.xpose.msra.mxu0 0.0
    %795 = vmatprep.subr.mxu0 0.0
    %796 = vmatpush1.xpose.msra.mxu0 0.0
    %797 = vmatprep.subr.mxu0 0.0
    %798 = vmatpush1.xpose.msra.mxu0 0.0
    %799 = vmatprep.mubr.f32.mxu0 0.0
    %800 = vmatmul.mubr.f32.gmra.mrb[0].mxu0 %v401
    %v801 = vpop.f32.mrb[0].mxu0
    %v802 = vadd.f32 0.0, %v801
    %v803 = vpop.f32.mrb[0].mxu0
    %804 = vmatprep.mubr.f32.mxu0 0.0
    %805 = vmatmul.mubr.f32.gmra.mrb[0].mxu0 %v404
    %v806 = vpop.f32.mrb[0].mxu0
    %v807 = vadd.f32 0.0, %v806
    %v808 = vpop.f32.mrb[0].mxu0
    %809 = vmatprep.mubr.f32.mxu0 0.0
    %810 = vmatmul.mubr.f32.gmra.mrb[0].mxu0 %v407
    %v811 = vpop.f32.mrb[0].mxu0
    %v812 = vadd.f32 0.0, %v811
    %v813 = vpop.f32.mrb[0].mxu0
    %814 = vmatprep.mubr.f32.mxu0 0.0
    %815 = vmatmul.mubr.f32.gmra.mrb[0].mxu0 %v410
    %v816 = vpop.f32.mrb[0].mxu0
    %v817 = vadd.f32 0.0, %v816
    %v818 = vpop.f32.mrb[0].mxu0
    %819 = vdwg.mxu0
    %v820 = vmul.f32 %v487, 0.35355338
    %v821 = vmul.f32 %v492, 0.35355338
    %v822 = vmul.f32 %v497, 0.35355338
    %v823 = vmul.f32 %v502, 0.35355338
    %v824 = vmul.f32 %v592, 0.35355338
    %v825 = vmul.f32 %v597, 0.35355338
    %v826 = vmul.f32 %v602, 0.35355338
    %v827 = vmul.f32 %v607, 0.35355338
    %v828 = vmul.f32 %v697, 0.35355338
    %v829 = vmul.f32 %v702, 0.35355338
    %v830 = vmul.f32 %v707, 0.35355338
    %v831 = vmul.f32 %v712, 0.35355338
    %v832 = vmul.f32 %v802, 0.35355338
    %v833 = vmul.f32 %v807, 0.35355338
    %v834 = vmul.f32 %v812, 0.35355338
    %v835 = vmul.f32 %v817, 0.35355338
    %v836 = vadd.f32 %v820, %v179
    %v837 = vadd.f32 %v821, %v180
    %v838 = vadd.f32 %v822, %v181
    %v839 = vadd.f32 %v823, %v182
    %v840 = vadd.f32 %v824, %v179
    %v841 = vadd.f32 %v825, %v180
    %v842 = vadd.f32 %v826, %v181
    %v843 = vadd.f32 %v827, %v182
    %v844 = vadd.f32 %v828, %v179
    %v845 = vadd.f32 %v829, %v180
    %v846 = vadd.f32 %v830, %v181
    %v847 = vadd.f32 %v831, %v182
    %v848 = vadd.f32 %v832, %v179
    %v849 = vadd.f32 %v833, %v180
    %v850 = vadd.f32 %v834, %v181
    %v851 = vadd.f32 %v835, %v182
    %v852 = vsel %vm238, %v836, -inf
    %853 = vmax.xlane.f32.xlu0 %v852
    %v854 = vpop.xlane.xlu0 %853
    %v855 = vsel %vm238, %v837, -inf
    %856 = vmax.xlane.f32.xlu0 %v855
    %v857 = vpop.xlane.xlu0 %856
    %v858 = vsel %vm238, %v838, -inf
    %859 = vmax.xlane.f32.xlu0 %v858
    %v860 = vpop.xlane.xlu0 %859
    %v861 = vsel %vm238, %v839, -inf
    %862 = vmax.xlane.f32.xlu0 %v861
    %v863 = vpop.xlane.xlu0 %862
    %v864 = vsel %vm238, %v840, -inf
    %865 = vmax.xlane.f32.xlu0 %v864
    %v866 = vpop.xlane.xlu0 %865
    %v867 = vsel %vm238, %v841, -inf
    %868 = vmax.xlane.f32.xlu0 %v867
    %v869 = vpop.xlane.xlu0 %868
    %v870 = vsel %vm238, %v842, -inf
    %871 = vmax.xlane.f32.xlu0 %v870
    %v872 = vpop.xlane.xlu0 %871
    %v873 = vsel %vm238, %v843, -inf
    %874 = vmax.xlane.f32.xlu0 %v873
    %v875 = vpop.xlane.xlu0 %874
    %v876 = vsel %vm238, %v844, -inf
    %877 = vmax.xlane.f32.xlu0 %v876
    %v878 = vpop.xlane.xlu0 %877
    %v879 = vsel %vm238, %v845, -inf
    %880 = vmax.xlane.f32.xlu0 %v879
    %v881 = vpop.xlane.xlu0 %880
    %v882 = vsel %vm238, %v846, -inf
    %883 = vmax.xlane.f32.xlu0 %v882
    %v884 = vpop.xlane.xlu0 %883
    %v885 = vsel %vm238, %v847, -inf
    %886 = vmax.xlane.f32.xlu0 %v885
    %v887 = vpop.xlane.xlu0 %886
    %v888 = vsel %vm238, %v848, -inf
    %889 = vmax.xlane.f32.xlu0 %v888
    %v890 = vpop.xlane.xlu0 %889
    %v891 = vsel %vm238, %v849, -inf
    %892 = vmax.xlane.f32.xlu0 %v891
    %v893 = vpop.xlane.xlu0 %892
    %v894 = vsel %vm238, %v850, -inf
    %895 = vmax.xlane.f32.xlu0 %v894
    %v896 = vpop.xlane.xlu0 %895
    %v897 = vsel %vm238, %v851, -inf
    %898 = vmax.xlane.f32.xlu0 %v897
    %v899 = vpop.xlane.xlu0 %898
    %v900 = vsub.f32 %v836, %v854
    %v901 = vsub.f32 %v837, %v857
    %v902 = vsub.f32 %v838, %v860
    %v903 = vsub.f32 %v839, %v863
    %v904 = vsub.f32 %v840, %v866
    %v905 = vsub.f32 %v841, %v869
    %v906 = vsub.f32 %v842, %v872
    %v907 = vsub.f32 %v843, %v875
    %v908 = vsub.f32 %v844, %v878
    %v909 = vsub.f32 %v845, %v881
    %v910 = vsub.f32 %v846, %v884
    %v911 = vsub.f32 %v847, %v887
    %v912 = vsub.f32 %v848, %v890
    %v913 = vsub.f32 %v849, %v893
    %v914 = vsub.f32 %v850, %v896
    %v915 = vsub.f32 %v851, %v899
    %v916 = vmul.f32 %v900, 1.442695
    %v917 = vpow.pop %v916
    %v918 = vmul.f32 %v901, 1.442695
    %v919 = vpow.pop %v918
    %v920 = vmul.f32 %v902, 1.442695
    %v921 = vpow.pop %v920
    %v922 = vmul.f32 %v903, 1.442695
    %v923 = vpow.pop %v922
    %v924 = vmul.f32 %v904, 1.442695
    %v925 = vpow.pop %v924
    %v926 = vmul.f32 %v905, 1.442695
    %v927 = vpow.pop %v926
    %v928 = vmul.f32 %v906, 1.442695
    %v929 = vpow.pop %v928
    %v930 = vmul.f32 %v907, 1.442695
    %v931 = vpow.pop %v930
    %v932 = vmul.f32 %v908, 1.442695
    %v933 = vpow.pop %v932
    %v934 = vmul.f32 %v909, 1.442695
    %v935 = vpow.pop %v934
    %v936 = vmul.f32 %v910, 1.442695
    %v937 = vpow.pop %v936
    %v938 = vmul.f32 %v911, 1.442695
    %v939 = vpow.pop %v938
    %v940 = vmul.f32 %v912, 1.442695
    %v941 = vpow.pop %v940
    %v942 = vmul.f32 %v913, 1.442695
    %v943 = vpow.pop %v942
    %v944 = vmul.f32 %v914, 1.442695
    %v945 = vpow.pop %v944
    %v946 = vmul.f32 %v915, 1.442695
    %v947 = vpow.pop %v946
    %v948 = vsel %vm238, %v917, 0.0
    %949 = vadd.xlane.f32.xlu0 %v948
    %v950 = vpop.xlane.xlu0 %949
    %v951 = vsel %vm238, %v919, 0.0
    %952 = vadd.xlane.f32.xlu0 %v951
    %v953 = vpop.xlane.xlu0 %952
    %v954 = vsel %vm238, %v921, 0.0
    %955 = vadd.xlane.f32.xlu0 %v954
    %v956 = vpop.xlane.xlu0 %955
    %v957 = vsel %vm238, %v923, 0.0
    %958 = vadd.xlane.f32.xlu0 %v957
    %v959 = vpop.xlane.xlu0 %958
    %v960 = vsel %vm238, %v925, 0.0
    %961 = vadd.xlane.f32.xlu0 %v960
    %v962 = vpop.xlane.xlu0 %961
    %v963 = vsel %vm238, %v927, 0.0
    %964 = vadd.xlane.f32.xlu0 %v963
    %v965 = vpop.xlane.xlu0 %964
    %v966 = vsel %vm238, %v929, 0.0
    %967 = vadd.xlane.f32.xlu0 %v966
    %v968 = vpop.xlane.xlu0 %967
    %v969 = vsel %vm238, %v931, 0.0
    %970 = vadd.xlane.f32.xlu0 %v969
    %v971 = vpop.xlane.xlu0 %970
    %v972 = vsel %vm238, %v933, 0.0
    %973 = vadd.xlane.f32.xlu0 %v972
    %v974 = vpop.xlane.xlu0 %973
    %v975 = vsel %vm238, %v935, 0.0
    %976 = vadd.xlane.f32.xlu0 %v975
    %v977 = vpop.xlane.xlu0 %976
    %v978 = vsel %vm238, %v937, 0.0
    %979 = vadd.xlane.f32.xlu0 %v978
    %v980 = vpop.xlane.xlu0 %979
    %v981 = vsel %vm238, %v939, 0.0
    %982 = vadd.xlane.f32.xlu0 %v981
    %v983 = vpop.xlane.xlu0 %982
    %v984 = vsel %vm238, %v941, 0.0
    %985 = vadd.xlane.f32.xlu0 %v984
    %v986 = vpop.xlane.xlu0 %985
    %v987 = vsel %vm238, %v943, 0.0
    %988 = vadd.xlane.f32.xlu0 %v987
    %v989 = vpop.xlane.xlu0 %988
    %v990 = vsel %vm238, %v945, 0.0
    %991 = vadd.xlane.f32.xlu0 %v990
    %v992 = vpop.xlane.xlu0 %991
    %v993 = vsel %vm238, %v947, 0.0
    %994 = vadd.xlane.f32.xlu0 %v993
    %v995 = vpop.xlane.xlu0 %994
    %v996 = vrcp.pop %v950
    %v997 = vrcp.pop %v953
    %v998 = vrcp.pop %v956
    %v999 = vrcp.pop %v959
    %v1000 = vrcp.pop %v962
    %v1001 = vrcp.pop %v965
    %v1002 = vrcp.pop %v968
    %v1003 = vrcp.pop %v971
    %v1004 = vrcp.pop %v974
    %v1005 = vrcp.pop %v977
    %v1006 = vrcp.pop %v980
    %v1007 = vrcp.pop %v983
    %v1008 = vrcp.pop %v986
    %v1009 = vrcp.pop %v989
    %v1010 = vrcp.pop %v992
    %v1011 = vrcp.pop %v995
    %v1012 = vmul.f32 %v917, %v996
    %v1013 = vmul.f32 %v919, %v997
    %v1014 = vmul.f32 %v921, %v998
    %v1015 = vmul.f32 %v923, %v999
    %v1016 = vmul.f32 %v925, %v1000
    %v1017 = vmul.f32 %v927, %v1001
    %v1018 = vmul.f32 %v929, %v1002
    %v1019 = vmul.f32 %v931, %v1003
    %v1020 = vmul.f32 %v933, %v1004
    %v1021 = vmul.f32 %v935, %v1005
    %v1022 = vmul.f32 %v937, %v1006
    %v1023 = vmul.f32 %v939, %v1007
    %v1024 = vmul.f32 %v941, %v1008
    %v1025 = vmul.f32 %v943, %v1009
    %v1026 = vmul.f32 %v945, %v1010
    %v1027 = vmul.f32 %v947, %v1011
    %1032 = vrot.lane.b32.xlu0 %v372, 64
    %v1033 = vpop.permute.xlu0 %1032
    %1034 = vrot.lane.b32.xlu0 %v373, 64
    %v1035 = vpop.permute.xlu0 %1034
    %1036 = vrot.lane.b32.xlu0 %v374, 64
    %v1037 = vpop.permute.xlu0 %1036
    %1038 = vrot.lane.b32.xlu0 %v375, 64
    %v1039 = vpop.permute.xlu0 %1038
    %v1045 = vsel %vm238, %v1012, 0
    %v1048 = vsel %vm238, %v1013, 0
    %v1051 = vsel %vm238, %v1014, 0
    %v1054 = vsel %vm238, %v1015, 0
    %1056 = vmatprep.subr.mxu0 0.0
    %1057 = vmatpush1.msra.mxu0 %v1033
    %1058 = vmatprep.subr.mxu0 0.0
    %1059 = vmatpush1.msra.mxu0 %v1035
    %1060 = vmatprep.subr.mxu0 0.0
    %1061 = vmatpush1.msra.mxu0 %v1037
    %1062 = vmatprep.subr.mxu0 0.0
    %1063 = vmatpush1.msra.mxu0 %v1039
    %1064 = vmatprep.subr.mxu0 0.0
    %1065 = vmatpush1.msra.mxu0 0.0
    %1066 = vmatprep.subr.mxu0 0.0
    %1067 = vmatpush1.msra.mxu0 0.0
    %1068 = vmatprep.subr.mxu0 0.0
    %1069 = vmatpush1.msra.mxu0 0.0
    %1070 = vmatprep.subr.mxu0 0.0
    %1071 = vmatpush1.msra.mxu0 0.0
    %1072 = vmatprep.subr.mxu0 0.0
    %1073 = vmatpush1.msra.mxu0 0.0
    %1074 = vmatprep.subr.mxu0 0.0
    %1075 = vmatpush1.msra.mxu0 0.0
    %1076 = vmatprep.subr.mxu0 0.0
    %1077 = vmatpush1.msra.mxu0 0.0
    %1078 = vmatprep.subr.mxu0 0.0
    %1079 = vmatpush1.msra.mxu0 0.0
    %1080 = vmatprep.subr.mxu0 0.0
    %1081 = vmatpush1.msra.mxu0 0.0
    %1082 = vmatprep.subr.mxu0 0.0
    %1083 = vmatpush1.msra.mxu0 0.0
    %1084 = vmatprep.subr.mxu0 0.0
    %1085 = vmatpush1.msra.mxu0 0.0
    %1086 = vmatprep.subr.mxu0 0.0
    %1087 = vmatpush1.msra.mxu0 0.0
    %1088 = vmatprep.subr.mxu0 0.0
    %1089 = vmatpush1.msra.mxu0 0.0
    %1090 = vmatprep.subr.mxu0 0.0
    %1091 = vmatpush1.msra.mxu0 0.0
    %1092 = vmatprep.subr.mxu0 0.0
    %1093 = vmatpush1.msra.mxu0 0.0
    %1094 = vmatprep.subr.mxu0 0.0
    %1095 = vmatpush1.msra.mxu0 0.0
    %1096 = vmatprep.subr.mxu0 0.0
    %1097 = vmatpush1.msra.mxu0 0.0
    %1098 = vmatprep.subr.mxu0 0.0
    %1099 = vmatpush1.msra.mxu0 0.0
    %1100 = vmatprep.subr.mxu0 0.0
    %1101 = vmatpush1.msra.mxu0 0.0
    %1102 = vmatprep.subr.mxu0 0.0
    %1103 = vmatpush1.msra.mxu0 0.0
    %1104 = vmatprep.subr.mxu0 0.0
    %1105 = vmatpush1.msra.mxu0 0.0
    %1106 = vmatprep.subr.mxu0 0.0
    %1107 = vmatpush1.msra.mxu0 0.0
    %1108 = vmatprep.subr.mxu0 0.0
    %1109 = vmatpush1.msra.mxu0 0.0
    %1110 = vmatprep.subr.mxu0 0.0
    %1111 = vmatpush1.msra.mxu0 0.0
    %1112 = vmatprep.subr.mxu0 0.0
    %1113 = vmatpush1.msra.mxu0 0.0
    %1114 = vmatprep.subr.mxu0 0.0
    %1115 = vmatpush1.msra.mxu0 0.0
    %1116 = vmatprep.subr.mxu0 0.0
    %1117 = vmatpush1.msra.mxu0 0.0
    %1118 = vmatprep.subr.mxu0 0.0
    %1119 = vmatpush1.msra.mxu0 0.0
    %1120 = vmatprep.mubr.f32.mxu0 0.0
    %1121 = vmatmul.mubr.f32.gmra.mrb[0].mxu0 %v1045
    %v1122 = vpop.f32.mrb[0].mxu0
    %v1123 = vadd.f32 0.0, %v1122
    %v1124 = vpop.f32.mrb[0].mxu0
    %1125 = vmatprep.mubr.f32.mxu0 0.0
    %1126 = vmatmul.mubr.f32.gmra.mrb[0].mxu0 %v1048
    %v1127 = vpop.f32.mrb[0].mxu0
    %v1128 = vadd.f32 0.0, %v1127
    %v1129 = vpop.f32.mrb[0].mxu0
    %1130 = vmatprep.mubr.f32.mxu0 0.0
    %1131 = vmatmul.mubr.f32.gmra.mrb[0].mxu0 %v1051
    %v1132 = vpop.f32.mrb[0].mxu0
    %v1133 = vadd.f32 0.0, %v1132
    %v1134 = vpop.f32.mrb[0].mxu0
    %1135 = vmatprep.mubr.f32.mxu0 0.0
    %1136 = vmatmul.mubr.f32.gmra.mrb[0].mxu0 %v1054
    %v1137 = vpop.f32.mrb[0].mxu0
    %v1138 = vadd.f32 0.0, %v1137
    %v1139 = vpop.f32.mrb[0].mxu0
    %1140 = vdwg.mxu0
    %1145 = vrot.lane.b32.xlu0 %v376, 64
    %v1146 = vpop.permute.xlu0 %1145
    %1147 = vrot.lane.b32.xlu0 %v377, 64
    %v1148 = vpop.permute.xlu0 %1147
    %1149 = vrot.lane.b32.xlu0 %v378, 64
    %v1150 = vpop.permute.xlu0 %1149
    %1151 = vrot.lane.b32.xlu0 %v379, 64
    %v1152 = vpop.permute.xlu0 %1151
    %v1158 = vsel %vm238, %v1016, 0
    %v1161 = vsel %vm238, %v1017, 0
    %v1164 = vsel %vm238, %v1018, 0
    %v1167 = vsel %vm238, %v1019, 0
    %1169 = vmatprep.subr.mxu0 0.0
    %1170 = vmatpush1.msra.mxu0 %v1146
    %1171 = vmatprep.subr.mxu0 0.0
    %1172 = vmatpush1.msra.mxu0 %v1148
    %1173 = vmatprep.subr.mxu0 0.0
    %1174 = vmatpush1.msra.mxu0 %v1150
    %1175 = vmatprep.subr.mxu0 0.0
    %1176 = vmatpush1.msra.mxu0 %v1152
    %1177 = vmatprep.subr.mxu0 0.0
    %1178 = vmatpush1.msra.mxu0 0.0
    %1179 = vmatprep.subr.mxu0 0.0
    %1180 = vmatpush1.msra.mxu0 0.0
    %1181 = vmatprep.subr.mxu0 0.0
    %1182 = vmatpush1.msra.mxu0 0.0
    %1183 = vmatprep.subr.mxu0 0.0
    %1184 = vmatpush1.msra.mxu0 0.0
    %1185 = vmatprep.subr.mxu0 0.0
    %1186 = vmatpush1.msra.mxu0 0.0
    %1187 = vmatprep.subr.mxu0 0.0
    %1188 = vmatpush1.msra.mxu0 0.0
    %1189 = vmatprep.subr.mxu0 0.0
    %1190 = vmatpush1.msra.mxu0 0.0
    %1191 = vmatprep.subr.mxu0 0.0
    %1192 = vmatpush1.msra.mxu0 0.0
    %1193 = vmatprep.subr.mxu0 0.0
    %1194 = vmatpush1.msra.mxu0 0.0
    %1195 = vmatprep.subr.mxu0 0.0
    %1196 = vmatpush1.msra.mxu0 0.0
    %1197 = vmatprep.subr.mxu0 0.0
    %1198 = vmatpush1.msra.mxu0 0.0
    %1199 = vmatprep.subr.mxu0 0.0
    %1200 = vmatpush1.msra.mxu0 0.0
    %1201 = vmatprep.subr.mxu0 0.0
    %1202 = vmatpush1.msra.mxu0 0.0
    %1203 = vmatprep.subr.mxu0 0.0
    %1204 = vmatpush1.msra.mxu0 0.0
    %1205 = vmatprep.subr.mxu0 0.0
    %1206 = vmatpush1.msra.mxu0 0.0
    %1207 = vmatprep.subr.mxu0 0.0
    %1208 = vmatpush1.msra.mxu0 0.0
    %1209 = vmatprep.subr.mxu0 0.0
    %1210 = vmatpush1.msra.mxu0 0.0
    %1211 = vmatprep.subr.mxu0 0.0
    %1212 = vmatpush1.msra.mxu0 0.0
    %1213 = vmatprep.subr.mxu0 0.0
    %1214 = vmatpush1.msra.mxu0 0.0
    %1215 = vmatprep.subr.mxu0 0.0
    %1216 = vmatpush1.msra.mxu0 0.0
    %1217 = vmatprep.subr.mxu0 0.0
    %1218 = vmatpush1.msra.mxu0 0.0
    %1219 = vmatprep.subr.mxu0 0.0
    %1220 = vmatpush1.msra.mxu0 0.0
    %1221 = vmatprep.subr.mxu0 0.0
    %1222 = vmatpush1.msra.mxu0 0.0
    %1223 = vmatprep.subr.mxu0 0.0
    %1224 = vmatpush1.msra.mxu0 0.0
    %1225 = vmatprep.subr.mxu0 0.0
    %1226 = vmatpush1.msra.mxu0 0.0
    %1227 = vmatprep.subr.mxu0 0.0
    %1228 = vmatpush1.msra.mxu0 0.0
    %1229 = vmatprep.subr.mxu0 0.0
    %1230 = vmatpush1.msra.mxu0 0.0
    %1231 = vmatprep.subr.mxu0 0.0
    %1232 = vmatpush1.msra.mxu0 0.0
    %1233 = vmatprep.mubr.f32.mxu0 0.0
    %1234 = vmatmul.mubr.f32.gmra.mrb[0].mxu0 %v1158
    %v1235 = vpop.f32.mrb[0].mxu0
    %v1236 = vadd.f32 0.0, %v1235
    %v1237 = vpop.f32.mrb[0].mxu0
    %1238 = vmatprep.mubr.f32.mxu0 0.0
    %1239 = vmatmul.mubr.f32.gmra.mrb[0].mxu0 %v1161
    %v1240 = vpop.f32.mrb[0].mxu0
    %v1241 = vadd.f32 0.0, %v1240
    %v1242 = vpop.f32.mrb[0].mxu0
    %1243 = vmatprep.mubr.f32.mxu0 0.0
    %1244 = vmatmul.mubr.f32.gmra.mrb[0].mxu0 %v1164
    %v1245 = vpop.f32.mrb[0].mxu0
    %v1246 = vadd.f32 0.0, %v1245
    %v1247 = vpop.f32.mrb[0].mxu0
    %1248 = vmatprep.mubr.f32.mxu0 0.0
    %1249 = vmatmul.mubr.f32.gmra.mrb[0].mxu0 %v1167
    %v1250 = vpop.f32.mrb[0].mxu0
    %v1251 = vadd.f32 0.0, %v1250
    %v1252 = vpop.f32.mrb[0].mxu0
    %1253 = vdwg.mxu0
    %1258 = vrot.lane.b32.xlu0 %v380, 64
    %v1259 = vpop.permute.xlu0 %1258
    %1260 = vrot.lane.b32.xlu0 %v381, 64
    %v1261 = vpop.permute.xlu0 %1260
    %1262 = vrot.lane.b32.xlu0 %v382, 64
    %v1263 = vpop.permute.xlu0 %1262
    %1264 = vrot.lane.b32.xlu0 %v383, 64
    %v1265 = vpop.permute.xlu0 %1264
    %v1271 = vsel %vm238, %v1020, 0
    %v1274 = vsel %vm238, %v1021, 0
    %v1277 = vsel %vm238, %v1022, 0
    %v1280 = vsel %vm238, %v1023, 0
    %1282 = vmatprep.subr.mxu0 0.0
    %1283 = vmatpush1.msra.mxu0 %v1259
    %1284 = vmatprep.subr.mxu0 0.0
    %1285 = vmatpush1.msra.mxu0 %v1261
    %1286 = vmatprep.subr.mxu0 0.0
    %1287 = vmatpush1.msra.mxu0 %v1263
    %1288 = vmatprep.subr.mxu0 0.0
    %1289 = vmatpush1.msra.mxu0 %v1265
    %1290 = vmatprep.subr.mxu0 0.0
    %1291 = vmatpush1.msra.mxu0 0.0
    %1292 = vmatprep.subr.mxu0 0.0
    %1293 = vmatpush1.msra.mxu0 0.0
    %1294 = vmatprep.subr.mxu0 0.0
    %1295 = vmatpush1.msra.mxu0 0.0
    %1296 = vmatprep.subr.mxu0 0.0
    %1297 = vmatpush1.msra.mxu0 0.0
    %1298 = vmatprep.subr.mxu0 0.0
    %1299 = vmatpush1.msra.mxu0 0.0
    %1300 = vmatprep.subr.mxu0 0.0
    %1301 = vmatpush1.msra.mxu0 0.0
    %1302 = vmatprep.subr.mxu0 0.0
    %1303 = vmatpush1.msra.mxu0 0.0
    %1304 = vmatprep.subr.mxu0 0.0
    %1305 = vmatpush1.msra.mxu0 0.0
    %1306 = vmatprep.subr.mxu0 0.0
    %1307 = vmatpush1.msra.mxu0 0.0
    %1308 = vmatprep.subr.mxu0 0.0
    %1309 = vmatpush1.msra.mxu0 0.0
    %1310 = vmatprep.subr.mxu0 0.0
    %1311 = vmatpush1.msra.mxu0 0.0
    %1312 = vmatprep.subr.mxu0 0.0
    %1313 = vmatpush1.msra.mxu0 0.0
    %1314 = vmatprep.subr.mxu0 0.0
    %1315 = vmatpush1.msra.mxu0 0.0
    %1316 = vmatprep.subr.mxu0 0.0
    %1317 = vmatpush1.msra.mxu0 0.0
    %1318 = vmatprep.subr.mxu0 0.0
    %1319 = vmatpush1.msra.mxu0 0.0
    %1320 = vmatprep.subr.mxu0 0.0
    %1321 = vmatpush1.msra.mxu0 0.0
    %1322 = vmatprep.subr.mxu0 0.0
    %1323 = vmatpush1.msra.mxu0 0.0
    %1324 = vmatprep.subr.mxu0 0.0
    %1325 = vmatpush1.msra.mxu0 0.0
    %1326 = vmatprep.subr.mxu0 0.0
    %1327 = vmatpush1.msra.mxu0 0.0
    %1328 = vmatprep.subr.mxu0 0.0
    %1329 = vmatpush1.msra.mxu0 0.0
    %1330 = vmatprep.subr.mxu0 0.0
    %1331 = vmatpush1.msra.mxu0 0.0
    %1332 = vmatprep.subr.mxu0 0.0
    %1333 = vmatpush1.msra.mxu0 0.0
    %1334 = vmatprep.subr.mxu0 0.0
    %1335 = vmatpush1.msra.mxu0 0.0
    %1336 = vmatprep.subr.mxu0 0.0
    %1337 = vmatpush1.msra.mxu0 0.0
    %1338 = vmatprep.subr.mxu0 0.0
    %1339 = vmatpush1.msra.mxu0 0.0
    %1340 = vmatprep.subr.mxu0 0.0
    %1341 = vmatpush1.msra.mxu0 0.0
    %1342 = vmatprep.subr.mxu0 0.0
    %1343 = vmatpush1.msra.mxu0 0.0
    %1344 = vmatprep.subr.mxu0 0.0
    %1345 = vmatpush1.msra.mxu0 0.0
    %1346 = vmatprep.mubr.f32.mxu0 0.0
    %1347 = vmatmul.mubr.f32.gmra.mrb[0].mxu0 %v1271
    %v1348 = vpop.f32.mrb[0].mxu0
    %v1349 = vadd.f32 0.0, %v1348
    %v1350 = vpop.f32.mrb[0].mxu0
    %1351 = vmatprep.mubr.f32.mxu0 0.0
    %1352 = vmatmul.mubr.f32.gmra.mrb[0].mxu0 %v1274
    %v1353 = vpop.f32.mrb[0].mxu0
    %v1354 = vadd.f32 0.0, %v1353
    %v1355 = vpop.f32.mrb[0].mxu0
    %1356 = vmatprep.mubr.f32.mxu0 0.0
    %1357 = vmatmul.mubr.f32.gmra.mrb[0].mxu0 %v1277
    %v1358 = vpop.f32.mrb[0].mxu0
    %v1359 = vadd.f32 0.0, %v1358
    %v1360 = vpop.f32.mrb[0].mxu0
    %1361 = vmatprep.mubr.f32.mxu0 0.0
    %1362 = vmatmul.mubr.f32.gmra.mrb[0].mxu0 %v1280
    %v1363 = vpop.f32.mrb[0].mxu0
    %v1364 = vadd.f32 0.0, %v1363
    %v1365 = vpop.f32.mrb[0].mxu0
    %1366 = vdwg.mxu0
    %1371 = vrot.lane.b32.xlu0 %v384, 64
    %v1372 = vpop.permute.xlu0 %1371
    %1373 = vrot.lane.b32.xlu0 %v385, 64
    %v1374 = vpop.permute.xlu0 %1373
    %1375 = vrot.lane.b32.xlu0 %v386, 64
    %v1376 = vpop.permute.xlu0 %1375
    %1377 = vrot.lane.b32.xlu0 %v387, 64
    %v1378 = vpop.permute.xlu0 %1377
    %v1384 = vsel %vm238, %v1024, 0
    %v1387 = vsel %vm238, %v1025, 0
    %v1390 = vsel %vm238, %v1026, 0
    %v1393 = vsel %vm238, %v1027, 0
    %1395 = vmatprep.subr.mxu0 0.0
    %1396 = vmatpush1.msra.mxu0 %v1372
    %1397 = vmatprep.subr.mxu0 0.0
    %1398 = vmatpush1.msra.mxu0 %v1374
    %1399 = vmatprep.subr.mxu0 0.0
    %1400 = vmatpush1.msra.mxu0 %v1376
    %1401 = vmatprep.subr.mxu0 0.0
    %1402 = vmatpush1.msra.mxu0 %v1378
    %1403 = vmatprep.subr.mxu0 0.0
    %1404 = vmatpush1.msra.mxu0 0.0
    %1405 = vmatprep.subr.mxu0 0.0
    %1406 = vmatpush1.msra.mxu0 0.0
    %1407 = vmatprep.subr.mxu0 0.0
    %1408 = vmatpush1.msra.mxu0 0.0
    %1409 = vmatprep.subr.mxu0 0.0
    %1410 = vmatpush1.msra.mxu0 0.0
    %1411 = vmatprep.subr.mxu0 0.0
    %1412 = vmatpush1.msra.mxu0 0.0
    %1413 = vmatprep.subr.mxu0 0.0
    %1414 = vmatpush1.msra.mxu0 0.0
    %1415 = vmatprep.subr.mxu0 0.0
    %1416 = vmatpush1.msra.mxu0 0.0
    %1417 = vmatprep.subr.mxu0 0.0
    %1418 = vmatpush1.msra.mxu0 0.0
    %1419 = vmatprep.subr.mxu0 0.0
    %1420 = vmatpush1.msra.mxu0 0.0
    %1421 = vmatprep.subr.mxu0 0.0
    %1422 = vmatpush1.msra.mxu0 0.0
    %1423 = vmatprep.subr.mxu0 0.0
    %1424 = vmatpush1.msra.mxu0 0.0
    %1425 = vmatprep.subr.mxu0 0.0
    %1426 = vmatpush1.msra.mxu0 0.0
    %1427 = vmatprep.subr.mxu0 0.0
    %1428 = vmatpush1.msra.mxu0 0.0
    %1429 = vmatprep.subr.mxu0 0.0
    %1430 = vmatpush1.msra.mxu0 0.0
    %1431 = vmatprep.subr.mxu0 0.0
    %1432 = vmatpush1.msra.mxu0 0.0
    %1433 = vmatprep.subr.mxu0 0.0
    %1434 = vmatpush1.msra.mxu0 0.0
    %1435 = vmatprep.subr.mxu0 0.0
    %1436 = vmatpush1.msra.mxu0 0.0
    %1437 = vmatprep.subr.mxu0 0.0
    %1438 = vmatpush1.msra.mxu0 0.0
    %1439 = vmatprep.subr.mxu0 0.0
    %1440 = vmatpush1.msra.mxu0 0.0
    %1441 = vmatprep.subr.mxu0 0.0
    %1442 = vmatpush1.msra.mxu0 0.0
    %1443 = vmatprep.subr.mxu0 0.0
    %1444 = vmatpush1.msra.mxu0 0.0
    %1445 = vmatprep.subr.mxu0 0.0
    %1446 = vmatpush1.msra.mxu0 0.0
    %1447 = vmatprep.subr.mxu0 0.0
    %1448 = vmatpush1.msra.mxu0 0.0
    %1449 = vmatprep.subr.mxu0 0.0
    %1450 = vmatpush1.msra.mxu0 0.0
    %1451 = vmatprep.subr.mxu0 0.0
    %1452 = vmatpush1.msra.mxu0 0.0
    %1453 = vmatprep.subr.mxu0 0.0
    %1454 = vmatpush1.msra.mxu0 0.0
    %1455 = vmatprep.subr.mxu0 0.0
    %1456 = vmatpush1.msra.mxu0 0.0
    %1457 = vmatprep.subr.mxu0 0.0
    %1458 = vmatpush1.msra.mxu0 0.0
    %1459 = vmatprep.mubr.f32.mxu0 0.0
    %1460 = vmatmul.mubr.f32.gmra.mrb[0].mxu0 %v1384
    %v1461 = vpop.f32.mrb[0].mxu0
    %v1462 = vadd.f32 0.0, %v1461
    %v1463 = vpop.f32.mrb[0].mxu0
    %1464 = vmatprep.mubr.f32.mxu0 0.0
    %1465 = vmatmul.mubr.f32.gmra.mrb[0].mxu0 %v1387
    %v1466 = vpop.f32.mrb[0].mxu0
    %v1467 = vadd.f32 0.0, %v1466
    %v1468 = vpop.f32.mrb[0].mxu0
    %1469 = vmatprep.mubr.f32.mxu0 0.0
    %1470 = vmatmul.mubr.f32.gmra.mrb[0].mxu0 %v1390
    %v1471 = vpop.f32.mrb[0].mxu0
    %v1472 = vadd.f32 0.0, %v1471
    %v1473 = vpop.f32.mrb[0].mxu0
    %1474 = vmatprep.mubr.f32.mxu0 0.0
    %1475 = vmatmul.mubr.f32.gmra.mrb[0].mxu0 %v1393
    %v1476 = vpop.f32.mrb[0].mxu0
    %v1477 = vadd.f32 0.0, %v1476
    %v1478 = vpop.f32.mrb[0].mxu0
    %1479 = vdwg.mxu0
    %v1480 = vadd.f32 %v1123, %v1236
    %v1481 = vadd.f32 %v1128, %v1241
    %v1482 = vadd.f32 %v1133, %v1246
    %v1483 = vadd.f32 %v1138, %v1251
    %v1484 = vadd.f32 %v1480, %v1349
    %v1485 = vadd.f32 %v1481, %v1354
    %v1486 = vadd.f32 %v1482, %v1359
    %v1487 = vadd.f32 %v1483, %v1364
    %v1488 = vadd.f32 %v1484, %v1462
    %v1489 = vadd.f32 %v1485, %v1467
    %v1490 = vadd.f32 %v1486, %v1472
    %v1491 = vadd.f32 %v1487, %v1477
    %v1492 = vld [vmem:[%s7] sm:$0xf]
    %v1493 = vld [vmem:[%s7 + $0x4] sm:$0xf]
    %v1494 = vld [vmem:[%s7 + $0x8] sm:$0xf]
    %v1495 = vld [vmem:[%s7 + $0xc] sm:$0xf]
    %v1496 = vpack.c.bf16 %v1489, %v1488
    %v1497 = vpack.c.bf16 %v1491, %v1490
    %v1498 = vld [vmem:[%s8] sm:$0x1]
    %v1500 = vlaneseq
    %v1501 = vshrl.u32 %v1500, 7
    %v1502 = vsub.s32 0, %v1501
    %v1503 = vrot.slane %v1498, %v1502
    %v1509 = vunpack.c.l.b16 %v1492
    %v1510 = vunpack.c.l.b16 %v1493
    %v1511 = vunpack.c.l.b16 %v1494
    %v1512 = vunpack.c.l.b16 %v1495
    %v1513 = vpack.c.b16 %v1510, %v1509
    %v1514 = vpack.c.b16 %v1512, %v1511
    %v1516 = vsel %vm238, %v1496, 0
    %v1519 = vsel %vm238, %v1497, 0
    %v1522 = vsel %vm238, %v1513, 0
    %v1525 = vsel %vm238, %v1514, 0
    %1527 = vmatprep.subr.bf16.mxu0 0
    %1528 = vmatpush1.bf16.xpose.msra.mxu0 %v1522
    %1529 = vmatprep.subr.bf16.mxu0 0
    %1530 = vmatpush1.bf16.xpose.msra.mxu0 %v1525
    %1531 = vmatprep.subr.bf16.mxu0 0
    %1532 = vmatpush1.bf16.xpose.msra.mxu0 0
    %1533 = vmatprep.subr.bf16.mxu0 0
    %1534 = vmatpush1.bf16.xpose.msra.mxu0 0
    %1535 = vmatprep.subr.bf16.mxu0 0
    %1536 = vmatpush1.bf16.xpose.msra.mxu0 0
    %1537 = vmatprep.subr.bf16.mxu0 0
    %1538 = vmatpush1.bf16.xpose.msra.mxu0 0
    %1539 = vmatprep.subr.bf16.mxu0 0
    %1540 = vmatpush1.bf16.xpose.msra.mxu0 0
    %1541 = vmatprep.subr.bf16.mxu0 0
    %1542 = vmatpush1.bf16.xpose.msra.mxu0 0
    %1543 = vmatprep.subr.bf16.mxu0 0
    %1544 = vmatpush1.bf16.xpose.msra.mxu0 0
    %1545 = vmatprep.subr.bf16.mxu0 0
    %1546 = vmatpush1.bf16.xpose.msra.mxu0 0
    %1547 = vmatprep.subr.bf16.mxu0 0
    %1548 = vmatpush1.bf16.xpose.msra.mxu0 0
    %1549 = vmatprep.subr.bf16.mxu0 0
    %1550 = vmatpush1.bf16.xpose.msra.mxu0 0
    %1551 = vmatprep.subr.bf16.mxu0 0
    %1552 = vmatpush1.bf16.xpose.msra.mxu0 0
    %1553 = vmatprep.subr.bf16.mxu0 0
    %1554 = vmatpush1.bf16.xpose.msra.mxu0 0
    %1555 = vmatprep.subr.bf16.mxu0 0
    %1556 = vmatpush1.bf16.xpose.msra.mxu0 0
    %1557 = vmatprep.subr.bf16.mxu0 0
    %1558 = vmatpush1.bf16.xpose.msra.mxu0 0
    %1559 = vmatprep.mubr.bf16.mxu0 0
    %1560 = vmatmul.mubr.bf16.gmra.mrb[0].mxu0 %v1516
    %v1561 = vpop.f32.mrb[0].mxu0
    %v1562 = vadd.f32 %v1503, %v1561
    %v1563 = vpop.f32.mrb[0].mxu0
    %v1564 = vpop.f32.mrb[0].mxu0
    %v1565 = vadd.f32 %v1503, %v1564
    %v1566 = vpop.f32.mrb[0].mxu0
    %1567 = vmatprep.mubr.bf16.mxu0 0
    %1568 = vmatmul.mubr.bf16.gmra.mrb[0].mxu0 %v1519
    %v1569 = vpop.f32.mrb[0].mxu0
    %v1570 = vadd.f32 %v1503, %v1569
    %v1571 = vpop.f32.mrb[0].mxu0
    %v1572 = vpop.f32.mrb[0].mxu0
    %v1573 = vadd.f32 %v1503, %v1572
    %v1574 = vpop.f32.mrb[0].mxu0
    %1575 = vdwg.mxu0
    %v1576 = vadd.f32 %v150, %v1562
    %v1577 = vadd.f32 %v155, %v1565
    %v1578 = vadd.f32 %v160, %v1570
    %v1579 = vadd.f32 %v165, %v1573
    %v1580 = vld [vmem:[%s13] sm:$0x1]
    %v1581 = vld [vmem:[%s14] sm:$0x1]
    %v1582 = vsel %vm238, %v1576, 0.0
    %1583 = vadd.xlane.f32.xlu0 %v1582
    %v1584 = vpop.xlane.xlu0 %1583
    %v1585 = vsel %vm238, %v1577, 0.0
    %1586 = vadd.xlane.f32.xlu0 %v1585
    %v1587 = vpop.xlane.xlu0 %1586
    %v1588 = vsel %vm238, %v1578, 0.0
    %1589 = vadd.xlane.f32.xlu0 %v1588
    %v1590 = vpop.xlane.xlu0 %1589
    %v1591 = vsel %vm238, %v1579, 0.0
    %1592 = vadd.xlane.f32.xlu0 %v1591
    %v1593 = vpop.xlane.xlu0 %1592
    %v1594 = vrcp.pop 32.0
    %v1595 = vmul.f32 %v1584, %v1594
    %v1596 = vmul.f32 %v1587, %v1594
    %v1597 = vmul.f32 %v1590, %v1594
    %v1598 = vmul.f32 %v1593, %v1594
    %v1599 = vsub.f32 %v1576, %v1595
    %v1600 = vsub.f32 %v1577, %v1596
    %v1601 = vsub.f32 %v1578, %v1597
    %v1602 = vsub.f32 %v1579, %v1598
    %v1603 = vmul.f32 %v1599, %v1599
    %v1604 = vmul.f32 %v1600, %v1600
    %v1605 = vmul.f32 %v1601, %v1601
    %v1606 = vmul.f32 %v1602, %v1602
    %v1607 = vsel %vm238, %v1603, 0.0
    %1608 = vadd.xlane.f32.xlu0 %v1607
    %v1609 = vpop.xlane.xlu0 %1608
    %v1610 = vsel %vm238, %v1604, 0.0
    %1611 = vadd.xlane.f32.xlu0 %v1610
    %v1612 = vpop.xlane.xlu0 %1611
    %v1613 = vsel %vm238, %v1605, 0.0
    %1614 = vadd.xlane.f32.xlu0 %v1613
    %v1615 = vpop.xlane.xlu0 %1614
    %v1616 = vsel %vm238, %v1606, 0.0
    %1617 = vadd.xlane.f32.xlu0 %v1616
    %v1618 = vpop.xlane.xlu0 %1617
    %v1619 = vmul.f32 %v1609, %v1594
    %v1620 = vmul.f32 %v1612, %v1594
    %v1621 = vmul.f32 %v1615, %v1594
    %v1622 = vmul.f32 %v1618, %v1594
    %v1623 = vadd.f32 %v1619, 1e-05
    %v1624 = vadd.f32 %v1620, 1e-05
    %v1625 = vadd.f32 %v1621, 1e-05
    %v1626 = vadd.f32 %v1622, 1e-05
    %v1627 = vrsqrt.pop %v1623
    %v1628 = vrsqrt.pop %v1624
    %v1629 = vrsqrt.pop %v1625
    %v1630 = vrsqrt.pop %v1626
    %v1631 = vmul.f32 %v1599, %v1627
    %v1632 = vmul.f32 %v1600, %v1628
    %v1633 = vmul.f32 %v1601, %v1629
    %v1634 = vmul.f32 %v1602, %v1630
    %v1636 = vlaneseq
    %v1637 = vshrl.u32 %v1636, 7
    %v1638 = vsub.s32 0, %v1637
    %v1639 = vrot.slane %v1580, %v1638
    %v1641 = vmul.f32 %v1631, %v1639
    %v1642 = vmul.f32 %v1632, %v1639
    %v1643 = vmul.f32 %v1633, %v1639
    %v1644 = vmul.f32 %v1634, %v1639
    %v1646 = vlaneseq
    %v1647 = vshrl.u32 %v1646, 7
    %v1648 = vsub.s32 0, %v1647
    %v1649 = vrot.slane %v1581, %v1648
    %v1651 = vadd.f32 %v1641, %v1649
    %v1652 = vadd.f32 %v1642, %v1649
    %v1653 = vadd.f32 %v1643, %v1649
    %v1654 = vadd.f32 %v1644, %v1649
    %v1655 = vld [vmem:[%s9] sm:$0xf]
    %v1656 = vld [vmem:[%s9 + $0x4] sm:$0xf]
    %v1657 = vld [vmem:[%s9 + $0x8] sm:$0xf]
    %v1658 = vld [vmem:[%s9 + $0xc] sm:$0xf]
    %v1659 = vld [vmem:[%s9 + $0x10] sm:$0xf]
    %v1660 = vld [vmem:[%s9 + $0x14] sm:$0xf]
    %v1661 = vld [vmem:[%s9 + $0x18] sm:$0xf]
    %v1662 = vld [vmem:[%s9 + $0x1c] sm:$0xf]
    %v1663 = vpack.c.bf16 %v1652, %v1651
    %v1664 = vpack.c.bf16 %v1654, %v1653
    %v1665 = vld [vmem:[%s10] sm:$0x1]
    %v1667 = vlaneseq
    %v1668 = vshrl.u32 %v1667, 7
    %v1669 = vsub.s32 0, %v1668
    %v1670 = vrot.slane %v1665, %v1669
    %v1680 = vunpack.c.l.b16 %v1655
    %v1681 = vunpack.c.l.b16 %v1656
    %v1682 = vunpack.c.l.b16 %v1657
    %v1683 = vunpack.c.l.b16 %v1658
    %v1684 = vunpack.c.l.b16 %v1659
    %v1685 = vunpack.c.l.b16 %v1660
    %v1686 = vunpack.c.l.b16 %v1661
    %v1687 = vunpack.c.l.b16 %v1662
    %v1688 = vpack.c.b16 %v1681, %v1680
    %v1689 = vpack.c.b16 %v1683, %v1682
    %v1690 = vpack.c.b16 %v1685, %v1684
    %v1691 = vpack.c.b16 %v1687, %v1686
    %v1693 = vsel %vm238, %v1663, 0
    %v1696 = vsel %vm238, %v1664, 0
    %v1699 = vsel %vm238, %v1688, 0
    %v1702 = vsel %vm238, %v1689, 0
    %v1705 = vsel %vm238, %v1690, 0
    %v1708 = vsel %vm238, %v1691, 0
    %1710 = vmatprep.subr.bf16.mxu0 0
    %1711 = vmatpush1.bf16.xpose.msra.mxu0 %v1699
    %1712 = vmatprep.subr.bf16.mxu0 0
    %1713 = vmatpush1.bf16.xpose.msra.mxu0 %v1702
    %1714 = vmatprep.subr.bf16.mxu0 0
    %1715 = vmatpush1.bf16.xpose.msra.mxu0 %v1705
    %1716 = vmatprep.subr.bf16.mxu0 0
    %1717 = vmatpush1.bf16.xpose.msra.mxu0 %v1708
    %1718 = vmatprep.subr.bf16.mxu0 0
    %1719 = vmatpush1.bf16.xpose.msra.mxu0 0
    %1720 = vmatprep.subr.bf16.mxu0 0
    %1721 = vmatpush1.bf16.xpose.msra.mxu0 0
    %1722 = vmatprep.subr.bf16.mxu0 0
    %1723 = vmatpush1.bf16.xpose.msra.mxu0 0
    %1724 = vmatprep.subr.bf16.mxu0 0
    %1725 = vmatpush1.bf16.xpose.msra.mxu0 0
    %1726 = vmatprep.subr.bf16.mxu0 0
    %1727 = vmatpush1.bf16.xpose.msra.mxu0 0
    %1728 = vmatprep.subr.bf16.mxu0 0
    %1729 = vmatpush1.bf16.xpose.msra.mxu0 0
    %1730 = vmatprep.subr.bf16.mxu0 0
    %1731 = vmatpush1.bf16.xpose.msra.mxu0 0
    %1732 = vmatprep.subr.bf16.mxu0 0
    %1733 = vmatpush1.bf16.xpose.msra.mxu0 0
    %1734 = vmatprep.subr.bf16.mxu0 0
    %1735 = vmatpush1.bf16.xpose.msra.mxu0 0
    %1736 = vmatprep.subr.bf16.mxu0 0
    %1737 = vmatpush1.bf16.xpose.msra.mxu0 0
    %1738 = vmatprep.subr.bf16.mxu0 0
    %1739 = vmatpush1.bf16.xpose.msra.mxu0 0
    %1740 = vmatprep.subr.bf16.mxu0 0
    %1741 = vmatpush1.bf16.xpose.msra.mxu0 0
    %1742 = vmatprep.mubr.bf16.mxu0 0
    %1743 = vmatmul.mubr.bf16.gmra.mrb[0].mxu0 %v1693
    %v1744 = vpop.f32.mrb[0].mxu0
    %v1745 = vadd.f32 %v1670, %v1744
    %v1746 = vpop.f32.mrb[0].mxu0
    %v1747 = vpop.f32.mrb[0].mxu0
    %v1748 = vadd.f32 %v1670, %v1747
    %v1749 = vpop.f32.mrb[0].mxu0
    %1750 = vmatprep.mubr.bf16.mxu0 0
    %1751 = vmatmul.mubr.bf16.gmra.mrb[0].mxu0 %v1696
    %v1752 = vpop.f32.mrb[0].mxu0
    %v1753 = vadd.f32 %v1670, %v1752
    %v1754 = vpop.f32.mrb[0].mxu0
    %v1755 = vpop.f32.mrb[0].mxu0
    %v1756 = vadd.f32 %v1670, %v1755
    %v1757 = vpop.f32.mrb[0].mxu0
    %1758 = vdwg.mxu0
    %v1759 = vmax.f32 %v1745, 0.0
    %v1760 = vmax.f32 %v1748, 0.0
    %v1761 = vmax.f32 %v1753, 0.0
    %v1762 = vmax.f32 %v1756, 0.0
    %v1763 = vld [vmem:[%s11] sm:$0xf]
    %v1764 = vld [vmem:[%s11 + $0x4] sm:$0xf]
    %v1765 = vld [vmem:[%s11 + $0x8] sm:$0xf]
    %v1766 = vld [vmem:[%s11 + $0xc] sm:$0xf]
    %v1767 = vpack.c.bf16 %v1760, %v1759
    %v1768 = vpack.c.bf16 %v1762, %v1761
    %v1769 = vld [vmem:[%s12] sm:$0x1]
    %v1771 = vlaneseq
    %v1772 = vshrl.u32 %v1771, 7
    %v1773 = vsub.s32 0, %v1772
    %v1774 = vrot.slane %v1769, %v1773
    %v1780 = vunpack.c.l.b16 %v1763
    %v1781 = vunpack.c.l.b16 %v1764
    %v1782 = vunpack.c.l.b16 %v1765
    %v1783 = vunpack.c.l.b16 %v1766
    %v1784 = vpack.c.b16 %v1781, %v1780
    %v1785 = vpack.c.b16 %v1783, %v1782
    %vm1786 = vcmask 523264
    %v1788 = vsel %vm1786, %v1767, 0
    %v1791 = vsel %vm1786, %v1768, 0
    %v1794 = vsel %vm1786, %v1784, 0
    %v1797 = vsel %vm1786, %v1785, 0
    %1799 = vmatprep.subr.bf16.mxu0 0
    %1800 = vmatpush1.bf16.xpose.msra.mxu0 %v1794
    %1801 = vmatprep.subr.bf16.mxu0 0
    %1802 = vmatpush1.bf16.xpose.msra.mxu0 %v1797
    %1803 = vmatprep.subr.bf16.mxu0 0
    %1804 = vmatpush1.bf16.xpose.msra.mxu0 0
    %1805 = vmatprep.subr.bf16.mxu0 0
    %1806 = vmatpush1.bf16.xpose.msra.mxu0 0
    %1807 = vmatprep.subr.bf16.mxu0 0
    %1808 = vmatpush1.bf16.xpose.msra.mxu0 0
    %1809 = vmatprep.subr.bf16.mxu0 0
    %1810 = vmatpush1.bf16.xpose.msra.mxu0 0
    %1811 = vmatprep.subr.bf16.mxu0 0
    %1812 = vmatpush1.bf16.xpose.msra.mxu0 0
    %1813 = vmatprep.subr.bf16.mxu0 0
    %1814 = vmatpush1.bf16.xpose.msra.mxu0 0
    %1815 = vmatprep.subr.bf16.mxu0 0
    %1816 = vmatpush1.bf16.xpose.msra.mxu0 0
    %1817 = vmatprep.subr.bf16.mxu0 0
    %1818 = vmatpush1.bf16.xpose.msra.mxu0 0
    %1819 = vmatprep.subr.bf16.mxu0 0
    %1820 = vmatpush1.bf16.xpose.msra.mxu0 0
    %1821 = vmatprep.subr.bf16.mxu0 0
    %1822 = vmatpush1.bf16.xpose.msra.mxu0 0
    %1823 = vmatprep.subr.bf16.mxu0 0
    %1824 = vmatpush1.bf16.xpose.msra.mxu0 0
    %1825 = vmatprep.subr.bf16.mxu0 0
    %1826 = vmatpush1.bf16.xpose.msra.mxu0 0
    %1827 = vmatprep.subr.bf16.mxu0 0
    %1828 = vmatpush1.bf16.xpose.msra.mxu0 0
    %1829 = vmatprep.subr.bf16.mxu0 0
    %1830 = vmatpush1.bf16.xpose.msra.mxu0 0
    %1831 = vmatprep.mubr.bf16.mxu0 0
    %1832 = vmatmul.mubr.bf16.gmra.mrb[0].mxu0 %v1788
    %v1833 = vpop.f32.mrb[0].mxu0
    %v1834 = vadd.f32 %v1774, %v1833
    %v1835 = vpop.f32.mrb[0].mxu0
    %v1836 = vpop.f32.mrb[0].mxu0
    %v1837 = vadd.f32 %v1774, %v1836
    %v1838 = vpop.f32.mrb[0].mxu0
    %1839 = vmatprep.mubr.bf16.mxu0 0
    %1840 = vmatmul.mubr.bf16.gmra.mrb[0].mxu0 %v1791
    %v1841 = vpop.f32.mrb[0].mxu0
    %v1842 = vadd.f32 %v1774, %v1841
    %v1843 = vpop.f32.mrb[0].mxu0
    %v1844 = vpop.f32.mrb[0].mxu0
    %v1845 = vadd.f32 %v1774, %v1844
    %v1846 = vpop.f32.mrb[0].mxu0
    %1847 = vdwg.mxu0
    %v1848 = vadd.f32 %v1651, %v1834
    %v1849 = vadd.f32 %v1652, %v1837
    %v1850 = vadd.f32 %v1653, %v1842
    %v1851 = vadd.f32 %v1654, %v1845
    %v1852 = vld [vmem:[%s15] sm:$0x1]
    %v1853 = vld [vmem:[%s16] sm:$0x1]
    %v1854 = vsel %vm238, %v1848, 0.0
    %1855 = vadd.xlane.f32.xlu0 %v1854
    %v1856 = vpop.xlane.xlu0 %1855
    %v1857 = vsel %vm238, %v1849, 0.0
    %1858 = vadd.xlane.f32.xlu0 %v1857
    %v1859 = vpop.xlane.xlu0 %1858
    %v1860 = vsel %vm238, %v1850, 0.0
    %1861 = vadd.xlane.f32.xlu0 %v1860
    %v1862 = vpop.xlane.xlu0 %1861
    %v1863 = vsel %vm238, %v1851, 0.0
    %1864 = vadd.xlane.f32.xlu0 %v1863
    %v1865 = vpop.xlane.xlu0 %1864
    %v1866 = vmul.f32 %v1856, %v1594
    %v1867 = vmul.f32 %v1859, %v1594
    %v1868 = vmul.f32 %v1862, %v1594
    %v1869 = vmul.f32 %v1865, %v1594
    %v1870 = vsub.f32 %v1848, %v1866
    %v1871 = vsub.f32 %v1849, %v1867
    %v1872 = vsub.f32 %v1850, %v1868
    %v1873 = vsub.f32 %v1851, %v1869
    %v1874 = vmul.f32 %v1870, %v1870
    %v1875 = vmul.f32 %v1871, %v1871
    %v1876 = vmul.f32 %v1872, %v1872
    %v1877 = vmul.f32 %v1873, %v1873
    %v1878 = vsel %vm238, %v1874, 0.0
    %1879 = vadd.xlane.f32.xlu0 %v1878
    %v1880 = vpop.xlane.xlu0 %1879
    %v1881 = vsel %vm238, %v1875, 0.0
    %1882 = vadd.xlane.f32.xlu0 %v1881
    %v1883 = vpop.xlane.xlu0 %1882
    %v1884 = vsel %vm238, %v1876, 0.0
    %1885 = vadd.xlane.f32.xlu0 %v1884
    %v1886 = vpop.xlane.xlu0 %1885
    %v1887 = vsel %vm238, %v1877, 0.0
    %1888 = vadd.xlane.f32.xlu0 %v1887
    %v1889 = vpop.xlane.xlu0 %1888
    %v1890 = vmul.f32 %v1880, %v1594
    %v1891 = vmul.f32 %v1883, %v1594
    %v1892 = vmul.f32 %v1886, %v1594
    %v1893 = vmul.f32 %v1889, %v1594
    %v1894 = vadd.f32 %v1890, 1e-05
    %v1895 = vadd.f32 %v1891, 1e-05
    %v1896 = vadd.f32 %v1892, 1e-05
    %v1897 = vadd.f32 %v1893, 1e-05
    %v1898 = vrsqrt.pop %v1894
    %v1899 = vrsqrt.pop %v1895
    %v1900 = vrsqrt.pop %v1896
    %v1901 = vrsqrt.pop %v1897
    %v1902 = vmul.f32 %v1870, %v1898
    %v1903 = vmul.f32 %v1871, %v1899
    %v1904 = vmul.f32 %v1872, %v1900
    %v1905 = vmul.f32 %v1873, %v1901
    %v1907 = vlaneseq
    %v1908 = vshrl.u32 %v1907, 7
    %v1909 = vsub.s32 0, %v1908
    %v1910 = vrot.slane %v1852, %v1909
    %v1912 = vmul.f32 %v1902, %v1910
    %v1913 = vmul.f32 %v1903, %v1910
    %v1914 = vmul.f32 %v1904, %v1910
    %v1915 = vmul.f32 %v1905, %v1910
    %v1917 = vlaneseq
    %v1918 = vshrl.u32 %v1917, 7
    %v1919 = vsub.s32 0, %v1918
    %v1920 = vrot.slane %v1853, %v1919
    %v1922 = vadd.f32 %v1912, %v1920
    %v1923 = vadd.f32 %v1913, %v1920
    %v1924 = vadd.f32 %v1914, %v1920
    %v1925 = vadd.f32 %v1915, %v1920
    %s1926 = scalar_lea.vmem %s5, 48
    %v1927 = vld [vmem:[%s1926] sm:$0xf]
    %v1928 = vld [vmem:[%s1926 + $0x4] sm:$0xf]
    %v1929 = vld [vmem:[%s1926 + $0x8] sm:$0xf]
    %v1930 = vld [vmem:[%s1926 + $0xc] sm:$0xf]
    %v1931 = vld [vmem:[%s1926 + $0x10] sm:$0xf]
    %v1932 = vld [vmem:[%s1926 + $0x14] sm:$0xf]
    %v1933 = vld [vmem:[%s1926 + $0x18] sm:$0xf]
    %v1934 = vld [vmem:[%s1926 + $0x1c] sm:$0xf]
    %v1935 = vld [vmem:[%s1926 + $0x20] sm:$0xf]
    %v1936 = vld [vmem:[%s1926 + $0x24] sm:$0xf]
    %v1937 = vld [vmem:[%s1926 + $0x28] sm:$0xf]
    %v1938 = vld [vmem:[%s1926 + $0x2c] sm:$0xf]
    %v1939 = vpack.c.bf16 %v1923, %v1922
    %v1940 = vpack.c.bf16 %v1925, %v1924
    %s1941 = scalar_lea.vmem %s6, 1
    %v1942 = vld [vmem:[%s1941] sm:$0x1]
    %v1944 = vlaneseq
    %v1945 = vshrl.u32 %v1944, 7
    %v1946 = vsub.s32 0, %v1945
    %v1947 = vrot.slane %v1942, %v1946
    %v1961 = vunpack.c.l.b16 %v1927
    %v1962 = vunpack.c.l.b16 %v1928
    %v1963 = vunpack.c.l.b16 %v1929
    %v1964 = vunpack.c.l.b16 %v1930
    %v1965 = vunpack.c.l.b16 %v1931
    %v1966 = vunpack.c.l.b16 %v1932
    %v1967 = vunpack.c.l.b16 %v1933
    %v1968 = vunpack.c.l.b16 %v1934
    %v1969 = vunpack.c.l.b16 %v1935
    %v1970 = vunpack.c.l.b16 %v1936
    %v1971 = vunpack.c.l.b16 %v1937
    %v1972 = vunpack.c.l.b16 %v1938
    %v1973 = vpack.c.b16 %v1962, %v1961
    %v1974 = vpack.c.b16 %v1964, %v1963
    %v1975 = vpack.c.b16 %v1966, %v1965
    %v1976 = vpack.c.b16 %v1968, %v1967
    %v1977 = vpack.c.b16 %v1970, %v1969
    %v1978 = vpack.c.b16 %v1972, %v1971
    %v1980 = vsel %vm238, %v1939, 0
    %v1983 = vsel %vm238, %v1940, 0
    %v1986 = vsel %vm238, %v1973, 0
    %v1989 = vsel %vm238, %v1974, 0
    %v1992 = vsel %vm238, %v1975, 0
    %v1995 = vsel %vm238, %v1976, 0
    %v1998 = vsel %vm238, %v1977, 0
    %v2001 = vsel %vm238, %v1978, 0
    %2003 = vmatprep.subr.bf16.mxu0 0
    %2004 = vmatpush1.bf16.xpose.msra.mxu0 %v1986
    %2005 = vmatprep.subr.bf16.mxu0 0
    %2006 = vmatpush1.bf16.xpose.msra.mxu0 %v1989
    %2007 = vmatprep.subr.bf16.mxu0 0
    %2008 = vmatpush1.bf16.xpose.msra.mxu0 %v1992
    %2009 = vmatprep.subr.bf16.mxu0 0
    %2010 = vmatpush1.bf16.xpose.msra.mxu0 %v1995
    %2011 = vmatprep.subr.bf16.mxu0 0
    %2012 = vmatpush1.bf16.xpose.msra.mxu0 %v1998
    %2013 = vmatprep.subr.bf16.mxu0 0
    %2014 = vmatpush1.bf16.xpose.msra.mxu0 %v2001
    %2015 = vmatprep.subr.bf16.mxu0 0
    %2016 = vmatpush1.bf16.xpose.msra.mxu0 0
    %2017 = vmatprep.subr.bf16.mxu0 0
    %2018 = vmatpush1.bf16.xpose.msra.mxu0 0
    %2019 = vmatprep.subr.bf16.mxu0 0
    %2020 = vmatpush1.bf16.xpose.msra.mxu0 0
    %2021 = vmatprep.subr.bf16.mxu0 0
    %2022 = vmatpush1.bf16.xpose.msra.mxu0 0
    %2023 = vmatprep.subr.bf16.mxu0 0
    %2024 = vmatpush1.bf16.xpose.msra.mxu0 0
    %2025 = vmatprep.subr.bf16.mxu0 0
    %2026 = vmatpush1.bf16.xpose.msra.mxu0 0
    %2027 = vmatprep.subr.bf16.mxu0 0
    %2028 = vmatpush1.bf16.xpose.msra.mxu0 0
    %2029 = vmatprep.subr.bf16.mxu0 0
    %2030 = vmatpush1.bf16.xpose.msra.mxu0 0
    %2031 = vmatprep.subr.bf16.mxu0 0
    %2032 = vmatpush1.bf16.xpose.msra.mxu0 0
    %2033 = vmatprep.subr.bf16.mxu0 0
    %2034 = vmatpush1.bf16.xpose.msra.mxu0 0
    %2035 = vmatprep.mubr.bf16.mxu0 0
    %2036 = vmatmul.mubr.bf16.gmra.mrb[0].mxu0 %v1980
    %v2037 = vpop.f32.mrb[0].mxu0
    %v2038 = vadd.f32 %v1947, %v2037
    %v2039 = vpop.f32.mrb[0].mxu0
    %v2040 = vpop.f32.mrb[0].mxu0
    %v2041 = vadd.f32 %v1947, %v2040
    %v2042 = vpop.f32.mrb[0].mxu0
    %2043 = vmatprep.mubr.bf16.mxu0 0
    %2044 = vmatmul.mubr.bf16.gmra.mrb[0].mxu0 %v1983
    %v2045 = vpop.f32.mrb[0].mxu0
    %v2046 = vadd.f32 %v1947, %v2045
    %v2047 = vpop.f32.mrb[0].mxu0
    %v2048 = vpop.f32.mrb[0].mxu0
    %v2049 = vadd.f32 %v1947, %v2048
    %v2050 = vpop.f32.mrb[0].mxu0
    %2051 = vdwg.mxu0
    %v2052 = vmul.f32 %v2038, %v333
    %v2053 = vmul.f32 %v2041, %v333
    %v2054 = vmul.f32 %v2046, %v333
    %v2055 = vmul.f32 %v2049, %v333
    %v2056 = vmul.f32 %v2038, %v335
    %v2057 = vmul.f32 %v2041, %v335
    %v2058 = vmul.f32 %v2046, %v335
    %v2059 = vmul.f32 %v2049, %v335
    %v2060 = vmul.f32 %v2038, %v337
    %v2061 = vmul.f32 %v2041, %v337
    %v2062 = vmul.f32 %v2046, %v337
    %v2063 = vmul.f32 %v2049, %v337
    %v2064 = vmul.f32 %v2038, %v339
    %v2065 = vmul.f32 %v2041, %v339
    %v2066 = vmul.f32 %v2046, %v339
    %v2067 = vmul.f32 %v2049, %v339
    %v2068 = vmul.f32 %v2038, %v361
    %v2069 = vmul.f32 %v2041, %v361
    %v2070 = vmul.f32 %v2046, %v361
    %v2071 = vmul.f32 %v2049, %v361
    %v2072 = vmul.f32 %v2038, %v363
    %v2073 = vmul.f32 %v2041, %v363
    %v2074 = vmul.f32 %v2046, %v363
    %v2075 = vmul.f32 %v2049, %v363
    %v2076 = vmul.f32 %v2038, %v365
    %v2077 = vmul.f32 %v2041, %v365
    %v2078 = vmul.f32 %v2046, %v365
    %v2079 = vmul.f32 %v2049, %v365
    %v2080 = vmul.f32 %v2038, %v367
    %v2081 = vmul.f32 %v2041, %v367
    %v2082 = vmul.f32 %v2046, %v367
    %v2083 = vmul.f32 %v2049, %v367
    %2088 = vrot.lane.b32.xlu0 %v2052, 96
    %v2089 = vpop.permute.xlu0 %2088
    %2090 = vrot.lane.b32.xlu0 %v2053, 96
    %v2091 = vpop.permute.xlu0 %2090
    %2092 = vrot.lane.b32.xlu0 %v2054, 96
    %v2093 = vpop.permute.xlu0 %2092
    %2094 = vrot.lane.b32.xlu0 %v2055, 96
    %v2095 = vpop.permute.xlu0 %2094
    %v2097 = vsel %vm238, %v2038, 0
    %v2100 = vsel %vm238, %v2041, 0
    %v2103 = vsel %vm238, %v2046, 0
    %v2106 = vsel %vm238, %v2049, 0
    %v2108 = vsel %vm238, %v2089, 0
    %v2110 = vsel %vm238, %v2091, 0
    %v2112 = vsel %vm238, %v2093, 0
    %v2114 = vsel %vm238, %v2095, 0
    %2116 = vmatprep.subr.mxu0 0.0
    %2117 = vmatpush1.xpose.msra.mxu0 %v2108
    %2118 = vmatprep.subr.mxu0 0.0
    %2119 = vmatpush1.xpose.msra.mxu0 %v2110
    %2120 = vmatprep.subr.mxu0 0.0
    %2121 = vmatpush1.xpose.msra.mxu0 %v2112
    %2122 = vmatprep.subr.mxu0 0.0
    %2123 = vmatpush1.xpose.msra.mxu0 %v2114
    %2124 = vmatprep.subr.mxu0 0.0
    %2125 = vmatpush1.xpose.msra.mxu0 0.0
    %2126 = vmatprep.subr.mxu0 0.0
    %2127 = vmatpush1.xpose.msra.mxu0 0.0
    %2128 = vmatprep.subr.mxu0 0.0
    %2129 = vmatpush1.xpose.msra.mxu0 0.0
    %2130 = vmatprep.subr.mxu0 0.0
    %2131 = vmatpush1.xpose.msra.mxu0 0.0
    %2132 = vmatprep.subr.mxu0 0.0
    %2133 = vmatpush1.xpose.msra.mxu0 0.0
    %2134 = vmatprep.subr.mxu0 0.0
    %2135 = vmatpush1.xpose.msra.mxu0 0.0
    %2136 = vmatprep.subr.mxu0 0.0
    %2137 = vmatpush1.xpose.msra.mxu0 0.0
    %2138 = vmatprep.subr.mxu0 0.0
    %2139 = vmatpush1.xpose.msra.mxu0 0.0
    %2140 = vmatprep.subr.mxu0 0.0
    %2141 = vmatpush1.xpose.msra.mxu0 0.0
    %2142 = vmatprep.subr.mxu0 0.0
    %2143 = vmatpush1.xpose.msra.mxu0 0.0
    %2144 = vmatprep.subr.mxu0 0.0
    %2145 = vmatpush1.xpose.msra.mxu0 0.0
    %2146 = vmatprep.subr.mxu0 0.0
    %2147 = vmatpush1.xpose.msra.mxu0 0.0
    %2148 = vmatprep.subr.mxu0 0.0
    %2149 = vmatpush1.xpose.msra.mxu0 0.0
    %2150 = vmatprep.subr.mxu0 0.0
    %2151 = vmatpush1.xpose.msra.mxu0 0.0
    %2152 = vmatprep.subr.mxu0 0.0
    %2153 = vmatpush1.xpose.msra.mxu0 0.0
    %2154 = vmatprep.subr.mxu0 0.0
    %2155 = vmatpush1.xpose.msra.mxu0 0.0
    %2156 = vmatprep.subr.mxu0 0.0
    %2157 = vmatpush1.xpose.msra.mxu0 0.0
    %2158 = vmatprep.subr.mxu0 0.0
    %2159 = vmatpush1.xpose.msra.mxu0 0.0
    %2160 = vmatprep.subr.mxu0 0.0
    %2161 = vmatpush1.xpose.msra.mxu0 0.0
    %2162 = vmatprep.subr.mxu0 0.0
    %2163 = vmatpush1.xpose.msra.mxu0 0.0
    %2164 = vmatprep.subr.mxu0 0.0
    %2165 = vmatpush1.xpose.msra.mxu0 0.0
    %2166 = vmatprep.subr.mxu0 0.0
    %2167 = vmatpush1.xpose.msra.mxu0 0.0
    %2168 = vmatprep.subr.mxu0 0.0
    %2169 = vmatpush1.xpose.msra.mxu0 0.0
    %2170 = vmatprep.subr.mxu0 0.0
    %2171 = vmatpush1.xpose.msra.mxu0 0.0
    %2172 = vmatprep.subr.mxu0 0.0
    %2173 = vmatpush1.xpose.msra.mxu0 0.0
    %2174 = vmatprep.subr.mxu0 0.0
    %2175 = vmatpush1.xpose.msra.mxu0 0.0
    %2176 = vmatprep.subr.mxu0 0.0
    %2177 = vmatpush1.xpose.msra.mxu0 0.0
    %2178 = vmatprep.subr.mxu0 0.0
    %2179 = vmatpush1.xpose.msra.mxu0 0.0
    %2180 = vmatprep.mubr.f32.mxu0 0.0
    %2181 = vmatmul.mubr.f32.gmra.mrb[0].mxu0 %v2097
    %v2182 = vpop.f32.mrb[0].mxu0
    %v2183 = vadd.f32 0.0, %v2182
    %v2184 = vpop.f32.mrb[0].mxu0
    %2185 = vmatprep.mubr.f32.mxu0 0.0
    %2186 = vmatmul.mubr.f32.gmra.mrb[0].mxu0 %v2100
    %v2187 = vpop.f32.mrb[0].mxu0
    %v2188 = vadd.f32 0.0, %v2187
    %v2189 = vpop.f32.mrb[0].mxu0
    %2190 = vmatprep.mubr.f32.mxu0 0.0
    %2191 = vmatmul.mubr.f32.gmra.mrb[0].mxu0 %v2103
    %v2192 = vpop.f32.mrb[0].mxu0
    %v2193 = vadd.f32 0.0, %v2192
    %v2194 = vpop.f32.mrb[0].mxu0
    %2195 = vmatprep.mubr.f32.mxu0 0.0
    %2196 = vmatmul.mubr.f32.gmra.mrb[0].mxu0 %v2106
    %v2197 = vpop.f32.mrb[0].mxu0
    %v2198 = vadd.f32 0.0, %v2197
    %v2199 = vpop.f32.mrb[0].mxu0
    %2200 = vdwg.mxu0
    %2205 = vrot.lane.b32.xlu0 %v2056, 96
    %v2206 = vpop.permute.xlu0 %2205
    %2207 = vrot.lane.b32.xlu0 %v2057, 96
    %v2208 = vpop.permute.xlu0 %2207
    %2209 = vrot.lane.b32.xlu0 %v2058, 96
    %v2210 = vpop.permute.xlu0 %2209
    %2211 = vrot.lane.b32.xlu0 %v2059, 96
    %v2212 = vpop.permute.xlu0 %2211
    %v2213 = vsel %vm238, %v2206, 0
    %v2215 = vsel %vm238, %v2208, 0
    %v2217 = vsel %vm238, %v2210, 0
    %v2219 = vsel %vm238, %v2212, 0
    %2221 = vmatprep.subr.mxu0 0.0
    %2222 = vmatpush1.xpose.msra.mxu0 %v2213
    %2223 = vmatprep.subr.mxu0 0.0
    %2224 = vmatpush1.xpose.msra.mxu0 %v2215
    %2225 = vmatprep.subr.mxu0 0.0
    %2226 = vmatpush1.xpose.msra.mxu0 %v2217
    %2227 = vmatprep.subr.mxu0 0.0
    %2228 = vmatpush1.xpose.msra.mxu0 %v2219
    %2229 = vmatprep.subr.mxu0 0.0
    %2230 = vmatpush1.xpose.msra.mxu0 0.0
    %2231 = vmatprep.subr.mxu0 0.0
    %2232 = vmatpush1.xpose.msra.mxu0 0.0
    %2233 = vmatprep.subr.mxu0 0.0
    %2234 = vmatpush1.xpose.msra.mxu0 0.0
    %2235 = vmatprep.subr.mxu0 0.0
    %2236 = vmatpush1.xpose.msra.mxu0 0.0
    %2237 = vmatprep.subr.mxu0 0.0
    %2238 = vmatpush1.xpose.msra.mxu0 0.0
    %2239 = vmatprep.subr.mxu0 0.0
    %2240 = vmatpush1.xpose.msra.mxu0 0.0
    %2241 = vmatprep.subr.mxu0 0.0
    %2242 = vmatpush1.xpose.msra.mxu0 0.0
    %2243 = vmatprep.subr.mxu0 0.0
    %2244 = vmatpush1.xpose.msra.mxu0 0.0
    %2245 = vmatprep.subr.mxu0 0.0
    %2246 = vmatpush1.xpose.msra.mxu0 0.0
    %2247 = vmatprep.subr.mxu0 0.0
    %2248 = vmatpush1.xpose.msra.mxu0 0.0
    %2249 = vmatprep.subr.mxu0 0.0
    %2250 = vmatpush1.xpose.msra.mxu0 0.0
    %2251 = vmatprep.subr.mxu0 0.0
    %2252 = vmatpush1.xpose.msra.mxu0 0.0
    %2253 = vmatprep.subr.mxu0 0.0
    %2254 = vmatpush1.xpose.msra.mxu0 0.0
    %2255 = vmatprep.subr.mxu0 0.0
    %2256 = vmatpush1.xpose.msra.mxu0 0.0
    %2257 = vmatprep.subr.mxu0 0.0
    %2258 = vmatpush1.xpose.msra.mxu0 0.0
    %2259 = vmatprep.subr.mxu0 0.0
    %2260 = vmatpush1.xpose.msra.mxu0 0.0
    %2261 = vmatprep.subr.mxu0 0.0
    %2262 = vmatpush1.xpose.msra.mxu0 0.0
    %2263 = vmatprep.subr.mxu0 0.0
    %2264 = vmatpush1.xpose.msra.mxu0 0.0
    %2265 = vmatprep.subr.mxu0 0.0
    %2266 = vmatpush1.xpose.msra.mxu0 0.0
    %2267 = vmatprep.subr.mxu0 0.0
    %2268 = vmatpush1.xpose.msra.mxu0 0.0
    %2269 = vmatprep.subr.mxu0 0.0
    %2270 = vmatpush1.xpose.msra.mxu0 0.0
    %2271 = vmatprep.subr.mxu0 0.0
    %2272 = vmatpush1.xpose.msra.mxu0 0.0
    %2273 = vmatprep.subr.mxu0 0.0
    %2274 = vmatpush1.xpose.msra.mxu0 0.0
    %2275 = vmatprep.subr.mxu0 0.0
    %2276 = vmatpush1.xpose.msra.mxu0 0.0
    %2277 = vmatprep.subr.mxu0 0.0
    %2278 = vmatpush1.xpose.msra.mxu0 0.0
    %2279 = vmatprep.subr.mxu0 0.0
    %2280 = vmatpush1.xpose.msra.mxu0 0.0
    %2281 = vmatprep.subr.mxu0 0.0
    %2282 = vmatpush1.xpose.msra.mxu0 0.0
    %2283 = vmatprep.subr.mxu0 0.0
    %2284 = vmatpush1.xpose.msra.mxu0 0.0
    %2285 = vmatprep.mubr.f32.mxu0 0.0
    %2286 = vmatmul.mubr.f32.gmra.mrb[0].mxu0 %v2097
    %v2287 = vpop.f32.mrb[0].mxu0
    %v2288 = vadd.f32 0.0, %v2287
    %v2289 = vpop.f32.mrb[0].mxu0
    %2290 = vmatprep.mubr.f32.mxu0 0.0
    %2291 = vmatmul.mubr.f32.gmra.mrb[0].mxu0 %v2100
    %v2292 = vpop.f32.mrb[0].mxu0
    %v2293 = vadd.f32 0.0, %v2292
    %v2294 = vpop.f32.mrb[0].mxu0
    %2295 = vmatprep.mubr.f32.mxu0 0.0
    %2296 = vmatmul.mubr.f32.gmra.mrb[0].mxu0 %v2103
    %v2297 = vpop.f32.mrb[0].mxu0
    %v2298 = vadd.f32 0.0, %v2297
    %v2299 = vpop.f32.mrb[0].mxu0
    %2300 = vmatprep.mubr.f32.mxu0 0.0
    %2301 = vmatmul.mubr.f32.gmra.mrb[0].mxu0 %v2106
    %v2302 = vpop.f32.mrb[0].mxu0
    %v2303 = vadd.f32 0.0, %v2302
    %v2304 = vpop.f32.mrb[0].mxu0
    %2305 = vdwg.mxu0
    %2310 = vrot.lane.b32.xlu0 %v2060, 96
    %v2311 = vpop.permute.xlu0 %2310
    %2312 = vrot.lane.b32.xlu0 %v2061, 96
    %v2313 = vpop.permute.xlu0 %2312
    %2314 = vrot.lane.b32.xlu0 %v2062, 96
    %v2315 = vpop.permute.xlu0 %2314
    %2316 = vrot.lane.b32.xlu0 %v2063, 96
    %v2317 = vpop.permute.xlu0 %2316
    %v2318 = vsel %vm238, %v2311, 0
    %v2320 = vsel %vm238, %v2313, 0
    %v2322 = vsel %vm238, %v2315, 0
    %v2324 = vsel %vm238, %v2317, 0
    %2326 = vmatprep.subr.mxu0 0.0
    %2327 = vmatpush1.xpose.msra.mxu0 %v2318
    %2328 = vmatprep.subr.mxu0 0.0
    %2329 = vmatpush1.xpose.msra.mxu0 %v2320
    %2330 = vmatprep.subr.mxu0 0.0
    %2331 = vmatpush1.xpose.msra.mxu0 %v2322
    %2332 = vmatprep.subr.mxu0 0.0
    %2333 = vmatpush1.xpose.msra.mxu0 %v2324
    %2334 = vmatprep.subr.mxu0 0.0
    %2335 = vmatpush1.xpose.msra.mxu0 0.0
    %2336 = vmatprep.subr.mxu0 0.0
    %2337 = vmatpush1.xpose.msra.mxu0 0.0
    %2338 = vmatprep.subr.mxu0 0.0
    %2339 = vmatpush1.xpose.msra.mxu0 0.0
    %2340 = vmatprep.subr.mxu0 0.0
    %2341 = vmatpush1.xpose.msra.mxu0 0.0
    %2342 = vmatprep.subr.mxu0 0.0
    %2343 = vmatpush1.xpose.msra.mxu0 0.0
    %2344 = vmatprep.subr.mxu0 0.0
    %2345 = vmatpush1.xpose.msra.mxu0 0.0
    %2346 = vmatprep.subr.mxu0 0.0
    %2347 = vmatpush1.xpose.msra.mxu0 0.0
    %2348 = vmatprep.subr.mxu0 0.0
    %2349 = vmatpush1.xpose.msra.mxu0 0.0
    %2350 = vmatprep.subr.mxu0 0.0
    %2351 = vmatpush1.xpose.msra.mxu0 0.0
    %2352 = vmatprep.subr.mxu0 0.0
    %2353 = vmatpush1.xpose.msra.mxu0 0.0
    %2354 = vmatprep.subr.mxu0 0.0
    %2355 = vmatpush1.xpose.msra.mxu0 0.0
    %2356 = vmatprep.subr.mxu0 0.0
    %2357 = vmatpush1.xpose.msra.mxu0 0.0
    %2358 = vmatprep.subr.mxu0 0.0
    %2359 = vmatpush1.xpose.msra.mxu0 0.0
    %2360 = vmatprep.subr.mxu0 0.0
    %2361 = vmatpush1.xpose.msra.mxu0 0.0
    %2362 = vmatprep.subr.mxu0 0.0
    %2363 = vmatpush1.xpose.msra.mxu0 0.0
    %2364 = vmatprep.subr.mxu0 0.0
    %2365 = vmatpush1.xpose.msra.mxu0 0.0
    %2366 = vmatprep.subr.mxu0 0.0
    %2367 = vmatpush1.xpose.msra.mxu0 0.0
    %2368 = vmatprep.subr.mxu0 0.0
    %2369 = vmatpush1.xpose.msra.mxu0 0.0
    %2370 = vmatprep.subr.mxu0 0.0
    %2371 = vmatpush1.xpose.msra.mxu0 0.0
    %2372 = vmatprep.subr.mxu0 0.0
    %2373 = vmatpush1.xpose.msra.mxu0 0.0
    %2374 = vmatprep.subr.mxu0 0.0
    %2375 = vmatpush1.xpose.msra.mxu0 0.0
    %2376 = vmatprep.subr.mxu0 0.0
    %2377 = vmatpush1.xpose.msra.mxu0 0.0
    %2378 = vmatprep.subr.mxu0 0.0
    %2379 = vmatpush1.xpose.msra.mxu0 0.0
    %2380 = vmatprep.subr.mxu0 0.0
    %2381 = vmatpush1.xpose.msra.mxu0 0.0
    %2382 = vmatprep.subr.mxu0 0.0
    %2383 = vmatpush1.xpose.msra.mxu0 0.0
    %2384 = vmatprep.subr.mxu0 0.0
    %2385 = vmatpush1.xpose.msra.mxu0 0.0
    %2386 = vmatprep.subr.mxu0 0.0
    %2387 = vmatpush1.xpose.msra.mxu0 0.0
    %2388 = vmatprep.subr.mxu0 0.0
    %2389 = vmatpush1.xpose.msra.mxu0 0.0
    %2390 = vmatprep.mubr.f32.mxu0 0.0
    %2391 = vmatmul.mubr.f32.gmra.mrb[0].mxu0 %v2097
    %v2392 = vpop.f32.mrb[0].mxu0
    %v2393 = vadd.f32 0.0, %v2392
    %v2394 = vpop.f32.mrb[0].mxu0
    %2395 = vmatprep.mubr.f32.mxu0 0.0
    %2396 = vmatmul.mubr.f32.gmra.mrb[0].mxu0 %v2100
    %v2397 = vpop.f32.mrb[0].mxu0
    %v2398 = vadd.f32 0.0, %v2397
    %v2399 = vpop.f32.mrb[0].mxu0
    %2400 = vmatprep.mubr.f32.mxu0 0.0
    %2401 = vmatmul.mubr.f32.gmra.mrb[0].mxu0 %v2103
    %v2402 = vpop.f32.mrb[0].mxu0
    %v2403 = vadd.f32 0.0, %v2402
    %v2404 = vpop.f32.mrb[0].mxu0
    %2405 = vmatprep.mubr.f32.mxu0 0.0
    %2406 = vmatmul.mubr.f32.gmra.mrb[0].mxu0 %v2106
    %v2407 = vpop.f32.mrb[0].mxu0
    %v2408 = vadd.f32 0.0, %v2407
    %v2409 = vpop.f32.mrb[0].mxu0
    %2410 = vdwg.mxu0
    %2415 = vrot.lane.b32.xlu0 %v2064, 96
    %v2416 = vpop.permute.xlu0 %2415
    %2417 = vrot.lane.b32.xlu0 %v2065, 96
    %v2418 = vpop.permute.xlu0 %2417
    %2419 = vrot.lane.b32.xlu0 %v2066, 96
    %v2420 = vpop.permute.xlu0 %2419
    %2421 = vrot.lane.b32.xlu0 %v2067, 96
    %v2422 = vpop.permute.xlu0 %2421
    %v2423 = vsel %vm238, %v2416, 0
    %v2425 = vsel %vm238, %v2418, 0
    %v2427 = vsel %vm238, %v2420, 0
    %v2429 = vsel %vm238, %v2422, 0
    %2431 = vmatprep.subr.mxu0 0.0
    %2432 = vmatpush1.xpose.msra.mxu0 %v2423
    %2433 = vmatprep.subr.mxu0 0.0
    %2434 = vmatpush1.xpose.msra.mxu0 %v2425
    %2435 = vmatprep.subr.mxu0 0.0
    %2436 = vmatpush1.xpose.msra.mxu0 %v2427
    %2437 = vmatprep.subr.mxu0 0.0
    %2438 = vmatpush1.xpose.msra.mxu0 %v2429
    %2439 = vmatprep.subr.mxu0 0.0
    %2440 = vmatpush1.xpose.msra.mxu0 0.0
    %2441 = vmatprep.subr.mxu0 0.0
    %2442 = vmatpush1.xpose.msra.mxu0 0.0
    %2443 = vmatprep.subr.mxu0 0.0
    %2444 = vmatpush1.xpose.msra.mxu0 0.0
    %2445 = vmatprep.subr.mxu0 0.0
    %2446 = vmatpush1.xpose.msra.mxu0 0.0
    %2447 = vmatprep.subr.mxu0 0.0
    %2448 = vmatpush1.xpose.msra.mxu0 0.0
    %2449 = vmatprep.subr.mxu0 0.0
    %2450 = vmatpush1.xpose.msra.mxu0 0.0
    %2451 = vmatprep.subr.mxu0 0.0
    %2452 = vmatpush1.xpose.msra.mxu0 0.0
    %2453 = vmatprep.subr.mxu0 0.0
    %2454 = vmatpush1.xpose.msra.mxu0 0.0
    %2455 = vmatprep.subr.mxu0 0.0
    %2456 = vmatpush1.xpose.msra.mxu0 0.0
    %2457 = vmatprep.subr.mxu0 0.0
    %2458 = vmatpush1.xpose.msra.mxu0 0.0
    %2459 = vmatprep.subr.mxu0 0.0
    %2460 = vmatpush1.xpose.msra.mxu0 0.0
    %2461 = vmatprep.subr.mxu0 0.0
    %2462 = vmatpush1.xpose.msra.mxu0 0.0
    %2463 = vmatprep.subr.mxu0 0.0
    %2464 = vmatpush1.xpose.msra.mxu0 0.0
    %2465 = vmatprep.subr.mxu0 0.0
    %2466 = vmatpush1.xpose.msra.mxu0 0.0
    %2467 = vmatprep.subr.mxu0 0.0
    %2468 = vmatpush1.xpose.msra.mxu0 0.0
    %2469 = vmatprep.subr.mxu0 0.0
    %2470 = vmatpush1.xpose.msra.mxu0 0.0
    %2471 = vmatprep.subr.mxu0 0.0
    %2472 = vmatpush1.xpose.msra.mxu0 0.0
    %2473 = vmatprep.subr.mxu0 0.0
    %2474 = vmatpush1.xpose.msra.mxu0 0.0
    %2475 = vmatprep.subr.mxu0 0.0
    %2476 = vmatpush1.xpose.msra.mxu0 0.0
    %2477 = vmatprep.subr.mxu0 0.0
    %2478 = vmatpush1.xpose.msra.mxu0 0.0
    %2479 = vmatprep.subr.mxu0 0.0
    %2480 = vmatpush1.xpose.msra.mxu0 0.0
    %2481 = vmatprep.subr.mxu0 0.0
    %2482 = vmatpush1.xpose.msra.mxu0 0.0
    %2483 = vmatprep.subr.mxu0 0.0
    %2484 = vmatpush1.xpose.msra.mxu0 0.0
    %2485 = vmatprep.subr.mxu0 0.0
    %2486 = vmatpush1.xpose.msra.mxu0 0.0
    %2487 = vmatprep.subr.mxu0 0.0
    %2488 = vmatpush1.xpose.msra.mxu0 0.0
    %2489 = vmatprep.subr.mxu0 0.0
    %2490 = vmatpush1.xpose.msra.mxu0 0.0
    %2491 = vmatprep.subr.mxu0 0.0
    %2492 = vmatpush1.xpose.msra.mxu0 0.0
    %2493 = vmatprep.subr.mxu0 0.0
    %2494 = vmatpush1.xpose.msra.mxu0 0.0
    %2495 = vmatprep.mubr.f32.mxu0 0.0
    %2496 = vmatmul.mubr.f32.gmra.mrb[0].mxu0 %v2097
    %v2497 = vpop.f32.mrb[0].mxu0
    %v2498 = vadd.f32 0.0, %v2497
    %v2499 = vpop.f32.mrb[0].mxu0
    %2500 = vmatprep.mubr.f32.mxu0 0.0
    %2501 = vmatmul.mubr.f32.gmra.mrb[0].mxu0 %v2100
    %v2502 = vpop.f32.mrb[0].mxu0
    %v2503 = vadd.f32 0.0, %v2502
    %v2504 = vpop.f32.mrb[0].mxu0
    %2505 = vmatprep.mubr.f32.mxu0 0.0
    %2506 = vmatmul.mubr.f32.gmra.mrb[0].mxu0 %v2103
    %v2507 = vpop.f32.mrb[0].mxu0
    %v2508 = vadd.f32 0.0, %v2507
    %v2509 = vpop.f32.mrb[0].mxu0
    %2510 = vmatprep.mubr.f32.mxu0 0.0
    %2511 = vmatmul.mubr.f32.gmra.mrb[0].mxu0 %v2106
    %v2512 = vpop.f32.mrb[0].mxu0
    %v2513 = vadd.f32 0.0, %v2512
    %v2514 = vpop.f32.mrb[0].mxu0
    %2515 = vdwg.mxu0
    %v2516 = vmul.f32 %v2183, 0.35355338
    %v2517 = vmul.f32 %v2188, 0.35355338
    %v2518 = vmul.f32 %v2193, 0.35355338
    %v2519 = vmul.f32 %v2198, 0.35355338
    %v2520 = vmul.f32 %v2288, 0.35355338
    %v2521 = vmul.f32 %v2293, 0.35355338
    %v2522 = vmul.f32 %v2298, 0.35355338
    %v2523 = vmul.f32 %v2303, 0.35355338
    %v2524 = vmul.f32 %v2393, 0.35355338
    %v2525 = vmul.f32 %v2398, 0.35355338
    %v2526 = vmul.f32 %v2403, 0.35355338
    %v2527 = vmul.f32 %v2408, 0.35355338
    %v2528 = vmul.f32 %v2498, 0.35355338
    %v2529 = vmul.f32 %v2503, 0.35355338
    %v2530 = vmul.f32 %v2508, 0.35355338
    %v2531 = vmul.f32 %v2513, 0.35355338
    %v2532 = vadd.f32 %v2516, %v179
    %v2533 = vadd.f32 %v2517, %v180
    %v2534 = vadd.f32 %v2518, %v181
    %v2535 = vadd.f32 %v2519, %v182
    %v2536 = vadd.f32 %v2520, %v179
    %v2537 = vadd.f32 %v2521, %v180
    %v2538 = vadd.f32 %v2522, %v181
    %v2539 = vadd.f32 %v2523, %v182
    %v2540 = vadd.f32 %v2524, %v179
    %v2541 = vadd.f32 %v2525, %v180
    %v2542 = vadd.f32 %v2526, %v181
    %v2543 = vadd.f32 %v2527, %v182
    %v2544 = vadd.f32 %v2528, %v179
    %v2545 = vadd.f32 %v2529, %v180
    %v2546 = vadd.f32 %v2530, %v181
    %v2547 = vadd.f32 %v2531, %v182
    %v2548 = vsel %vm238, %v2532, -inf
    %2549 = vmax.xlane.f32.xlu0 %v2548
    %v2550 = vpop.xlane.xlu0 %2549
    %v2551 = vsel %vm238, %v2533, -inf
    %2552 = vmax.xlane.f32.xlu0 %v2551
    %v2553 = vpop.xlane.xlu0 %2552
    %v2554 = vsel %vm238, %v2534, -inf
    %2555 = vmax.xlane.f32.xlu0 %v2554
    %v2556 = vpop.xlane.xlu0 %2555
    %v2557 = vsel %vm238, %v2535, -inf
    %2558 = vmax.xlane.f32.xlu0 %v2557
    %v2559 = vpop.xlane.xlu0 %2558
    %v2560 = vsel %vm238, %v2536, -inf
    %2561 = vmax.xlane.f32.xlu0 %v2560
    %v2562 = vpop.xlane.xlu0 %2561
    %v2563 = vsel %vm238, %v2537, -inf
    %2564 = vmax.xlane.f32.xlu0 %v2563
    %v2565 = vpop.xlane.xlu0 %2564
    %v2566 = vsel %vm238, %v2538, -inf
    %2567 = vmax.xlane.f32.xlu0 %v2566
    %v2568 = vpop.xlane.xlu0 %2567
    %v2569 = vsel %vm238, %v2539, -inf
    %2570 = vmax.xlane.f32.xlu0 %v2569
    %v2571 = vpop.xlane.xlu0 %2570
    %v2572 = vsel %vm238, %v2540, -inf
    %2573 = vmax.xlane.f32.xlu0 %v2572
    %v2574 = vpop.xlane.xlu0 %2573
    %v2575 = vsel %vm238, %v2541, -inf
    %2576 = vmax.xlane.f32.xlu0 %v2575
    %v2577 = vpop.xlane.xlu0 %2576
    %v2578 = vsel %vm238, %v2542, -inf
    %2579 = vmax.xlane.f32.xlu0 %v2578
    %v2580 = vpop.xlane.xlu0 %2579
    %v2581 = vsel %vm238, %v2543, -inf
    %2582 = vmax.xlane.f32.xlu0 %v2581
    %v2583 = vpop.xlane.xlu0 %2582
    %v2584 = vsel %vm238, %v2544, -inf
    %2585 = vmax.xlane.f32.xlu0 %v2584
    %v2586 = vpop.xlane.xlu0 %2585
    %v2587 = vsel %vm238, %v2545, -inf
    %2588 = vmax.xlane.f32.xlu0 %v2587
    %v2589 = vpop.xlane.xlu0 %2588
    %v2590 = vsel %vm238, %v2546, -inf
    %2591 = vmax.xlane.f32.xlu0 %v2590
    %v2592 = vpop.xlane.xlu0 %2591
    %v2593 = vsel %vm238, %v2547, -inf
    %2594 = vmax.xlane.f32.xlu0 %v2593
    %v2595 = vpop.xlane.xlu0 %2594
    %v2596 = vsub.f32 %v2532, %v2550
    %v2597 = vsub.f32 %v2533, %v2553
    %v2598 = vsub.f32 %v2534, %v2556
    %v2599 = vsub.f32 %v2535, %v2559
    %v2600 = vsub.f32 %v2536, %v2562
    %v2601 = vsub.f32 %v2537, %v2565
    %v2602 = vsub.f32 %v2538, %v2568
    %v2603 = vsub.f32 %v2539, %v2571
    %v2604 = vsub.f32 %v2540, %v2574
    %v2605 = vsub.f32 %v2541, %v2577
    %v2606 = vsub.f32 %v2542, %v2580
    %v2607 = vsub.f32 %v2543, %v2583
    %v2608 = vsub.f32 %v2544, %v2586
    %v2609 = vsub.f32 %v2545, %v2589
    %v2610 = vsub.f32 %v2546, %v2592
    %v2611 = vsub.f32 %v2547, %v2595
    %v2612 = vmul.f32 %v2596, 1.442695
    %v2613 = vpow.pop %v2612
    %v2614 = vmul.f32 %v2597, 1.442695
    %v2615 = vpow.pop %v2614
    %v2616 = vmul.f32 %v2598, 1.442695
    %v2617 = vpow.pop %v2616
    %v2618 = vmul.f32 %v2599, 1.442695
    %v2619 = vpow.pop %v2618
    %v2620 = vmul.f32 %v2600, 1.442695
    %v2621 = vpow.pop %v2620
    %v2622 = vmul.f32 %v2601, 1.442695
    %v2623 = vpow.pop %v2622
    %v2624 = vmul.f32 %v2602, 1.442695
    %v2625 = vpow.pop %v2624
    %v2626 = vmul.f32 %v2603, 1.442695
    %v2627 = vpow.pop %v2626
    %v2628 = vmul.f32 %v2604, 1.442695
    %v2629 = vpow.pop %v2628
    %v2630 = vmul.f32 %v2605, 1.442695
    %v2631 = vpow.pop %v2630
    %v2632 = vmul.f32 %v2606, 1.442695
    %v2633 = vpow.pop %v2632
    %v2634 = vmul.f32 %v2607, 1.442695
    %v2635 = vpow.pop %v2634
    %v2636 = vmul.f32 %v2608, 1.442695
    %v2637 = vpow.pop %v2636
    %v2638 = vmul.f32 %v2609, 1.442695
    %v2639 = vpow.pop %v2638
    %v2640 = vmul.f32 %v2610, 1.442695
    %v2641 = vpow.pop %v2640
    %v2642 = vmul.f32 %v2611, 1.442695
    %v2643 = vpow.pop %v2642
    %v2644 = vsel %vm238, %v2613, 0.0
    %2645 = vadd.xlane.f32.xlu0 %v2644
    %v2646 = vpop.xlane.xlu0 %2645
    %v2647 = vsel %vm238, %v2615, 0.0
    %2648 = vadd.xlane.f32.xlu0 %v2647
    %v2649 = vpop.xlane.xlu0 %2648
    %v2650 = vsel %vm238, %v2617, 0.0
    %2651 = vadd.xlane.f32.xlu0 %v2650
    %v2652 = vpop.xlane.xlu0 %2651
    %v2653 = vsel %vm238, %v2619, 0.0
    %2654 = vadd.xlane.f32.xlu0 %v2653
    %v2655 = vpop.xlane.xlu0 %2654
    %v2656 = vsel %vm238, %v2621, 0.0
    %2657 = vadd.xlane.f32.xlu0 %v2656
    %v2658 = vpop.xlane.xlu0 %2657
    %v2659 = vsel %vm238, %v2623, 0.0
    %2660 = vadd.xlane.f32.xlu0 %v2659
    %v2661 = vpop.xlane.xlu0 %2660
    %v2662 = vsel %vm238, %v2625, 0.0
    %2663 = vadd.xlane.f32.xlu0 %v2662
    %v2664 = vpop.xlane.xlu0 %2663
    %v2665 = vsel %vm238, %v2627, 0.0
    %2666 = vadd.xlane.f32.xlu0 %v2665
    %v2667 = vpop.xlane.xlu0 %2666
    %v2668 = vsel %vm238, %v2629, 0.0
    %2669 = vadd.xlane.f32.xlu0 %v2668
    %v2670 = vpop.xlane.xlu0 %2669
    %v2671 = vsel %vm238, %v2631, 0.0
    %2672 = vadd.xlane.f32.xlu0 %v2671
    %v2673 = vpop.xlane.xlu0 %2672
    %v2674 = vsel %vm238, %v2633, 0.0
    %2675 = vadd.xlane.f32.xlu0 %v2674
    %v2676 = vpop.xlane.xlu0 %2675
    %v2677 = vsel %vm238, %v2635, 0.0
    %2678 = vadd.xlane.f32.xlu0 %v2677
    %v2679 = vpop.xlane.xlu0 %2678
    %v2680 = vsel %vm238, %v2637, 0.0
    %2681 = vadd.xlane.f32.xlu0 %v2680
    %v2682 = vpop.xlane.xlu0 %2681
    %v2683 = vsel %vm238, %v2639, 0.0
    %2684 = vadd.xlane.f32.xlu0 %v2683
    %v2685 = vpop.xlane.xlu0 %2684
    %v2686 = vsel %vm238, %v2641, 0.0
    %2687 = vadd.xlane.f32.xlu0 %v2686
    %v2688 = vpop.xlane.xlu0 %2687
    %v2689 = vsel %vm238, %v2643, 0.0
    %2690 = vadd.xlane.f32.xlu0 %v2689
    %v2691 = vpop.xlane.xlu0 %2690
    %v2692 = vrcp.pop %v2646
    %v2693 = vrcp.pop %v2649
    %v2694 = vrcp.pop %v2652
    %v2695 = vrcp.pop %v2655
    %v2696 = vrcp.pop %v2658
    %v2697 = vrcp.pop %v2661
    %v2698 = vrcp.pop %v2664
    %v2699 = vrcp.pop %v2667
    %v2700 = vrcp.pop %v2670
    %v2701 = vrcp.pop %v2673
    %v2702 = vrcp.pop %v2676
    %v2703 = vrcp.pop %v2679
    %v2704 = vrcp.pop %v2682
    %v2705 = vrcp.pop %v2685
    %v2706 = vrcp.pop %v2688
    %v2707 = vrcp.pop %v2691
    %v2708 = vmul.f32 %v2613, %v2692
    %v2709 = vmul.f32 %v2615, %v2693
    %v2710 = vmul.f32 %v2617, %v2694
    %v2711 = vmul.f32 %v2619, %v2695
    %v2712 = vmul.f32 %v2621, %v2696
    %v2713 = vmul.f32 %v2623, %v2697
    %v2714 = vmul.f32 %v2625, %v2698
    %v2715 = vmul.f32 %v2627, %v2699
    %v2716 = vmul.f32 %v2629, %v2700
    %v2717 = vmul.f32 %v2631, %v2701
    %v2718 = vmul.f32 %v2633, %v2702
    %v2719 = vmul.f32 %v2635, %v2703
    %v2720 = vmul.f32 %v2637, %v2704
    %v2721 = vmul.f32 %v2639, %v2705
    %v2722 = vmul.f32 %v2641, %v2706
    %v2723 = vmul.f32 %v2643, %v2707
    %2728 = vrot.lane.b32.xlu0 %v2068, 64
    %v2729 = vpop.permute.xlu0 %2728
    %2730 = vrot.lane.b32.xlu0 %v2069, 64
    %v2731 = vpop.permute.xlu0 %2730
    %2732 = vrot.lane.b32.xlu0 %v2070, 64
    %v2733 = vpop.permute.xlu0 %2732
    %2734 = vrot.lane.b32.xlu0 %v2071, 64
    %v2735 = vpop.permute.xlu0 %2734
    %v2741 = vsel %vm238, %v2708, 0
    %v2744 = vsel %vm238, %v2709, 0
    %v2747 = vsel %vm238, %v2710, 0
    %v2750 = vsel %vm238, %v2711, 0
    %2752 = vmatprep.subr.mxu0 0.0
    %2753 = vmatpush1.msra.mxu0 %v2729
    %2754 = vmatprep.subr.mxu0 0.0
    %2755 = vmatpush1.msra.mxu0 %v2731
    %2756 = vmatprep.subr.mxu0 0.0
    %2757 = vmatpush1.msra.mxu0 %v2733
    %2758 = vmatprep.subr.mxu0 0.0
    %2759 = vmatpush1.msra.mxu0 %v2735
    %2760 = vmatprep.subr.mxu0 0.0
    %2761 = vmatpush1.msra.mxu0 0.0
    %2762 = vmatprep.subr.mxu0 0.0
    %2763 = vmatpush1.msra.mxu0 0.0
    %2764 = vmatprep.subr.mxu0 0.0
    %2765 = vmatpush1.msra.mxu0 0.0
    %2766 = vmatprep.subr.mxu0 0.0
    %2767 = vmatpush1.msra.mxu0 0.0
    %2768 = vmatprep.subr.mxu0 0.0
    %2769 = vmatpush1.msra.mxu0 0.0
    %2770 = vmatprep.subr.mxu0 0.0
    %2771 = vmatpush1.msra.mxu0 0.0
    %2772 = vmatprep.subr.mxu0 0.0
    %2773 = vmatpush1.msra.mxu0 0.0
    %2774 = vmatprep.subr.mxu0 0.0
    %2775 = vmatpush1.msra.mxu0 0.0
    %2776 = vmatprep.subr.mxu0 0.0
    %2777 = vmatpush1.msra.mxu0 0.0
    %2778 = vmatprep.subr.mxu0 0.0
    %2779 = vmatpush1.msra.mxu0 0.0
    %2780 = vmatprep.subr.mxu0 0.0
    %2781 = vmatpush1.msra.mxu0 0.0
    %2782 = vmatprep.subr.mxu0 0.0
    %2783 = vmatpush1.msra.mxu0 0.0
    %2784 = vmatprep.subr.mxu0 0.0
    %2785 = vmatpush1.msra.mxu0 0.0
    %2786 = vmatprep.subr.mxu0 0.0
    %2787 = vmatpush1.msra.mxu0 0.0
    %2788 = vmatprep.subr.mxu0 0.0
    %2789 = vmatpush1.msra.mxu0 0.0
    %2790 = vmatprep.subr.mxu0 0.0
    %2791 = vmatpush1.msra.mxu0 0.0
    %2792 = vmatprep.subr.mxu0 0.0
    %2793 = vmatpush1.msra.mxu0 0.0
    %2794 = vmatprep.subr.mxu0 0.0
    %2795 = vmatpush1.msra.mxu0 0.0
    %2796 = vmatprep.subr.mxu0 0.0
    %2797 = vmatpush1.msra.mxu0 0.0
    %2798 = vmatprep.subr.mxu0 0.0
    %2799 = vmatpush1.msra.mxu0 0.0
    %2800 = vmatprep.subr.mxu0 0.0
    %2801 = vmatpush1.msra.mxu0 0.0
    %2802 = vmatprep.subr.mxu0 0.0
    %2803 = vmatpush1.msra.mxu0 0.0
    %2804 = vmatprep.subr.mxu0 0.0
    %2805 = vmatpush1.msra.mxu0 0.0
    %2806 = vmatprep.subr.mxu0 0.0
    %2807 = vmatpush1.msra.mxu0 0.0
    %2808 = vmatprep.subr.mxu0 0.0
    %2809 = vmatpush1.msra.mxu0 0.0
    %2810 = vmatprep.subr.mxu0 0.0
    %2811 = vmatpush1.msra.mxu0 0.0
    %2812 = vmatprep.subr.mxu0 0.0
    %2813 = vmatpush1.msra.mxu0 0.0
    %2814 = vmatprep.subr.mxu0 0.0
    %2815 = vmatpush1.msra.mxu0 0.0
    %2816 = vmatprep.mubr.f32.mxu0 0.0
    %2817 = vmatmul.mubr.f32.gmra.mrb[0].mxu0 %v2741
    %v2818 = vpop.f32.mrb[0].mxu0
    %v2819 = vadd.f32 0.0, %v2818
    %v2820 = vpop.f32.mrb[0].mxu0
    %2821 = vmatprep.mubr.f32.mxu0 0.0
    %2822 = vmatmul.mubr.f32.gmra.mrb[0].mxu0 %v2744
    %v2823 = vpop.f32.mrb[0].mxu0
    %v2824 = vadd.f32 0.0, %v2823
    %v2825 = vpop.f32.mrb[0].mxu0
    %2826 = vmatprep.mubr.f32.mxu0 0.0
    %2827 = vmatmul.mubr.f32.gmra.mrb[0].mxu0 %v2747
    %v2828 = vpop.f32.mrb[0].mxu0
    %v2829 = vadd.f32 0.0, %v2828
    %v2830 = vpop.f32.mrb[0].mxu0
    %2831 = vmatprep.mubr.f32.mxu0 0.0
    %2832 = vmatmul.mubr.f32.gmra.mrb[0].mxu0 %v2750
    %v2833 = vpop.f32.mrb[0].mxu0
    %v2834 = vadd.f32 0.0, %v2833
    %v2835 = vpop.f32.mrb[0].mxu0
    %2836 = vdwg.mxu0
    %2841 = vrot.lane.b32.xlu0 %v2072, 64
    %v2842 = vpop.permute.xlu0 %2841
    %2843 = vrot.lane.b32.xlu0 %v2073, 64
    %v2844 = vpop.permute.xlu0 %2843
    %2845 = vrot.lane.b32.xlu0 %v2074, 64
    %v2846 = vpop.permute.xlu0 %2845
    %2847 = vrot.lane.b32.xlu0 %v2075, 64
    %v2848 = vpop.permute.xlu0 %2847
    %v2854 = vsel %vm238, %v2712, 0
    %v2857 = vsel %vm238, %v2713, 0
    %v2860 = vsel %vm238, %v2714, 0
    %v2863 = vsel %vm238, %v2715, 0
    %2865 = vmatprep.subr.mxu0 0.0
    %2866 = vmatpush1.msra.mxu0 %v2842
    %2867 = vmatprep.subr.mxu0 0.0
    %2868 = vmatpush1.msra.mxu0 %v2844
    %2869 = vmatprep.subr.mxu0 0.0
    %2870 = vmatpush1.msra.mxu0 %v2846
    %2871 = vmatprep.subr.mxu0 0.0
    %2872 = vmatpush1.msra.mxu0 %v2848
    %2873 = vmatprep.subr.mxu0 0.0
    %2874 = vmatpush1.msra.mxu0 0.0
    %2875 = vmatprep.subr.mxu0 0.0
    %2876 = vmatpush1.msra.mxu0 0.0
    %2877 = vmatprep.subr.mxu0 0.0
    %2878 = vmatpush1.msra.mxu0 0.0
    %2879 = vmatprep.subr.mxu0 0.0
    %2880 = vmatpush1.msra.mxu0 0.0
    %2881 = vmatprep.subr.mxu0 0.0
    %2882 = vmatpush1.msra.mxu0 0.0
    %2883 = vmatprep.subr.mxu0 0.0
    %2884 = vmatpush1.msra.mxu0 0.0
    %2885 = vmatprep.subr.mxu0 0.0
    %2886 = vmatpush1.msra.mxu0 0.0
    %2887 = vmatprep.subr.mxu0 0.0
    %2888 = vmatpush1.msra.mxu0 0.0
    %2889 = vmatprep.subr.mxu0 0.0
    %2890 = vmatpush1.msra.mxu0 0.0
    %2891 = vmatprep.subr.mxu0 0.0
    %2892 = vmatpush1.msra.mxu0 0.0
    %2893 = vmatprep.subr.mxu0 0.0
    %2894 = vmatpush1.msra.mxu0 0.0
    %2895 = vmatprep.subr.mxu0 0.0
    %2896 = vmatpush1.msra.mxu0 0.0
    %2897 = vmatprep.subr.mxu0 0.0
    %2898 = vmatpush1.msra.mxu0 0.0
    %2899 = vmatprep.subr.mxu0 0.0
    %2900 = vmatpush1.msra.mxu0 0.0
    %2901 = vmatprep.subr.mxu0 0.0
    %2902 = vmatpush1.msra.mxu0 0.0
    %2903 = vmatprep.subr.mxu0 0.0
    %2904 = vmatpush1.msra.mxu0 0.0
    %2905 = vmatprep.subr.mxu0 0.0
    %2906 = vmatpush1.msra.mxu0 0.0
    %2907 = vmatprep.subr.mxu0 0.0
    %2908 = vmatpush1.msra.mxu0 0.0
    %2909 = vmatprep.subr.mxu0 0.0
    %2910 = vmatpush1.msra.mxu0 0.0
    %2911 = vmatprep.subr.mxu0 0.0
    %2912 = vmatpush1.msra.mxu0 0.0
    %2913 = vmatprep.subr.mxu0 0.0
    %2914 = vmatpush1.msra.mxu0 0.0
    %2915 = vmatprep.subr.mxu0 0.0
    %2916 = vmatpush1.msra.mxu0 0.0
    %2917 = vmatprep.subr.mxu0 0.0
    %2918 = vmatpush1.msra.mxu0 0.0
    %2919 = vmatprep.subr.mxu0 0.0
    %2920 = vmatpush1.msra.mxu0 0.0
    %2921 = vmatprep.subr.mxu0 0.0
    %2922 = vmatpush1.msra.mxu0 0.0
    %2923 = vmatprep.subr.mxu0 0.0
    %2924 = vmatpush1.msra.mxu0 0.0
    %2925 = vmatprep.subr.mxu0 0.0
    %2926 = vmatpush1.msra.mxu0 0.0
    %2927 = vmatprep.subr.mxu0 0.0
    %2928 = vmatpush1.msra.mxu0 0.0
    %2929 = vmatprep.mubr.f32.mxu0 0.0
    %2930 = vmatmul.mubr.f32.gmra.mrb[0].mxu0 %v2854
    %v2931 = vpop.f32.mrb[0].mxu0
    %v2932 = vadd.f32 0.0, %v2931
    %v2933 = vpop.f32.mrb[0].mxu0
    %2934 = vmatprep.mubr.f32.mxu0 0.0
    %2935 = vmatmul.mubr.f32.gmra.mrb[0].mxu0 %v2857
    %v2936 = vpop.f32.mrb[0].mxu0
    %v2937 = vadd.f32 0.0, %v2936
    %v2938 = vpop.f32.mrb[0].mxu0
    %2939 = vmatprep.mubr.f32.mxu0 0.0
    %2940 = vmatmul.mubr.f32.gmra.mrb[0].mxu0 %v2860
    %v2941 = vpop.f32.mrb[0].mxu0
    %v2942 = vadd.f32 0.0, %v2941
    %v2943 = vpop.f32.mrb[0].mxu0
    %2944 = vmatprep.mubr.f32.mxu0 0.0
    %2945 = vmatmul.mubr.f32.gmra.mrb[0].mxu0 %v2863
    %v2946 = vpop.f32.mrb[0].mxu0
    %v2947 = vadd.f32 0.0, %v2946
    %v2948 = vpop.f32.mrb[0].mxu0
    %2949 = vdwg.mxu0
    %2954 = vrot.lane.b32.xlu0 %v2076, 64
    %v2955 = vpop.permute.xlu0 %2954
    %2956 = vrot.lane.b32.xlu0 %v2077, 64
    %v2957 = vpop.permute.xlu0 %2956
    %2958 = vrot.lane.b32.xlu0 %v2078, 64
    %v2959 = vpop.permute.xlu0 %2958
    %2960 = vrot.lane.b32.xlu0 %v2079, 64
    %v2961 = vpop.permute.xlu0 %2960
    %v2967 = vsel %vm238, %v2716, 0
    %v2970 = vsel %vm238, %v2717, 0
    %v2973 = vsel %vm238, %v2718, 0
    %v2976 = vsel %vm238, %v2719, 0
    %2978 = vmatprep.subr.mxu0 0.0
    %2979 = vmatpush1.msra.mxu0 %v2955
    %2980 = vmatprep.subr.mxu0 0.0
    %2981 = vmatpush1.msra.mxu0 %v2957
    %2982 = vmatprep.subr.mxu0 0.0
    %2983 = vmatpush1.msra.mxu0 %v2959
    %2984 = vmatprep.subr.mxu0 0.0
    %2985 = vmatpush1.msra.mxu0 %v2961
    %2986 = vmatprep.subr.mxu0 0.0
    %2987 = vmatpush1.msra.mxu0 0.0
    %2988 = vmatprep.subr.mxu0 0.0
    %2989 = vmatpush1.msra.mxu0 0.0
    %2990 = vmatprep.subr.mxu0 0.0
    %2991 = vmatpush1.msra.mxu0 0.0
    %2992 = vmatprep.subr.mxu0 0.0
    %2993 = vmatpush1.msra.mxu0 0.0
    %2994 = vmatprep.subr.mxu0 0.0
    %2995 = vmatpush1.msra.mxu0 0.0
    %2996 = vmatprep.subr.mxu0 0.0
    %2997 = vmatpush1.msra.mxu0 0.0
    %2998 = vmatprep.subr.mxu0 0.0
    %2999 = vmatpush1.msra.mxu0 0.0
    %3000 = vmatprep.subr.mxu0 0.0
    %3001 = vmatpush1.msra.mxu0 0.0
    %3002 = vmatprep.subr.mxu0 0.0
    %3003 = vmatpush1.msra.mxu0 0.0
    %3004 = vmatprep.subr.mxu0 0.0
    %3005 = vmatpush1.msra.mxu0 0.0
    %3006 = vmatprep.subr.mxu0 0.0
    %3007 = vmatpush1.msra.mxu0 0.0
    %3008 = vmatprep.subr.mxu0 0.0
    %3009 = vmatpush1.msra.mxu0 0.0
    %3010 = vmatprep.subr.mxu0 0.0
    %3011 = vmatpush1.msra.mxu0 0.0
    %3012 = vmatprep.subr.mxu0 0.0
    %3013 = vmatpush1.msra.mxu0 0.0
    %3014 = vmatprep.subr.mxu0 0.0
    %3015 = vmatpush1.msra.mxu0 0.0
    %3016 = vmatprep.subr.mxu0 0.0
    %3017 = vmatpush1.msra.mxu0 0.0
    %3018 = vmatprep.subr.mxu0 0.0
    %3019 = vmatpush1.msra.mxu0 0.0
    %3020 = vmatprep.subr.mxu0 0.0
    %3021 = vmatpush1.msra.mxu0 0.0
    %3022 = vmatprep.subr.mxu0 0.0
    %3023 = vmatpush1.msra.mxu0 0.0
    %3024 = vmatprep.subr.mxu0 0.0
    %3025 = vmatpush1.msra.mxu0 0.0
    %3026 = vmatprep.subr.mxu0 0.0
    %3027 = vmatpush1.msra.mxu0 0.0
    %3028 = vmatprep.subr.mxu0 0.0
    %3029 = vmatpush1.msra.mxu0 0.0
    %3030 = vmatprep.subr.mxu0 0.0
    %3031 = vmatpush1.msra.mxu0 0.0
    %3032 = vmatprep.subr.mxu0 0.0
    %3033 = vmatpush1.msra.mxu0 0.0
    %3034 = vmatprep.subr.mxu0 0.0
    %3035 = vmatpush1.msra.mxu0 0.0
    %3036 = vmatprep.subr.mxu0 0.0
    %3037 = vmatpush1.msra.mxu0 0.0
    %3038 = vmatprep.subr.mxu0 0.0
    %3039 = vmatpush1.msra.mxu0 0.0
    %3040 = vmatprep.subr.mxu0 0.0
    %3041 = vmatpush1.msra.mxu0 0.0
    %3042 = vmatprep.mubr.f32.mxu0 0.0
    %3043 = vmatmul.mubr.f32.gmra.mrb[0].mxu0 %v2967
    %v3044 = vpop.f32.mrb[0].mxu0
    %v3045 = vadd.f32 0.0, %v3044
    %v3046 = vpop.f32.mrb[0].mxu0
    %3047 = vmatprep.mubr.f32.mxu0 0.0
    %3048 = vmatmul.mubr.f32.gmra.mrb[0].mxu0 %v2970
    %v3049 = vpop.f32.mrb[0].mxu0
    %v3050 = vadd.f32 0.0, %v3049
    %v3051 = vpop.f32.mrb[0].mxu0
    %3052 = vmatprep.mubr.f32.mxu0 0.0
    %3053 = vmatmul.mubr.f32.gmra.mrb[0].mxu0 %v2973
    %v3054 = vpop.f32.mrb[0].mxu0
    %v3055 = vadd.f32 0.0, %v3054
    %v3056 = vpop.f32.mrb[0].mxu0
    %3057 = vmatprep.mubr.f32.mxu0 0.0
    %3058 = vmatmul.mubr.f32.gmra.mrb[0].mxu0 %v2976
    %v3059 = vpop.f32.mrb[0].mxu0
    %v3060 = vadd.f32 0.0, %v3059
    %v3061 = vpop.f32.mrb[0].mxu0
    %3062 = vdwg.mxu0
    %3067 = vrot.lane.b32.xlu0 %v2080, 64
    %v3068 = vpop.permute.xlu0 %3067
    %3069 = vrot.lane.b32.xlu0 %v2081, 64
    %v3070 = vpop.permute.xlu0 %3069
    %3071 = vrot.lane.b32.xlu0 %v2082, 64
    %v3072 = vpop.permute.xlu0 %3071
    %3073 = vrot.lane.b32.xlu0 %v2083, 64
    %v3074 = vpop.permute.xlu0 %3073
    %v3080 = vsel %vm238, %v2720, 0
    %v3083 = vsel %vm238, %v2721, 0
    %v3086 = vsel %vm238, %v2722, 0
    %v3089 = vsel %vm238, %v2723, 0
    %3091 = vmatprep.subr.mxu0 0.0
    %3092 = vmatpush1.msra.mxu0 %v3068
    %3093 = vmatprep.subr.mxu0 0.0
    %3094 = vmatpush1.msra.mxu0 %v3070
    %3095 = vmatprep.subr.mxu0 0.0
    %3096 = vmatpush1.msra.mxu0 %v3072
    %3097 = vmatprep.subr.mxu0 0.0
    %3098 = vmatpush1.msra.mxu0 %v3074
    %3099 = vmatprep.subr.mxu0 0.0
    %3100 = vmatpush1.msra.mxu0 0.0
    %3101 = vmatprep.subr.mxu0 0.0
    %3102 = vmatpush1.msra.mxu0 0.0
    %3103 = vmatprep.subr.mxu0 0.0
    %3104 = vmatpush1.msra.mxu0 0.0
    %3105 = vmatprep.subr.mxu0 0.0
    %3106 = vmatpush1.msra.mxu0 0.0
    %3107 = vmatprep.subr.mxu0 0.0
    %3108 = vmatpush1.msra.mxu0 0.0
    %3109 = vmatprep.subr.mxu0 0.0
    %3110 = vmatpush1.msra.mxu0 0.0
    %3111 = vmatprep.subr.mxu0 0.0
    %3112 = vmatpush1.msra.mxu0 0.0
    %3113 = vmatprep.subr.mxu0 0.0
    %3114 = vmatpush1.msra.mxu0 0.0
    %3115 = vmatprep.subr.mxu0 0.0
    %3116 = vmatpush1.msra.mxu0 0.0
    %3117 = vmatprep.subr.mxu0 0.0
    %3118 = vmatpush1.msra.mxu0 0.0
    %3119 = vmatprep.subr.mxu0 0.0
    %3120 = vmatpush1.msra.mxu0 0.0
    %3121 = vmatprep.subr.mxu0 0.0
    %3122 = vmatpush1.msra.mxu0 0.0
    %3123 = vmatprep.subr.mxu0 0.0
    %3124 = vmatpush1.msra.mxu0 0.0
    %3125 = vmatprep.subr.mxu0 0.0
    %3126 = vmatpush1.msra.mxu0 0.0
    %3127 = vmatprep.subr.mxu0 0.0
    %3128 = vmatpush1.msra.mxu0 0.0
    %3129 = vmatprep.subr.mxu0 0.0
    %3130 = vmatpush1.msra.mxu0 0.0
    %3131 = vmatprep.subr.mxu0 0.0
    %3132 = vmatpush1.msra.mxu0 0.0
    %3133 = vmatprep.subr.mxu0 0.0
    %3134 = vmatpush1.msra.mxu0 0.0
    %3135 = vmatprep.subr.mxu0 0.0
    %3136 = vmatpush1.msra.mxu0 0.0
    %3137 = vmatprep.subr.mxu0 0.0
    %3138 = vmatpush1.msra.mxu0 0.0
    %3139 = vmatprep.subr.mxu0 0.0
    %3140 = vmatpush1.msra.mxu0 0.0
    %3141 = vmatprep.subr.mxu0 0.0
    %3142 = vmatpush1.msra.mxu0 0.0
    %3143 = vmatprep.subr.mxu0 0.0
    %3144 = vmatpush1.msra.mxu0 0.0
    %3145 = vmatprep.subr.mxu0 0.0
    %3146 = vmatpush1.msra.mxu0 0.0
    %3147 = vmatprep.subr.mxu0 0.0
    %3148 = vmatpush1.msra.mxu0 0.0
    %3149 = vmatprep.subr.mxu0 0.0
    %3150 = vmatpush1.msra.mxu0 0.0
    %3151 = vmatprep.subr.mxu0 0.0
    %3152 = vmatpush1.msra.mxu0 0.0
    %3153 = vmatprep.subr.mxu0 0.0
    %3154 = vmatpush1.msra.mxu0 0.0
    %3155 = vmatprep.mubr.f32.mxu0 0.0
    %3156 = vmatmul.mubr.f32.gmra.mrb[0].mxu0 %v3080
    %v3157 = vpop.f32.mrb[0].mxu0
    %v3158 = vadd.f32 0.0, %v3157
    %v3159 = vpop.f32.mrb[0].mxu0
    %3160 = vmatprep.mubr.f32.mxu0 0.0
    %3161 = vmatmul.mubr.f32.gmra.mrb[0].mxu0 %v3083
    %v3162 = vpop.f32.mrb[0].mxu0
    %v3163 = vadd.f32 0.0, %v3162
    %v3164 = vpop.f32.mrb[0].mxu0
    %3165 = vmatprep.mubr.f32.mxu0 0.0
    %3166 = vmatmul.mubr.f32.gmra.mrb[0].mxu0 %v3086
    %v3167 = vpop.f32.mrb[0].mxu0
    %v3168 = vadd.f32 0.0, %v3167
    %v3169 = vpop.f32.mrb[0].mxu0
    %3170 = vmatprep.mubr.f32.mxu0 0.0
    %3171 = vmatmul.mubr.f32.gmra.mrb[0].mxu0 %v3089
    %v3172 = vpop.f32.mrb[0].mxu0
    %v3173 = vadd.f32 0.0, %v3172
    %v3174 = vpop.f32.mrb[0].mxu0
    %3175 = vdwg.mxu0
    %v3176 = vadd.f32 %v2819, %v2932
    %v3177 = vadd.f32 %v2824, %v2937
    %v3178 = vadd.f32 %v2829, %v2942
    %v3179 = vadd.f32 %v2834, %v2947
    %v3180 = vadd.f32 %v3176, %v3045
    %v3181 = vadd.f32 %v3177, %v3050
    %v3182 = vadd.f32 %v3178, %v3055
    %v3183 = vadd.f32 %v3179, %v3060
    %v3184 = vadd.f32 %v3180, %v3158
    %v3185 = vadd.f32 %v3181, %v3163
    %v3186 = vadd.f32 %v3182, %v3168
    %v3187 = vadd.f32 %v3183, %v3173
    %s3188 = scalar_lea.vmem %s7, 16
    %v3189 = vld [vmem:[%s3188] sm:$0xf]
    %v3190 = vld [vmem:[%s3188 + $0x4] sm:$0xf]
    %v3191 = vld [vmem:[%s3188 + $0x8] sm:$0xf]
    %v3192 = vld [vmem:[%s3188 + $0xc] sm:$0xf]
    %v3193 = vpack.c.bf16 %v3185, %v3184
    %v3194 = vpack.c.bf16 %v3187, %v3186
    %s3195 = scalar_lea.vmem %s8, 1
    %v3196 = vld [vmem:[%s3195] sm:$0x1]
    %v3198 = vlaneseq
    %v3199 = vshrl.u32 %v3198, 7
    %v3200 = vsub.s32 0, %v3199
    %v3201 = vrot.slane %v3196, %v3200
    %v3207 = vunpack.c.l.b16 %v3189
    %v3208 = vunpack.c.l.b16 %v3190
    %v3209 = vunpack.c.l.b16 %v3191
    %v3210 = vunpack.c.l.b16 %v3192
    %v3211 = vpack.c.b16 %v3208, %v3207
    %v3212 = vpack.c.b16 %v3210, %v3209
    %v3214 = vsel %vm238, %v3193, 0
    %v3217 = vsel %vm238, %v3194, 0
    %v3220 = vsel %vm238, %v3211, 0
    %v3223 = vsel %vm238, %v3212, 0
    %3225 = vmatprep.subr.bf16.mxu0 0
    %3226 = vmatpush1.bf16.xpose.msra.mxu0 %v3220
    %3227 = vmatprep.subr.bf16.mxu0 0
    %3228 = vmatpush1.bf16.xpose.msra.mxu0 %v3223
    %3229 = vmatprep.subr.bf16.mxu0 0
    %3230 = vmatpush1.bf16.xpose.msra.mxu0 0
    %3231 = vmatprep.subr.bf16.mxu0 0
    %3232 = vmatpush1.bf16.xpose.msra.mxu0 0
    %3233 = vmatprep.subr.bf16.mxu0 0
    %3234 = vmatpush1.bf16.xpose.msra.mxu0 0
    %3235 = vmatprep.subr.bf16.mxu0 0
    %3236 = vmatpush1.bf16.xpose.msra.mxu0 0
    %3237 = vmatprep.subr.bf16.mxu0 0
    %3238 = vmatpush1.bf16.xpose.msra.mxu0 0
    %3239 = vmatprep.subr.bf16.mxu0 0
    %3240 = vmatpush1.bf16.xpose.msra.mxu0 0
    %3241 = vmatprep.subr.bf16.mxu0 0
    %3242 = vmatpush1.bf16.xpose.msra.mxu0 0
    %3243 = vmatprep.subr.bf16.mxu0 0
    %3244 = vmatpush1.bf16.xpose.msra.mxu0 0
    %3245 = vmatprep.subr.bf16.mxu0 0
    %3246 = vmatpush1.bf16.xpose.msra.mxu0 0
    %3247 = vmatprep.subr.bf16.mxu0 0
    %3248 = vmatpush1.bf16.xpose.msra.mxu0 0
    %3249 = vmatprep.subr.bf16.mxu0 0
    %3250 = vmatpush1.bf16.xpose.msra.mxu0 0
    %3251 = vmatprep.subr.bf16.mxu0 0
    %3252 = vmatpush1.bf16.xpose.msra.mxu0 0
    %3253 = vmatprep.subr.bf16.mxu0 0
    %3254 = vmatpush1.bf16.xpose.msra.mxu0 0
    %3255 = vmatprep.subr.bf16.mxu0 0
    %3256 = vmatpush1.bf16.xpose.msra.mxu0 0
    %3257 = vmatprep.mubr.bf16.mxu0 0
    %3258 = vmatmul.mubr.bf16.gmra.mrb[0].mxu0 %v3214
    %v3259 = vpop.f32.mrb[0].mxu0
    %v3260 = vadd.f32 %v3201, %v3259
    %v3261 = vpop.f32.mrb[0].mxu0
    %v3262 = vpop.f32.mrb[0].mxu0
    %v3263 = vadd.f32 %v3201, %v3262
    %v3264 = vpop.f32.mrb[0].mxu0
    %3265 = vmatprep.mubr.bf16.mxu0 0
    %3266 = vmatmul.mubr.bf16.gmra.mrb[0].mxu0 %v3217
    %v3267 = vpop.f32.mrb[0].mxu0
    %v3268 = vadd.f32 %v3201, %v3267
    %v3269 = vpop.f32.mrb[0].mxu0
    %v3270 = vpop.f32.mrb[0].mxu0
    %v3271 = vadd.f32 %v3201, %v3270
    %v3272 = vpop.f32.mrb[0].mxu0
    %3273 = vdwg.mxu0
    %v3274 = vadd.f32 %v1922, %v3260
    %v3275 = vadd.f32 %v1923, %v3263
    %v3276 = vadd.f32 %v1924, %v3268
    %v3277 = vadd.f32 %v1925, %v3271
    %s3278 = scalar_lea.vmem %s13, 1
    %v3279 = vld [vmem:[%s3278] sm:$0x1]
    %s3280 = scalar_lea.vmem %s14, 1
    %v3281 = vld [vmem:[%s3280] sm:$0x1]
    %v3282 = vsel %vm238, %v3274, 0.0
    %3283 = vadd.xlane.f32.xlu0 %v3282
    %v3284 = vpop.xlane.xlu0 %3283
    %v3285 = vsel %vm238, %v3275, 0.0
    %3286 = vadd.xlane.f32.xlu0 %v3285
    %v3287 = vpop.xlane.xlu0 %3286
    %v3288 = vsel %vm238, %v3276, 0.0
    %3289 = vadd.xlane.f32.xlu0 %v3288
    %v3290 = vpop.xlane.xlu0 %3289
    %v3291 = vsel %vm238, %v3277, 0.0
    %3292 = vadd.xlane.f32.xlu0 %v3291
    %v3293 = vpop.xlane.xlu0 %3292
    %v3294 = vmul.f32 %v3284, %v1594
    %v3295 = vmul.f32 %v3287, %v1594
    %v3296 = vmul.f32 %v3290, %v1594
    %v3297 = vmul.f32 %v3293, %v1594
    %v3298 = vsub.f32 %v3274, %v3294
    %v3299 = vsub.f32 %v3275, %v3295
    %v3300 = vsub.f32 %v3276, %v3296
    %v3301 = vsub.f32 %v3277, %v3297
    %v3302 = vmul.f32 %v3298, %v3298
    %v3303 = vmul.f32 %v3299, %v3299
    %v3304 = vmul.f32 %v3300, %v3300
    %v3305 = vmul.f32 %v3301, %v3301
    %v3306 = vsel %vm238, %v3302, 0.0
    %3307 = vadd.xlane.f32.xlu0 %v3306
    %v3308 = vpop.xlane.xlu0 %3307
    %v3309 = vsel %vm238, %v3303, 0.0
    %3310 = vadd.xlane.f32.xlu0 %v3309
    %v3311 = vpop.xlane.xlu0 %3310
    %v3312 = vsel %vm238, %v3304, 0.0
    %3313 = vadd.xlane.f32.xlu0 %v3312
    %v3314 = vpop.xlane.xlu0 %3313
    %v3315 = vsel %vm238, %v3305, 0.0
    %3316 = vadd.xlane.f32.xlu0 %v3315
    %v3317 = vpop.xlane.xlu0 %3316
    %v3318 = vmul.f32 %v3308, %v1594
    %v3319 = vmul.f32 %v3311, %v1594
    %v3320 = vmul.f32 %v3314, %v1594
    %v3321 = vmul.f32 %v3317, %v1594
    %v3322 = vadd.f32 %v3318, 1e-05
    %v3323 = vadd.f32 %v3319, 1e-05
    %v3324 = vadd.f32 %v3320, 1e-05
    %v3325 = vadd.f32 %v3321, 1e-05
    %v3326 = vrsqrt.pop %v3322
    %v3327 = vrsqrt.pop %v3323
    %v3328 = vrsqrt.pop %v3324
    %v3329 = vrsqrt.pop %v3325
    %v3330 = vmul.f32 %v3298, %v3326
    %v3331 = vmul.f32 %v3299, %v3327
    %v3332 = vmul.f32 %v3300, %v3328
    %v3333 = vmul.f32 %v3301, %v3329
    %v3335 = vlaneseq
    %v3336 = vshrl.u32 %v3335, 7
    %v3337 = vsub.s32 0, %v3336
    %v3338 = vrot.slane %v3279, %v3337
    %v3340 = vmul.f32 %v3330, %v3338
    %v3341 = vmul.f32 %v3331, %v3338
    %v3342 = vmul.f32 %v3332, %v3338
    %v3343 = vmul.f32 %v3333, %v3338
    %v3345 = vlaneseq
    %v3346 = vshrl.u32 %v3345, 7
    %v3347 = vsub.s32 0, %v3346
    %v3348 = vrot.slane %v3281, %v3347
    %v3350 = vadd.f32 %v3340, %v3348
    %v3351 = vadd.f32 %v3341, %v3348
    %v3352 = vadd.f32 %v3342, %v3348
    %v3353 = vadd.f32 %v3343, %v3348
    %s3354 = scalar_lea.vmem %s9, 32
    %v3355 = vld [vmem:[%s3354] sm:$0xf]
    %v3356 = vld [vmem:[%s3354 + $0x4] sm:$0xf]
    %v3357 = vld [vmem:[%s3354 + $0x8] sm:$0xf]
    %v3358 = vld [vmem:[%s3354 + $0xc] sm:$0xf]
    %v3359 = vld [vmem:[%s3354 + $0x10] sm:$0xf]
    %v3360 = vld [vmem:[%s3354 + $0x14] sm:$0xf]
    %v3361 = vld [vmem:[%s3354 + $0x18] sm:$0xf]
    %v3362 = vld [vmem:[%s3354 + $0x1c] sm:$0xf]
    %v3363 = vpack.c.bf16 %v3351, %v3350
    %v3364 = vpack.c.bf16 %v3353, %v3352
    %s3365 = scalar_lea.vmem %s10, 1
    %v3366 = vld [vmem:[%s3365] sm:$0x1]
    %v3368 = vlaneseq
    %v3369 = vshrl.u32 %v3368, 7
    %v3370 = vsub.s32 0, %v3369
    %v3371 = vrot.slane %v3366, %v3370
    %v3381 = vunpack.c.l.b16 %v3355
    %v3382 = vunpack.c.l.b16 %v3356
    %v3383 = vunpack.c.l.b16 %v3357
    %v3384 = vunpack.c.l.b16 %v3358
    %v3385 = vunpack.c.l.b16 %v3359
    %v3386 = vunpack.c.l.b16 %v3360
    %v3387 = vunpack.c.l.b16 %v3361
    %v3388 = vunpack.c.l.b16 %v3362
    %v3389 = vpack.c.b16 %v3382, %v3381
    %v3390 = vpack.c.b16 %v3384, %v3383
    %v3391 = vpack.c.b16 %v3386, %v3385
    %v3392 = vpack.c.b16 %v3388, %v3387
    %v3394 = vsel %vm238, %v3363, 0
    %v3397 = vsel %vm238, %v3364, 0
    %v3400 = vsel %vm238, %v3389, 0
    %v3403 = vsel %vm238, %v3390, 0
    %v3406 = vsel %vm238, %v3391, 0
    %v3409 = vsel %vm238, %v3392, 0
    %3411 = vmatprep.subr.bf16.mxu0 0
    %3412 = vmatpush1.bf16.xpose.msra.mxu0 %v3400
    %3413 = vmatprep.subr.bf16.mxu0 0
    %3414 = vmatpush1.bf16.xpose.msra.mxu0 %v3403
    %3415 = vmatprep.subr.bf16.mxu0 0
    %3416 = vmatpush1.bf16.xpose.msra.mxu0 %v3406
    %3417 = vmatprep.subr.bf16.mxu0 0
    %3418 = vmatpush1.bf16.xpose.msra.mxu0 %v3409
    %3419 = vmatprep.subr.bf16.mxu0 0
    %3420 = vmatpush1.bf16.xpose.msra.mxu0 0
    %3421 = vmatprep.subr.bf16.mxu0 0
    %3422 = vmatpush1.bf16.xpose.msra.mxu0 0
    %3423 = vmatprep.subr.bf16.mxu0 0
    %3424 = vmatpush1.bf16.xpose.msra.mxu0 0
    %3425 = vmatprep.subr.bf16.mxu0 0
    %3426 = vmatpush1.bf16.xpose.msra.mxu0 0
    %3427 = vmatprep.subr.bf16.mxu0 0
    %3428 = vmatpush1.bf16.xpose.msra.mxu0 0
    %3429 = vmatprep.subr.bf16.mxu0 0
    %3430 = vmatpush1.bf16.xpose.msra.mxu0 0
    %3431 = vmatprep.subr.bf16.mxu0 0
    %3432 = vmatpush1.bf16.xpose.msra.mxu0 0
    %3433 = vmatprep.subr.bf16.mxu0 0
    %3434 = vmatpush1.bf16.xpose.msra.mxu0 0
    %3435 = vmatprep.subr.bf16.mxu0 0
    %3436 = vmatpush1.bf16.xpose.msra.mxu0 0
    %3437 = vmatprep.subr.bf16.mxu0 0
    %3438 = vmatpush1.bf16.xpose.msra.mxu0 0
    %3439 = vmatprep.subr.bf16.mxu0 0
    %3440 = vmatpush1.bf16.xpose.msra.mxu0 0
    %3441 = vmatprep.subr.bf16.mxu0 0
    %3442 = vmatpush1.bf16.xpose.msra.mxu0 0
    %3443 = vmatprep.mubr.bf16.mxu0 0
    %3444 = vmatmul.mubr.bf16.gmra.mrb[0].mxu0 %v3394
    %v3445 = vpop.f32.mrb[0].mxu0
    %v3446 = vadd.f32 %v3371, %v3445
    %v3447 = vpop.f32.mrb[0].mxu0
    %v3448 = vpop.f32.mrb[0].mxu0
    %v3449 = vadd.f32 %v3371, %v3448
    %v3450 = vpop.f32.mrb[0].mxu0
    %3451 = vmatprep.mubr.bf16.mxu0 0
    %3452 = vmatmul.mubr.bf16.gmra.mrb[0].mxu0 %v3397
    %v3453 = vpop.f32.mrb[0].mxu0
    %v3454 = vadd.f32 %v3371, %v3453
    %v3455 = vpop.f32.mrb[0].mxu0
    %v3456 = vpop.f32.mrb[0].mxu0
    %v3457 = vadd.f32 %v3371, %v3456
    %v3458 = vpop.f32.mrb[0].mxu0
    %3459 = vdwg.mxu0
    %v3460 = vmax.f32 %v3446, 0.0
    %v3461 = vmax.f32 %v3449, 0.0
    %v3462 = vmax.f32 %v3454, 0.0
    %v3463 = vmax.f32 %v3457, 0.0
    %s3464 = scalar_lea.vmem %s11, 16
    %v3465 = vld [vmem:[%s3464] sm:$0xf]
    %v3466 = vld [vmem:[%s3464 + $0x4] sm:$0xf]
    %v3467 = vld [vmem:[%s3464 + $0x8] sm:$0xf]
    %v3468 = vld [vmem:[%s3464 + $0xc] sm:$0xf]
    %v3469 = vpack.c.bf16 %v3461, %v3460
    %v3470 = vpack.c.bf16 %v3463, %v3462
    %s3471 = scalar_lea.vmem %s12, 1
    %v3472 = vld [vmem:[%s3471] sm:$0x1]
    %v3474 = vlaneseq
    %v3475 = vshrl.u32 %v3474, 7
    %v3476 = vsub.s32 0, %v3475
    %v3477 = vrot.slane %v3472, %v3476
    %v3483 = vunpack.c.l.b16 %v3465
    %v3484 = vunpack.c.l.b16 %v3466
    %v3485 = vunpack.c.l.b16 %v3467
    %v3486 = vunpack.c.l.b16 %v3468
    %v3487 = vpack.c.b16 %v3484, %v3483
    %v3488 = vpack.c.b16 %v3486, %v3485
    %v3490 = vsel %vm1786, %v3469, 0
    %v3493 = vsel %vm1786, %v3470, 0
    %v3496 = vsel %vm1786, %v3487, 0
    %v3499 = vsel %vm1786, %v3488, 0
    %3501 = vmatprep.subr.bf16.mxu0 0
    %3502 = vmatpush1.bf16.xpose.msra.mxu0 %v3496
    %3503 = vmatprep.subr.bf16.mxu0 0
    %3504 = vmatpush1.bf16.xpose.msra.mxu0 %v3499
    %3505 = vmatprep.subr.bf16.mxu0 0
    %3506 = vmatpush1.bf16.xpose.msra.mxu0 0
    %3507 = vmatprep.subr.bf16.mxu0 0
    %3508 = vmatpush1.bf16.xpose.msra.mxu0 0
    %3509 = vmatprep.subr.bf16.mxu0 0
    %3510 = vmatpush1.bf16.xpose.msra.mxu0 0
    %3511 = vmatprep.subr.bf16.mxu0 0
    %3512 = vmatpush1.bf16.xpose.msra.mxu0 0
    %3513 = vmatprep.subr.bf16.mxu0 0
    %3514 = vmatpush1.bf16.xpose.msra.mxu0 0
    %3515 = vmatprep.subr.bf16.mxu0 0
    %3516 = vmatpush1.bf16.xpose.msra.mxu0 0
    %3517 = vmatprep.subr.bf16.mxu0 0
    %3518 = vmatpush1.bf16.xpose.msra.mxu0 0
    %3519 = vmatprep.subr.bf16.mxu0 0
    %3520 = vmatpush1.bf16.xpose.msra.mxu0 0
    %3521 = vmatprep.subr.bf16.mxu0 0
    %3522 = vmatpush1.bf16.xpose.msra.mxu0 0
    %3523 = vmatprep.subr.bf16.mxu0 0
    %3524 = vmatpush1.bf16.xpose.msra.mxu0 0
    %3525 = vmatprep.subr.bf16.mxu0 0
    %3526 = vmatpush1.bf16.xpose.msra.mxu0 0
    %3527 = vmatprep.subr.bf16.mxu0 0
    %3528 = vmatpush1.bf16.xpose.msra.mxu0 0
    %3529 = vmatprep.subr.bf16.mxu0 0
    %3530 = vmatpush1.bf16.xpose.msra.mxu0 0
    %3531 = vmatprep.subr.bf16.mxu0 0
    %3532 = vmatpush1.bf16.xpose.msra.mxu0 0
    %3533 = vmatprep.mubr.bf16.mxu0 0
    %3534 = vmatmul.mubr.bf16.gmra.mrb[0].mxu0 %v3490
    %v3535 = vpop.f32.mrb[0].mxu0
    %v3536 = vadd.f32 %v3477, %v3535
    %v3537 = vpop.f32.mrb[0].mxu0
    %v3538 = vpop.f32.mrb[0].mxu0
    %v3539 = vadd.f32 %v3477, %v3538
    %v3540 = vpop.f32.mrb[0].mxu0
    %3541 = vmatprep.mubr.bf16.mxu0 0
    %3542 = vmatmul.mubr.bf16.gmra.mrb[0].mxu0 %v3493
    %v3543 = vpop.f32.mrb[0].mxu0
    %v3544 = vadd.f32 %v3477, %v3543
    %v3545 = vpop.f32.mrb[0].mxu0
    %v3546 = vpop.f32.mrb[0].mxu0
    %v3547 = vadd.f32 %v3477, %v3546
    %v3548 = vpop.f32.mrb[0].mxu0
    %3549 = vdwg.mxu0
    %v3550 = vadd.f32 %v3350, %v3536
    %v3551 = vadd.f32 %v3351, %v3539
    %v3552 = vadd.f32 %v3352, %v3544
    %v3553 = vadd.f32 %v3353, %v3547
    %s3554 = scalar_lea.vmem %s15, 1
    %v3555 = vld [vmem:[%s3554] sm:$0x1]
    %s3556 = scalar_lea.vmem %s16, 1
    %v3557 = vld [vmem:[%s3556] sm:$0x1]
    %v3558 = vsel %vm238, %v3550, 0.0
    %3559 = vadd.xlane.f32.xlu0 %v3558
    %v3560 = vpop.xlane.xlu0 %3559
    %v3561 = vsel %vm238, %v3551, 0.0
    %3562 = vadd.xlane.f32.xlu0 %v3561
    %v3563 = vpop.xlane.xlu0 %3562
    %v3564 = vsel %vm238, %v3552, 0.0
    %3565 = vadd.xlane.f32.xlu0 %v3564
    %v3566 = vpop.xlane.xlu0 %3565
    %v3567 = vsel %vm238, %v3553, 0.0
    %3568 = vadd.xlane.f32.xlu0 %v3567
    %v3569 = vpop.xlane.xlu0 %3568
    %v3570 = vmul.f32 %v3560, %v1594
    %v3571 = vmul.f32 %v3563, %v1594
    %v3572 = vmul.f32 %v3566, %v1594
    %v3573 = vmul.f32 %v3569, %v1594
    %v3574 = vsub.f32 %v3550, %v3570
    %v3575 = vsub.f32 %v3551, %v3571
    %v3576 = vsub.f32 %v3552, %v3572
    %v3577 = vsub.f32 %v3553, %v3573
    %v3578 = vmul.f32 %v3574, %v3574
    %v3579 = vmul.f32 %v3575, %v3575
    %v3580 = vmul.f32 %v3576, %v3576
    %v3581 = vmul.f32 %v3577, %v3577
    %v3582 = vsel %vm238, %v3578, 0.0
    %3583 = vadd.xlane.f32.xlu0 %v3582
    %v3584 = vpop.xlane.xlu0 %3583
    %v3585 = vsel %vm238, %v3579, 0.0
    %3586 = vadd.xlane.f32.xlu0 %v3585
    %v3587 = vpop.xlane.xlu0 %3586
    %v3588 = vsel %vm238, %v3580, 0.0
    %3589 = vadd.xlane.f32.xlu0 %v3588
    %v3590 = vpop.xlane.xlu0 %3589
    %v3591 = vsel %vm238, %v3581, 0.0
    %3592 = vadd.xlane.f32.xlu0 %v3591
    %v3593 = vpop.xlane.xlu0 %3592
    %v3594 = vmul.f32 %v3584, %v1594
    %v3595 = vmul.f32 %v3587, %v1594
    %v3596 = vmul.f32 %v3590, %v1594
    %v3597 = vmul.f32 %v3593, %v1594
    %v3598 = vadd.f32 %v3594, 1e-05
    %v3599 = vadd.f32 %v3595, 1e-05
    %v3600 = vadd.f32 %v3596, 1e-05
    %v3601 = vadd.f32 %v3597, 1e-05
    %v3602 = vrsqrt.pop %v3598
    %v3603 = vrsqrt.pop %v3599
    %v3604 = vrsqrt.pop %v3600
    %v3605 = vrsqrt.pop %v3601
    %v3606 = vmul.f32 %v3574, %v3602
    %v3607 = vmul.f32 %v3575, %v3603
    %v3608 = vmul.f32 %v3576, %v3604
    %v3609 = vmul.f32 %v3577, %v3605
    %v3611 = vlaneseq
    %v3612 = vshrl.u32 %v3611, 7
    %v3613 = vsub.s32 0, %v3612
    %v3614 = vrot.slane %v3555, %v3613
    %v3616 = vmul.f32 %v3606, %v3614
    %v3617 = vmul.f32 %v3607, %v3614
    %v3618 = vmul.f32 %v3608, %v3614
    %v3619 = vmul.f32 %v3609, %v3614
    %v3621 = vlaneseq
    %v3622 = vshrl.u32 %v3621, 7
    %v3623 = vsub.s32 0, %v3622
    %v3624 = vrot.slane %v3557, %v3623
    %v3626 = vadd.f32 %v3616, %v3624
    %v3627 = vadd.f32 %v3617, %v3624
    %v3628 = vadd.f32 %v3618, %v3624
    %v3629 = vadd.f32 %v3619, %v3624
    %v3630 = vld [vmem:[%s17] sm:$0xf]
    %v3631 = vpack.c.bf16 %v3627, %v3626
    %v3632 = vpack.c.bf16 %v3629, %v3628
    %v3633 = vld [vmem:[%s18] sm:$0x1]
    %v3635 = vlaneseq
    %v3636 = vshrl.u32 %v3635, 7
    %v3637 = vsub.s32 0, %v3636
    %v3638 = vrot.slane %v3633, %v3637
    %v3641 = vsel %vm238, %v3631, 0
    %v3644 = vsel %vm238, %v3632, 0
    %v3647 = vsel %vm238, %v3630, 0
    %3649 = vmatprep.subr.bf16.mxu0 0
    %3650 = vmatpush1.bf16.xpose.msra.mxu0 %v3647
    %3651 = vmatprep.subr.bf16.mxu0 0
    %3652 = vmatpush1.bf16.xpose.msra.mxu0 0
    %3653 = vmatprep.subr.bf16.mxu0 0
    %3654 = vmatpush1.bf16.xpose.msra.mxu0 0
    %3655 = vmatprep.subr.bf16.mxu0 0
    %3656 = vmatpush1.bf16.xpose.msra.mxu0 0
    %3657 = vmatprep.subr.bf16.mxu0 0
    %3658 = vmatpush1.bf16.xpose.msra.mxu0 0
    %3659 = vmatprep.subr.bf16.mxu0 0
    %3660 = vmatpush1.bf16.xpose.msra.mxu0 0
    %3661 = vmatprep.subr.bf16.mxu0 0
    %3662 = vmatpush1.bf16.xpose.msra.mxu0 0
    %3663 = vmatprep.subr.bf16.mxu0 0
    %3664 = vmatpush1.bf16.xpose.msra.mxu0 0
    %3665 = vmatprep.subr.bf16.mxu0 0
    %3666 = vmatpush1.bf16.xpose.msra.mxu0 0
    %3667 = vmatprep.subr.bf16.mxu0 0
    %3668 = vmatpush1.bf16.xpose.msra.mxu0 0
    %3669 = vmatprep.subr.bf16.mxu0 0
    %3670 = vmatpush1.bf16.xpose.msra.mxu0 0
    %3671 = vmatprep.subr.bf16.mxu0 0
    %3672 = vmatpush1.bf16.xpose.msra.mxu0 0
    %3673 = vmatprep.subr.bf16.mxu0 0
    %3674 = vmatpush1.bf16.xpose.msra.mxu0 0
    %3675 = vmatprep.subr.bf16.mxu0 0
    %3676 = vmatpush1.bf16.xpose.msra.mxu0 0
    %3677 = vmatprep.subr.bf16.mxu0 0
    %3678 = vmatpush1.bf16.xpose.msra.mxu0 0
    %3679 = vmatprep.subr.bf16.mxu0 0
    %3680 = vmatpush1.bf16.xpose.msra.mxu0 0
    %3681 = vmatprep.mubr.bf16.mxu0 0
    %3682 = vmatmul.mubr.bf16.gmra.mrb[0].mxu0 %v3641
    %v3683 = vpop.f32.mrb[0].mxu0
    %v3684 = vadd.f32 %v3638, %v3683
    %v3685 = vpop.f32.mrb[0].mxu0
    %v3686 = vpop.f32.mrb[0].mxu0
    %v3687 = vpop.f32.mrb[0].mxu0
    %3688 = vmatprep.mubr.bf16.mxu0 0
    %3689 = vmatmul.mubr.bf16.gmra.mrb[0].mxu0 %v3644
    %v3690 = vpop.f32.mrb[0].mxu0
    %v3691 = vadd.f32 %v3638, %v3690
    %v3692 = vpop.f32.mrb[0].mxu0
    %v3693 = vpop.f32.mrb[0].mxu0
    %v3694 = vpop.f32.mrb[0].mxu0
    %3695 = vdwg.mxu0
    %v3696 = vlaneseq
    %v3697 = vshrl.u32 %v3696, 7
    %vm3698 = vcmp.lt.s32.totalorder %v3697, 4
    %v3699 = vmax.f32 %v3684, 0.0
    %v3700 = vmax.f32 %v3691, 0.0
    %vm3701 = vcmp.ne.f32.partialorder %v3684, %v3684
    %vm3702 = vcmp.ne.f32.partialorder %v3691, %v3691
    %v3703 = vadd.f32 %v3684, 0.0
    %v3704 = vadd.f32 %v3691, 0.0
    %v3705 = vand.u32 2147483647, %v3684
    %v3706 = vand.u32 2147483647, %v3691
    %v3707 = vsub.f32 0.0, %v3705
    %v3708 = vsub.f32 0.0, %v3706
    %v3709 = vmul.f32 %v3707, 1.442695
    %v3710 = vpow.pop %v3709
    %v3711 = vmul.f32 %v3708, 1.442695
    %v3712 = vpow.pop %v3711
    %v3713 = vadd.f32 %v3710, 1.0
    %v3714 = vlog2.pop %v3713
    %v3715 = vmul.f32 %v3714, 0.6931472
    %v3716 = vmul.f32 -0.5, %v3710
    %v3717 = vadd.f32 %v3716, 1.0
    %v3718 = vmul.f32 %v3717, %v3710
    %v3719 = vand.u32 2147483647, %v3710
    %vm3720 = vcmp.lt.f32.partialorder %v3719, 0.0004427343
    %v3721 = vsel %vm3720, %v3718, %v3715
    %v3722 = vadd.f32 %v3712, 1.0
    %v3723 = vlog2.pop %v3722
    %v3724 = vmul.f32 %v3723, 0.6931472
    %v3725 = vmul.f32 -0.5, %v3712
    %v3726 = vadd.f32 %v3725, 1.0
    %v3727 = vmul.f32 %v3726, %v3712
    %v3728 = vand.u32 2147483647, %v3712
    %vm3729 = vcmp.lt.f32.partialorder %v3728, 0.0004427343
    %v3730 = vsel %vm3729, %v3727, %v3724
    %v3731 = vadd.f32 %v3699, %v3721
    %v3732 = vadd.f32 %v3700, %v3730
    %v3733 = vsel %vm3701, %v3703, %v3731
    %v3734 = vsel %vm3702, %v3704, %v3732
    %v3735 = vsel %vm3698, %v3684, %v3733
    %v3736 = vsel %vm3698, %v3691, %v3734
    %vm3737 = vcmask 64512
    %3738 = vst.msk [vmem:[#allocation2] sm:$0xff] %vm3737, %v3735
    %3739 = vst.msk [vmem:[#allocation2 + $0x8] sm:$0xff] %vm3737, %v3736
    // Predicated region
    $region78: #{tpu_custom_call.1} parent=1 // pred_check
      _
    $region79: #{tpu_custom_call.1} parent=1 // pred_check_branch
      %3741 = sbr.rel (0) target = $region81
    $region80: #{tpu_custom_call.1} parent=1 // pred_region
      %s3743 = ssub.s32 256, 256
      %3744 = vsyncadd [#allocation3], %s3743
      %s3745 = sshll.u32 [#allocation2], 4
      %s3746 = int_to_ptr.vmem [resolvable:$true] %s3745
      %3751 = dma.vmem_to_hbm [thread:$0]  %s3746, 256, %s19, [#allocation3], 128, 128, 8
    $region81: #{tpu_custom_call.1} parent=1 // pred_fallthru
      _
    // Predicated region
    $region82: #{tpu_custom_call.1} parent=1 // pred_check
      _
    $region83: #{tpu_custom_call.1} parent=1 // pred_check_branch
      %3753 = sbr.rel (0) target = $region85
    $region84: #{tpu_custom_call.1} parent=1 // pred_region
      %3754 = dma.done [#allocation3], 256
    $region85: #{tpu_custom_call.1} parent=1 // pred_fallthru
      _
    %3755 = vsyncpa [#allocation3], 1

</llo_original>
